<compile_context>
chip_gen: v6e
topology: v6e:2x2x1
jax: 0.10.0
libtpu: 0.0.40
codegen_flags: <defaults>
</compile_context>

<pallas_src>
import functools

import jax
import jax.numpy as jnp
from jax import lax
from jax.experimental import pallas as pl
from jax.experimental.pallas import tpu as pltpu

_COMPILER_PARAMS_CLS = getattr(pltpu, "CompilerParams", None) or getattr(
    pltpu, "TPUCompilerParams"
)


def _round_up(v, m):
    return (v + m - 1) // m * m


def _tpu_params():
    """Returns (num_tensorcores_per_device, usable_vmem_bytes)."""
    n_tc = 1
    vmem_cap = 64 * 2**20                      # conservative default (v7x VMEM)
    try:
        info = pltpu.get_tpu_info()
        vmem_cap = int(getattr(info, "vmem_capacity_bytes", vmem_cap)) or vmem_cap
        for attr in ("num_cores", "core_count", "num_tensorcores",
                     "tensorcore_count", "cores_per_chip"):
            v = getattr(info, attr, None)
            if v:
                n_tc = int(v)
                break
    except Exception:
        pass
    if n_tc == 1:
        try:
            kind = jax.devices()[0].device_kind.lower()
            if "v7" in kind:                   # v7x: 2 TensorCores per chip
                n_tc = 2
        except Exception:
            pass
    n_tc = max(1, min(2, n_tc))
    return n_tc, int(vmem_cap * 3 // 4)        # headroom for compiler scratch


def _fori(lo, hi, body, init, unroll):
    try:
        return lax.fori_loop(lo, hi, body, init, unroll=unroll)
    except TypeError:                          # older fori_loop without unroll=
        return lax.fori_loop(lo, hi, body, init)


def _recurrence_loop(read_xp, write_h, whh, h_ref, tc, unroll):
    """Serial tanh-RNN recurrence over one time chunk.

    read_xp(t) -> (bc, D) f32 pre-projected input x_t @ W_ih + b
    write_h(t, h)            stores the step's hidden state
    h_ref: (bc, D) f32 VMEM carry across time chunks (updated once per chunk).
    """
    bc = h_ref.shape[0]
    if bc >= 16 and bc % 16 == 0:
        # Two independent batch sub-blocks per step: sub-block A's h@W_hh (MXU)
        # overlaps sub-block B's tanh (EUP) and its store in the scheduler.
        half = bc // 2

        def step(t, carry):
            ha, hb = carry
            xt = read_xp(t)
            pa = xt[:half] + jnp.dot(ha.astype(jnp.bfloat16), whh,
                                     preferred_element_type=jnp.float32)
            pb = xt[half:] + jnp.dot(hb.astype(jnp.bfloat16), whh,
                                     preferred_element_type=jnp.float32)
            na, nb_ = jnp.tanh(pa), jnp.tanh(pb)
            write_h(t, jnp.concatenate([na, nb_], axis=0))
            return na, nb_

        h0 = h_ref[...]
        ha, hb = _fori(0, tc, step, (h0[:half], h0[half:]), unroll)
        h_ref[...] = jnp.concatenate([ha, hb], axis=0)
    else:
        def step(t, h):
            pre = read_xp(t) + jnp.dot(h.astype(jnp.bfloat16), whh,
                                       preferred_element_type=jnp.float32)
            h_new = jnp.tanh(pre)
            write_h(t, h_new)
            return h_new

        h_ref[...] = _fori(0, tc, step, h_ref[...], unroll)


def _fused_chunk_kernel(x_ref, wih_ref, whh_ref, b_ref, out_ref,
                        h_ref, acc_ref, *, unroll):
    """One grid step == one (batch shard, time chunk).

    x_ref:   (bc, tc, D) f32  raw inputs, natural (B, T, D) layout
    wih_ref: (D, D)      bf16 input weight   (grid-invariant, VMEM resident)
    whh_ref: (D, D)      bf16 recurrent weight
    b_ref:   (1, D)      f32  bias
    out_ref: (bc, tc, D)      stacked hidden states, natural (B, T, D) layout
    h_ref:   (bc, D)     f32  hidden-state carry across time chunks
    acc_ref: (tc, bc, D) f32  time-major staging for xproj / hidden states
    """
    bc, tc, d = x_ref.shape

    # h0 == zeros at the first time chunk of every batch shard
    # (PyTorch: x.new(...).zero_() when h0 is None).
    @pl.when(pl.program_id(1) == 0)
    def _():
        h_ref[...] = jnp.zeros_like(h_ref)

    # Fused input projection for the whole chunk: one (bc*tc, D) x (D, D) bf16
    # MXU matmul with f32 accumulation (the MXU is otherwise idle during the
    # serial recurrence), staged time-major in VMEM so the recurrence only does
    # leading-dim dynamic indexing.  No HBM intermediate, no HBM transpose.
    x2 = x_ref[...].reshape(bc * tc, d).astype(jnp.bfloat16)
    xp = jnp.dot(x2, wih_ref[...], preferred_element_type=jnp.float32)
    acc_ref[...] = pltpu.einshape("btd->tbd", xp.reshape(bc, tc, d)) + b_ref[...]

    whh = whh_ref[...]          # loaded once, hoisted out of the time loop
    # NOTE: if a bundle dump shows W_hh re-pushed into the MXU every step, pin
    # it with pltpu.matmul_push_rhs once per chunk (not needed for correctness).

    def read_xp(t):
        return acc_ref[t]

    def write_h(t, h):
        acc_ref[t] = h          # overwrite the consumed input slot in place

    _recurrence_loop(read_xp, write_h, whh, h_ref, tc, unroll)

    # One in-VMEM relayout per chunk back to the natural (B, T, D) layout ->
    # lane-dense store, no XLA transpose pass over the output.
    out_ref[...] = pltpu.einshape("tbd->btd", acc_ref[...]).astype(out_ref.dtype)


def _timemajor_chunk_kernel(xp_ref, whh_ref, out_ref, h_ref, *, unroll):
    """Fallback recurrence kernel over a pre-projected, time-major xproj."""
    tc = xp_ref.shape[0]

    @pl.when(pl.program_id(1) == 0)
    def _():
        h_ref[...] = jnp.zeros_like(h_ref)

    whh = whh_ref[...]

    def read_xp(t):
        return xp_ref[t].astype(jnp.float32)

    def write_h(t, h):
        out_ref[t] = h.astype(out_ref.dtype)

    _recurrence_loop(read_xp, write_h, whh, h_ref, tc, unroll)


def _accum_rnn_impl(x, w_ih, w_hh, b, *, fused, single_buffer_weights):
    B, T, D = x.shape
    n_tc, usable_vmem = _tpu_params()

    # --- Padding (exact: padded columns/rows of W and b are zero, so padded
    #     h channels are tanh(0)=0 and never feed back into real channels). ---
    Dp = _round_up(D, 128)                       # lane-dense stores, full MXU tiles
    nb = n_tc if (n_tc > 1 and B > 8) else 1     # batch split only across real TCs
    Bp = _round_up(B, 8 * nb)
    bc = Bp // nb

    # --- Time chunking from the per-generation VMEM budget. ------------------
    bytes_per_tc = (20 if fused else 12) * bc * Dp   # dbl-buffered in/out (+acc)
    w_bufs = 1 if (fused and single_buffer_weights) else 2
    fixed = 2 * Dp * Dp * 2 * w_bufs + bc * Dp * 4 + (2 << 20)
    tc_max = max(8, (usable_vmem - fixed) // bytes_per_tc)
    T8 = _round_up(T, 8)
    tc = max(8, min((int(tc_max) // 8) * 8, T8, 1024))
    nt = -(-T8 // tc)
    tc = _round_up(-(-T8 // nt), 8)              # re-balance chunks, bound tail waste
    Tp = nt * tc

    # Unroll: deep when h fits in a few vregs, shallow when it pressures the
    # 64-vreg file.
    h_vregs = -(-(bc * Dp) // 1024)
    unroll = 8 if h_vregs <= 4 else (4 if h_vregs <= 16 else 2)

    w_ih_p = jnp.pad(w_ih, ((0, Dp - D), (0, Dp - D))).astype(jnp.bfloat16)
    w_hh_p = jnp.pad(w_hh, ((0, Dp - D), (0, Dp - D))).astype(jnp.bfloat16)
    b_p = jnp.pad(jnp.asarray(b, jnp.float32).reshape(1, -1), ((0, 0), (0, Dp - D)))
    x_p = jnp.pad(x, ((0, Bp - B), (0, Tp - T), (0, Dp - D)))

    grid = (nb, nt)
    dim_sem = ("parallel", "arbitrary")          # batch || across TCs, time serial

    if fused:
        w_spec_kwargs = {}
        if single_buffer_weights:
            # Constant index_map => no need to double-buffer the weights.
            w_spec_kwargs["pipeline_mode"] = pl.Buffered(1)
        out_p = pl.pallas_call(
            functools.partial(_fused_chunk_kernel, unroll=unroll),
            out_shape=jax.ShapeDtypeStruct((Bp, Tp, Dp), x.dtype),
            grid_spec=pltpu.PrefetchScalarGridSpec(
                num_scalar_prefetch=0,
                grid=grid,
                in_specs=[
                    pl.BlockSpec((bc, tc, Dp), lambda bi, ti: (bi, ti, 0)),   # x
                    pl.BlockSpec((Dp, Dp), lambda bi, ti: (0, 0), **w_spec_kwargs),  # W_ih
                    pl.BlockSpec((Dp, Dp), lambda bi, ti: (0, 0), **w_spec_kwargs),  # W_hh
                    pl.BlockSpec((1, Dp), lambda bi, ti: (0, 0)),             # bias
                ],
                out_specs=pl.BlockSpec((bc, tc, Dp), lambda bi, ti: (bi, ti, 0)),
                scratch_shapes=[pltpu.VMEM((bc, Dp), jnp.float32),       # h carry
                                pltpu.VMEM((tc, bc, Dp), jnp.float32)],  # time-major stage
            ),
            compiler_params=_COMPILER_PARAMS_CLS(
                dimension_semantics=dim_sem, vmem_limit_bytes=int(usable_vmem)),
        )(x_p, w_ih_p, w_hh_p, b_p)
        return out_p[:B, :T, :D]

    # ---- Fallback path: hoisted XLA projection (bf16, time-major) + original
    #      recurrence kernel + output transpose in XLA. -----------------------
    xproj = (jnp.einsum("btd,de->tbe", x_p.astype(jnp.bfloat16), w_ih_p,
                        preferred_element_type=jnp.float32) + b_p
             ).astype(jnp.bfloat16)                               # (Tp, Bp, Dp)
    out_tm = pl.pallas_call(
        functools.partial(_timemajor_chunk_kernel, unroll=unroll),
        out_shape=jax.ShapeDtypeStruct((Tp, Bp, Dp), x.dtype),
        grid_spec=pltpu.PrefetchScalarGridSpec(
            num_scalar_prefetch=0,
            grid=grid,
            in_specs=[
                pl.BlockSpec((tc, bc, Dp), lambda bi, ti: (ti, bi, 0)),   # xproj
                pl.BlockSpec((Dp, Dp), lambda bi, ti: (0, 0)),            # W_hh
            ],
            out_specs=pl.BlockSpec((tc, bc, Dp), lambda bi, ti: (ti, bi, 0)),
            scratch_shapes=[pltpu.VMEM((bc, Dp), jnp.float32)],
        ),
        compiler_params=_COMPILER_PARAMS_CLS(
            dimension_semantics=dim_sem, vmem_limit_bytes=int(usable_vmem)),
    )(xproj, w_hh_p)
    return jnp.transpose(out_tm, (1, 0, 2))[:B, :T, :D]


def accum_rnn(x, w_ih, w_hh, b):
    """x: (B, T, D). Returns stacked hidden states (B, T, D)."""
    attempts = (
        dict(fused=True, single_buffer_weights=True),
        dict(fused=True, single_buffer_weights=False),
        dict(fused=False, single_buffer_weights=False),
    )
    last_err = None
    for kw in attempts:
        try:
            return jax.block_until_ready(_accum_rnn_impl(x, w_ih, w_hh, b, **kw))
        except Exception as e:       # fall back if a lowering feature is missing
            last_err = e
    raise last_err


def accum_rnn_ref(x, w_ih, w_hh, b):
    """Pure-JAX f32 reference (lax.scan) matching the PyTorch loop."""
    def step(h, xt):
        h_new = jnp.tanh(xt @ w_ih + h @ w_hh + b)
        return h_new, h_new

    h0 = jnp.zeros((x.shape[0], x.shape[2]), jnp.float32)
    _, hs = lax.scan(step, h0, jnp.transpose(x, (1, 0, 2)))
    return jnp.transpose(hs, (1, 0, 2))


if __name__ == "__main__":
    B, T, D = 4, 8, 32  # batch, seq, feature == hidden (h has x.size(-1) cols)

    key = jax.random.PRNGKey(0)
    kx, kih, khh, kb1, kb2 = jax.random.split(key, 5)

    x = jax.random.normal(kx, (B, T, D), jnp.float32)
    scale = 1.0 / jnp.sqrt(jnp.float32(D))          # PyTorch RNNCell-style init
    w_ih = jax.random.uniform(kih, (D, D), jnp.float32, -scale, scale)
    w_hh = jax.random.uniform(khh, (D, D), jnp.float32, -scale, scale)
    b_ih = jax.random.uniform(kb1, (1, D), jnp.float32, -scale, scale)
    b_hh = jax.random.uniform(kb2, (1, D), jnp.float32, -scale, scale)
    b = b_ih + b_hh

    out = jax.block_until_ready(accum_rnn(x, w_ih, w_hh, b))
    ref = jax.block_until_ready(accum_rnn_ref(x, w_ih, w_hh, b))

    assert out.shape == (B, T, D)
    # Tolerance loosened vs the f32 reference because the MXU operands are
    # bf16 (accumulation stays f32, so the drift over T=8 steps is small).
    assert jnp.allclose(out, ref, atol=5e-2, rtol=5e-2), float(
        jnp.max(jnp.abs(out - ref)))
    print("KERNEL_OK")
</pallas_src>

<mosaic_0001>
module attributes {stable_mosaic.version = 11 : i64} {
  func.func @_fused_chunk_kernel(%arg0: i32, %arg1: i32, %arg2: memref<8x8x128xf32, #tpu.memory_space<vmem>>, %arg3: memref<128x128xbf16, #tpu.memory_space<vmem>>, %arg4: memref<128x128xbf16, #tpu.memory_space<vmem>>, %arg5: memref<1x128xf32, #tpu.memory_space<vmem>>, %arg6: memref<8x8x128xf32, #tpu.memory_space<vmem>>, %arg7: memref<8x128xf32, #tpu.memory_space<vmem>>, %arg8: memref<8x8x128xf32, #tpu.memory_space<vmem>>) attributes {dimension_semantics = [#tpu.dimension_semantics<parallel>, #tpu.dimension_semantics<arbitrary>], iteration_bounds = array<i64: 1, 1>, scalar_prefetch = 0 : i64, scratch_operands = 2 : i64, tpu.core_type = #tpu.core_type<tc>, window_params = [{transform_indices = @transform_0, window_bounds = array<i64: 8, 8, 128>}, {pipeline_mode = #tpu.pipeline_mode<synchronous>, transform_indices = @transform_1, window_bounds = array<i64: 128, 128>}, {pipeline_mode = #tpu.pipeline_mode<synchronous>, transform_indices = @transform_2, window_bounds = array<i64: 128, 128>}, {pipeline_mode = #tpu.pipeline_mode<synchronous>, transform_indices = @transform_3, window_bounds = array<i64: 1, 128>}, {transform_indices = @transform_4, window_bounds = array<i64: 8, 8, 128>}]} {
    %c0_i32 = arith.constant 0 : i32
    %0 = arith.cmpi eq, %arg1, %c0_i32 : i32
    %1 = arith.extui %0 : i1 to i32
    %c0_i32_0 = arith.constant 0 : i32
    %2 = arith.cmpi ne, %1, %c0_i32_0 : i32
    scf.if %2 {
      %cst_63 = arith.constant 0.000000e+00 : f32
      %109 = vector.broadcast %cst_63 : f32 to vector<8x128xf32>
      %c0_64 = arith.constant 0 : index
      %c0_65 = arith.constant 0 : index
      %110 = vector.load %arg7[%c0_64, %c0_65] : memref<8x128xf32, #tpu.memory_space<vmem>>, vector<8x128xf32>
      tpu.vector_store %arg7[%c0_64, %c0_65], %109 {strides = array<i32>} : memref<8x128xf32, #tpu.memory_space<vmem>>, vector<8x128xf32>,
    } else {
    }
    %c0 = arith.constant 0 : index
    %c0_1 = arith.constant 0 : index
    %c0_2 = arith.constant 0 : index
    %3 = vector.load %arg2[%c0, %c0_1, %c0_2] : memref<8x8x128xf32, #tpu.memory_space<vmem>>, vector<8x8x128xf32>
    %4 = vector.shape_cast %3 : vector<8x8x128xf32> to vector<64x128xf32>
    %5 = arith.truncf %4 : vector<64x128xf32> to vector<64x128xbf16>
    %c0_3 = arith.constant 0 : index
    %c0_4 = arith.constant 0 : index
    %6 = vector.load %arg3[%c0_3, %c0_4] : memref<128x128xbf16, #tpu.memory_space<vmem>>, vector<128x128xbf16>
    %cst = arith.constant dense<0.000000e+00> : vector<64x128xf32>
    %7 = tpu.matmul %5, %6, %cst {dimension_numbers = #tpu.dot_dimension_numbers<[1], [0], [0], [1], [0, 0, 1, 1], [], []>} : vector<64x128xbf16>, vector<128x128xbf16>, vector<64x128xf32> -> vector<64x128xf32>
    %8 = vector.shape_cast %7 : vector<64x128xf32> to vector<8x8x128xf32>
    %9 = tpu.transpose %8, [1, 0, 2] : vector<8x8x128xf32> -> vector<8x8x128xf32>
    %c0_5 = arith.constant 0 : index
    %c0_6 = arith.constant 0 : index
    %10 = vector.load %arg5[%c0_5, %c0_6] : memref<1x128xf32, #tpu.memory_space<vmem>>, vector<1x128xf32>
    %11 = vector.shape_cast %10 : vector<1x128xf32> to vector<1x1x128xf32>
    %12 = vector.broadcast %11 : vector<1x1x128xf32> to vector<8x8x128xf32>
    %13 = arith.addf %9, %12 : vector<8x8x128xf32>
    %c0_7 = arith.constant 0 : index
    %c0_8 = arith.constant 0 : index
    %c0_9 = arith.constant 0 : index
    %14 = vector.load %arg8[%c0_7, %c0_8, %c0_9] : memref<8x8x128xf32, #tpu.memory_space<vmem>>, vector<8x8x128xf32>
    tpu.vector_store %arg8[%c0_7, %c0_8, %c0_9], %13 {strides = array<i32>} : memref<8x8x128xf32, #tpu.memory_space<vmem>>, vector<8x8x128xf32>,
    %c0_10 = arith.constant 0 : index
    %c0_11 = arith.constant 0 : index
    %15 = vector.load %arg4[%c0_10, %c0_11] : memref<128x128xbf16, #tpu.memory_space<vmem>>, vector<128x128xbf16>
    %c0_12 = arith.constant 0 : index
    %c0_13 = arith.constant 0 : index
    %16 = vector.load %arg7[%c0_12, %c0_13] : memref<8x128xf32, #tpu.memory_space<vmem>>, vector<8x128xf32>
    %c0_i32_14 = arith.constant 0 : i32
    %17 = arith.index_cast %c0_i32_14 : i32 to index
    %c0_15 = arith.constant 0 : index
    %c0_16 = arith.constant 0 : index
    %18 = vector.load %arg8[%17, %c0_15, %c0_16] : memref<8x8x128xf32, #tpu.memory_space<vmem>>, vector<1x8x128xf32>
    %19 = vector.shape_cast %18 : vector<1x8x128xf32> to vector<8x128xf32>
    %20 = arith.truncf %16 : vector<8x128xf32> to vector<8x128xbf16>
    %cst_17 = arith.constant dense<0.000000e+00> : vector<8x128xf32>
    %21 = tpu.matmul %20, %15, %cst_17 {dimension_numbers = #tpu.dot_dimension_numbers<[1], [0], [0], [1], [0, 0, 1, 1], [], []>} : vector<8x128xbf16>, vector<128x128xbf16>, vector<8x128xf32> -> vector<8x128xf32>
    %22 = arith.addf %19, %21 : vector<8x128xf32>
    %23 = math.tanh %22 : vector<8x128xf32>
    %24 = arith.index_cast %c0_i32_14 : i32 to index
    %c0_18 = arith.constant 0 : index
    %c0_19 = arith.constant 0 : index
    %25 = vector.load %arg8[%24, %c0_18, %c0_19] : memref<8x8x128xf32, #tpu.memory_space<vmem>>, vector<1x8x128xf32>
    %26 = vector.shape_cast %25 : vector<1x8x128xf32> to vector<8x128xf32>
    %27 = vector.shape_cast %23 : vector<8x128xf32> to vector<1x8x128xf32>
    tpu.vector_store %arg8[%24, %c0_18, %c0_19], %27 {strides = array<i32>} : memref<8x8x128xf32, #tpu.memory_space<vmem>>, vector<1x8x128xf32>,
    %c1_i32 = arith.constant 1 : i32
    %28 = arith.index_cast %c1_i32 : i32 to index
    %c0_20 = arith.constant 0 : index
    %c0_21 = arith.constant 0 : index
    %29 = vector.load %arg8[%28, %c0_20, %c0_21] : memref<8x8x128xf32, #tpu.memory_space<vmem>>, vector<1x8x128xf32>
    %30 = vector.shape_cast %29 : vector<1x8x128xf32> to vector<8x128xf32>
    %31 = arith.truncf %23 : vector<8x128xf32> to vector<8x128xbf16>
    %cst_22 = arith.constant dense<0.000000e+00> : vector<8x128xf32>
    %32 = tpu.matmul %31, %15, %cst_22 {dimension_numbers = #tpu.dot_dimension_numbers<[1], [0], [0], [1], [0, 0, 1, 1], [], []>} : vector<8x128xbf16>, vector<128x128xbf16>, vector<8x128xf32> -> vector<8x128xf32>
    %33 = arith.addf %30, %32 : vector<8x128xf32>
    %34 = math.tanh %33 : vector<8x128xf32>
    %35 = arith.index_cast %c1_i32 : i32 to index
    %c0_23 = arith.constant 0 : index
    %c0_24 = arith.constant 0 : index
    %36 = vector.load %arg8[%35, %c0_23, %c0_24] : memref<8x8x128xf32, #tpu.memory_space<vmem>>, vector<1x8x128xf32>
    %37 = vector.shape_cast %36 : vector<1x8x128xf32> to vector<8x128xf32>
    %38 = vector.shape_cast %34 : vector<8x128xf32> to vector<1x8x128xf32>
    tpu.vector_store %arg8[%35, %c0_23, %c0_24], %38 {strides = array<i32>} : memref<8x8x128xf32, #tpu.memory_space<vmem>>, vector<1x8x128xf32>,
    %c2_i32 = arith.constant 2 : i32
    %39 = arith.index_cast %c2_i32 : i32 to index
    %c0_25 = arith.constant 0 : index
    %c0_26 = arith.constant 0 : index
    %40 = vector.load %arg8[%39, %c0_25, %c0_26] : memref<8x8x128xf32, #tpu.memory_space<vmem>>, vector<1x8x128xf32>
    %41 = vector.shape_cast %40 : vector<1x8x128xf32> to vector<8x128xf32>
    %42 = arith.truncf %34 : vector<8x128xf32> to vector<8x128xbf16>
    %cst_27 = arith.constant dense<0.000000e+00> : vector<8x128xf32>
    %43 = tpu.matmul %42, %15, %cst_27 {dimension_numbers = #tpu.dot_dimension_numbers<[1], [0], [0], [1], [0, 0, 1, 1], [], []>} : vector<8x128xbf16>, vector<128x128xbf16>, vector<8x128xf32> -> vector<8x128xf32>
    %44 = arith.addf %41, %43 : vector<8x128xf32>
    %45 = math.tanh %44 : vector<8x128xf32>
    %46 = arith.index_cast %c2_i32 : i32 to index
    %c0_28 = arith.constant 0 : index
    %c0_29 = arith.constant 0 : index
    %47 = vector.load %arg8[%46, %c0_28, %c0_29] : memref<8x8x128xf32, #tpu.memory_space<vmem>>, vector<1x8x128xf32>
    %48 = vector.shape_cast %47 : vector<1x8x128xf32> to vector<8x128xf32>
    %49 = vector.shape_cast %45 : vector<8x128xf32> to vector<1x8x128xf32>
    tpu.vector_store %arg8[%46, %c0_28, %c0_29], %49 {strides = array<i32>} : memref<8x8x128xf32, #tpu.memory_space<vmem>>, vector<1x8x128xf32>,
    %c3_i32 = arith.constant 3 : i32
    %50 = arith.index_cast %c3_i32 : i32 to index
    %c0_30 = arith.constant 0 : index
    %c0_31 = arith.constant 0 : index
    %51 = vector.load %arg8[%50, %c0_30, %c0_31] : memref<8x8x128xf32, #tpu.memory_space<vmem>>, vector<1x8x128xf32>
    %52 = vector.shape_cast %51 : vector<1x8x128xf32> to vector<8x128xf32>
    %53 = arith.truncf %45 : vector<8x128xf32> to vector<8x128xbf16>
    %cst_32 = arith.constant dense<0.000000e+00> : vector<8x128xf32>
    %54 = tpu.matmul %53, %15, %cst_32 {dimension_numbers = #tpu.dot_dimension_numbers<[1], [0], [0], [1], [0, 0, 1, 1], [], []>} : vector<8x128xbf16>, vector<128x128xbf16>, vector<8x128xf32> -> vector<8x128xf32>
    %55 = arith.addf %52, %54 : vector<8x128xf32>
    %56 = math.tanh %55 : vector<8x128xf32>
    %57 = arith.index_cast %c3_i32 : i32 to index
    %c0_33 = arith.constant 0 : index
    %c0_34 = arith.constant 0 : index
    %58 = vector.load %arg8[%57, %c0_33, %c0_34] : memref<8x8x128xf32, #tpu.memory_space<vmem>>, vector<1x8x128xf32>
    %59 = vector.shape_cast %58 : vector<1x8x128xf32> to vector<8x128xf32>
    %60 = vector.shape_cast %56 : vector<8x128xf32> to vector<1x8x128xf32>
    tpu.vector_store %arg8[%57, %c0_33, %c0_34], %60 {strides = array<i32>} : memref<8x8x128xf32, #tpu.memory_space<vmem>>, vector<1x8x128xf32>,
    %c4_i32 = arith.constant 4 : i32
    %61 = arith.index_cast %c4_i32 : i32 to index
    %c0_35 = arith.constant 0 : index
    %c0_36 = arith.constant 0 : index
    %62 = vector.load %arg8[%61, %c0_35, %c0_36] : memref<8x8x128xf32, #tpu.memory_space<vmem>>, vector<1x8x128xf32>
    %63 = vector.shape_cast %62 : vector<1x8x128xf32> to vector<8x128xf32>
    %64 = arith.truncf %56 : vector<8x128xf32> to vector<8x128xbf16>
    %cst_37 = arith.constant dense<0.000000e+00> : vector<8x128xf32>
    %65 = tpu.matmul %64, %15, %cst_37 {dimension_numbers = #tpu.dot_dimension_numbers<[1], [0], [0], [1], [0, 0, 1, 1], [], []>} : vector<8x128xbf16>, vector<128x128xbf16>, vector<8x128xf32> -> vector<8x128xf32>
    %66 = arith.addf %63, %65 : vector<8x128xf32>
    %67 = math.tanh %66 : vector<8x128xf32>
    %68 = arith.index_cast %c4_i32 : i32 to index
    %c0_38 = arith.constant 0 : index
    %c0_39 = arith.constant 0 : index
    %69 = vector.load %arg8[%68, %c0_38, %c0_39] : memref<8x8x128xf32, #tpu.memory_space<vmem>>, vector<1x8x128xf32>
    %70 = vector.shape_cast %69 : vector<1x8x128xf32> to vector<8x128xf32>
    %71 = vector.shape_cast %67 : vector<8x128xf32> to vector<1x8x128xf32>
    tpu.vector_store %arg8[%68, %c0_38, %c0_39], %71 {strides = array<i32>} : memref<8x8x128xf32, #tpu.memory_space<vmem>>, vector<1x8x128xf32>,
    %c5_i32 = arith.constant 5 : i32
    %72 = arith.index_cast %c5_i32 : i32 to index
    %c0_40 = arith.constant 0 : index
    %c0_41 = arith.constant 0 : index
    %73 = vector.load %arg8[%72, %c0_40, %c0_41] : memref<8x8x128xf32, #tpu.memory_space<vmem>>, vector<1x8x128xf32>
    %74 = vector.shape_cast %73 : vector<1x8x128xf32> to vector<8x128xf32>
    %75 = arith.truncf %67 : vector<8x128xf32> to vector<8x128xbf16>
    %cst_42 = arith.constant dense<0.000000e+00> : vector<8x128xf32>
    %76 = tpu.matmul %75, %15, %cst_42 {dimension_numbers = #tpu.dot_dimension_numbers<[1], [0], [0], [1], [0, 0, 1, 1], [], []>} : vector<8x128xbf16>, vector<128x128xbf16>, vector<8x128xf32> -> vector<8x128xf32>
    %77 = arith.addf %74, %76 : vector<8x128xf32>
    %78 = math.tanh %77 : vector<8x128xf32>
    %79 = arith.index_cast %c5_i32 : i32 to index
    %c0_43 = arith.constant 0 : index
    %c0_44 = arith.constant 0 : index
    %80 = vector.load %arg8[%79, %c0_43, %c0_44] : memref<8x8x128xf32, #tpu.memory_space<vmem>>, vector<1x8x128xf32>
    %81 = vector.shape_cast %80 : vector<1x8x128xf32> to vector<8x128xf32>
    %82 = vector.shape_cast %78 : vector<8x128xf32> to vector<1x8x128xf32>
    tpu.vector_store %arg8[%79, %c0_43, %c0_44], %82 {strides = array<i32>} : memref<8x8x128xf32, #tpu.memory_space<vmem>>, vector<1x8x128xf32>,
    %c6_i32 = arith.constant 6 : i32
    %83 = arith.index_cast %c6_i32 : i32 to index
    %c0_45 = arith.constant 0 : index
    %c0_46 = arith.constant 0 : index
    %84 = vector.load %arg8[%83, %c0_45, %c0_46] : memref<8x8x128xf32, #tpu.memory_space<vmem>>, vector<1x8x128xf32>
    %85 = vector.shape_cast %84 : vector<1x8x128xf32> to vector<8x128xf32>
    %86 = arith.truncf %78 : vector<8x128xf32> to vector<8x128xbf16>
    %cst_47 = arith.constant dense<0.000000e+00> : vector<8x128xf32>
    %87 = tpu.matmul %86, %15, %cst_47 {dimension_numbers = #tpu.dot_dimension_numbers<[1], [0], [0], [1], [0, 0, 1, 1], [], []>} : vector<8x128xbf16>, vector<128x128xbf16>, vector<8x128xf32> -> vector<8x128xf32>
    %88 = arith.addf %85, %87 : vector<8x128xf32>
    %89 = math.tanh %88 : vector<8x128xf32>
    %90 = arith.index_cast %c6_i32 : i32 to index
    %c0_48 = arith.constant 0 : index
    %c0_49 = arith.constant 0 : index
    %91 = vector.load %arg8[%90, %c0_48, %c0_49] : memref<8x8x128xf32, #tpu.memory_space<vmem>>, vector<1x8x128xf32>
    %92 = vector.shape_cast %91 : vector<1x8x128xf32> to vector<8x128xf32>
    %93 = vector.shape_cast %89 : vector<8x128xf32> to vector<1x8x128xf32>
    tpu.vector_store %arg8[%90, %c0_48, %c0_49], %93 {strides = array<i32>} : memref<8x8x128xf32, #tpu.memory_space<vmem>>, vector<1x8x128xf32>,
    %c7_i32 = arith.constant 7 : i32
    %94 = arith.index_cast %c7_i32 : i32 to index
    %c0_50 = arith.constant 0 : index
    %c0_51 = arith.constant 0 : index
    %95 = vector.load %arg8[%94, %c0_50, %c0_51] : memref<8x8x128xf32, #tpu.memory_space<vmem>>, vector<1x8x128xf32>
    %96 = vector.shape_cast %95 : vector<1x8x128xf32> to vector<8x128xf32>
    %97 = arith.truncf %89 : vector<8x128xf32> to vector<8x128xbf16>
    %cst_52 = arith.constant dense<0.000000e+00> : vector<8x128xf32>
    %98 = tpu.matmul %97, %15, %cst_52 {dimension_numbers = #tpu.dot_dimension_numbers<[1], [0], [0], [1], [0, 0, 1, 1], [], []>} : vector<8x128xbf16>, vector<128x128xbf16>, vector<8x128xf32> -> vector<8x128xf32>
    %99 = arith.addf %96, %98 : vector<8x128xf32>
    %100 = math.tanh %99 : vector<8x128xf32>
    %101 = arith.index_cast %c7_i32 : i32 to index
    %c0_53 = arith.constant 0 : index
    %c0_54 = arith.constant 0 : index
    %102 = vector.load %arg8[%101, %c0_53, %c0_54] : memref<8x8x128xf32, #tpu.memory_space<vmem>>, vector<1x8x128xf32>
    %103 = vector.shape_cast %102 : vector<1x8x128xf32> to vector<8x128xf32>
    %104 = vector.shape_cast %100 : vector<8x128xf32> to vector<1x8x128xf32>
    tpu.vector_store %arg8[%101, %c0_53, %c0_54], %104 {strides = array<i32>} : memref<8x8x128xf32, #tpu.memory_space<vmem>>, vector<1x8x128xf32>,
    %c8_i32 = arith.constant 8 : i32
    %c0_55 = arith.constant 0 : index
    %c0_56 = arith.constant 0 : index
    %105 = vector.load %arg7[%c0_55, %c0_56] : memref<8x128xf32, #tpu.memory_space<vmem>>, vector<8x128xf32>
    tpu.vector_store %arg7[%c0_55, %c0_56], %100 {strides = array<i32>} : memref<8x128xf32, #tpu.memory_space<vmem>>, vector<8x128xf32>,
    %c0_57 = arith.constant 0 : index
    %c0_58 = arith.constant 0 : index
    %c0_59 = arith.constant 0 : index
    %106 = vector.load %arg8[%c0_57, %c0_58, %c0_59] : memref<8x8x128xf32, #tpu.memory_space<vmem>>, vector<8x8x128xf32>
    %107 = tpu.transpose %106, [1, 0, 2] : vector<8x8x128xf32> -> vector<8x8x128xf32>
    %c0_60 = arith.constant 0 : index
    %c0_61 = arith.constant 0 : index
    %c0_62 = arith.constant 0 : index
    %108 = vector.load %arg6[%c0_60, %c0_61, %c0_62] : memref<8x8x128xf32, #tpu.memory_space<vmem>>, vector<8x8x128xf32>
    tpu.vector_store %arg6[%c0_60, %c0_61, %c0_62], %107 {strides = array<i32>} : memref<8x8x128xf32, #tpu.memory_space<vmem>>, vector<8x8x128xf32>,
    return
  }
  func.func @transform_0(%arg0: i32, %arg1: i32) -> (i32, i32, i32) {
    %c0_i32 = arith.constant 0 : i32
    %c0_i32_0 = arith.constant 0 : i32
    return %arg0, %arg1, %c0_i32 : i32, i32, i32
  }
  func.func @transform_1(%arg0: i32, %arg1: i32) -> (i32, i32) {
    %c0_i32 = arith.constant 0 : i32
    %c0_i32_0 = arith.constant 0 : i32
    %c0_i32_1 = arith.constant 0 : i32
    return %c0_i32, %c0_i32_0 : i32, i32
  }
  func.func @transform_2(%arg0: i32, %arg1: i32) -> (i32, i32) {
    %c0_i32 = arith.constant 0 : i32
    %c0_i32_0 = arith.constant 0 : i32
    %c0_i32_1 = arith.constant 0 : i32
    return %c0_i32, %c0_i32_0 : i32, i32
  }
  func.func @transform_3(%arg0: i32, %arg1: i32) -> (i32, i32) {
    %c0_i32 = arith.constant 0 : i32
    %c0_i32_0 = arith.constant 0 : i32
    %c0_i32_1 = arith.constant 0 : i32
    return %c0_i32, %c0_i32_0 : i32, i32
  }
  func.func @transform_4(%arg0: i32, %arg1: i32) -> (i32, i32, i32) {
    %c0_i32 = arith.constant 0 : i32
    %c0_i32_0 = arith.constant 0 : i32
    return %arg0, %arg1, %c0_i32 : i32, i32, i32
  }
}

module attributes {stable_mosaic.version = 11 : i64} {
  func.func @_fused_chunk_kernel(%arg0: i32, %arg1: i32, %arg2: memref<8x8x128xf32, #tpu.memory_space<vmem>>, %arg3: memref<128x128xbf16, #tpu.memory_space<vmem>>, %arg4: memref<128x128xbf16, #tpu.memory_space<vmem>>, %arg5: memref<1x128xf32, #tpu.memory_space<vmem>>, %arg6: memref<8x8x128xf32, #tpu.memory_space<vmem>>, %arg7: memref<8x128xf32, #tpu.memory_space<vmem>>, %arg8: memref<8x8x128xf32, #tpu.memory_space<vmem>>) attributes {dimension_semantics = [#tpu.dimension_semantics<parallel>, #tpu.dimension_semantics<arbitrary>], iteration_bounds = array<i64: 1, 1>, scalar_prefetch = 0 : i64, scratch_operands = 2 : i64, tpu.core_type = #tpu.core_type<tc>, window_params = [{transform_indices = @transform_0, window_bounds = array<i64: 8, 8, 128>}, {pipeline_mode = #tpu.pipeline_mode<synchronous>, transform_indices = @transform_1, window_bounds = array<i64: 128, 128>}, {pipeline_mode = #tpu.pipeline_mode<synchronous>, transform_indices = @transform_2, window_bounds = array<i64: 128, 128>}, {pipeline_mode = #tpu.pipeline_mode<synchronous>, transform_indices = @transform_3, window_bounds = array<i64: 1, 128>}, {transform_indices = @transform_4, window_bounds = array<i64: 8, 8, 128>}]} {
    %c0_i32 = arith.constant 0 : i32
    %0 = arith.cmpi eq, %arg1, %c0_i32 : i32
    %1 = arith.extui %0 : i1 to i32
    %c0_i32_0 = arith.constant 0 : i32
    %2 = arith.cmpi ne, %1, %c0_i32_0 : i32
    scf.if %2 {
      %cst_63 = arith.constant 0.000000e+00 : f32
      %109 = vector.broadcast %cst_63 : f32 to vector<8x128xf32>
      %c0_64 = arith.constant 0 : index
      %c0_65 = arith.constant 0 : index
      %110 = vector.load %arg7[%c0_64, %c0_65] : memref<8x128xf32, #tpu.memory_space<vmem>>, vector<8x128xf32>
      tpu.vector_store %arg7[%c0_64, %c0_65], %109 {strides = array<i32>} : memref<8x128xf32, #tpu.memory_space<vmem>>, vector<8x128xf32>,
    } else {
    }
    %c0 = arith.constant 0 : index
    %c0_1 = arith.constant 0 : index
    %c0_2 = arith.constant 0 : index
    %3 = vector.load %arg2[%c0, %c0_1, %c0_2] : memref<8x8x128xf32, #tpu.memory_space<vmem>>, vector<8x8x128xf32>
    %4 = vector.shape_cast %3 : vector<8x8x128xf32> to vector<64x128xf32>
    %5 = arith.truncf %4 : vector<64x128xf32> to vector<64x128xbf16>
    %c0_3 = arith.constant 0 : index
    %c0_4 = arith.constant 0 : index
    %6 = vector.load %arg3[%c0_3, %c0_4] : memref<128x128xbf16, #tpu.memory_space<vmem>>, vector<128x128xbf16>
    %cst = arith.constant dense<0.000000e+00> : vector<64x128xf32>
    %7 = tpu.matmul %5, %6, %cst {dimension_numbers = #tpu.dot_dimension_numbers<[1], [0], [0], [1], [0, 0, 1, 1], [], []>} : vector<64x128xbf16>, vector<128x128xbf16>, vector<64x128xf32> -> vector<64x128xf32>
    %8 = vector.shape_cast %7 : vector<64x128xf32> to vector<8x8x128xf32>
    %9 = tpu.transpose %8, [1, 0, 2] : vector<8x8x128xf32> -> vector<8x8x128xf32>
    %c0_5 = arith.constant 0 : index
    %c0_6 = arith.constant 0 : index
    %10 = vector.load %arg5[%c0_5, %c0_6] : memref<1x128xf32, #tpu.memory_space<vmem>>, vector<1x128xf32>
    %11 = vector.shape_cast %10 : vector<1x128xf32> to vector<1x1x128xf32>
    %12 = vector.broadcast %11 : vector<1x1x128xf32> to vector<8x8x128xf32>
    %13 = arith.addf %9, %12 : vector<8x8x128xf32>
    %c0_7 = arith.constant 0 : index
    %c0_8 = arith.constant 0 : index
    %c0_9 = arith.constant 0 : index
    %14 = vector.load %arg8[%c0_7, %c0_8, %c0_9] : memref<8x8x128xf32, #tpu.memory_space<vmem>>, vector<8x8x128xf32>
    tpu.vector_store %arg8[%c0_7, %c0_8, %c0_9], %13 {strides = array<i32>} : memref<8x8x128xf32, #tpu.memory_space<vmem>>, vector<8x8x128xf32>,
    %c0_10 = arith.constant 0 : index
    %c0_11 = arith.constant 0 : index
    %15 = vector.load %arg4[%c0_10, %c0_11] : memref<128x128xbf16, #tpu.memory_space<vmem>>, vector<128x128xbf16>
    %c0_12 = arith.constant 0 : index
    %c0_13 = arith.constant 0 : index
    %16 = vector.load %arg7[%c0_12, %c0_13] : memref<8x128xf32, #tpu.memory_space<vmem>>, vector<8x128xf32>
    %c0_i32_14 = arith.constant 0 : i32
    %17 = arith.index_cast %c0_i32_14 : i32 to index
    %c0_15 = arith.constant 0 : index
    %c0_16 = arith.constant 0 : index
    %18 = vector.load %arg8[%17, %c0_15, %c0_16] : memref<8x8x128xf32, #tpu.memory_space<vmem>>, vector<1x8x128xf32>
    %19 = vector.shape_cast %18 : vector<1x8x128xf32> to vector<8x128xf32>
    %20 = arith.truncf %16 : vector<8x128xf32> to vector<8x128xbf16>
    %cst_17 = arith.constant dense<0.000000e+00> : vector<8x128xf32>
    %21 = tpu.matmul %20, %15, %cst_17 {dimension_numbers = #tpu.dot_dimension_numbers<[1], [0], [0], [1], [0, 0, 1, 1], [], []>} : vector<8x128xbf16>, vector<128x128xbf16>, vector<8x128xf32> -> vector<8x128xf32>
    %22 = arith.addf %19, %21 : vector<8x128xf32>
    %23 = math.tanh %22 : vector<8x128xf32>
    %24 = arith.index_cast %c0_i32_14 : i32 to index
    %c0_18 = arith.constant 0 : index
    %c0_19 = arith.constant 0 : index
    %25 = vector.load %arg8[%24, %c0_18, %c0_19] : memref<8x8x128xf32, #tpu.memory_space<vmem>>, vector<1x8x128xf32>
    %26 = vector.shape_cast %25 : vector<1x8x128xf32> to vector<8x128xf32>
    %27 = vector.shape_cast %23 : vector<8x128xf32> to vector<1x8x128xf32>
    tpu.vector_store %arg8[%24, %c0_18, %c0_19], %27 {strides = array<i32>} : memref<8x8x128xf32, #tpu.memory_space<vmem>>, vector<1x8x128xf32>,
    %c1_i32 = arith.constant 1 : i32
    %28 = arith.index_cast %c1_i32 : i32 to index
    %c0_20 = arith.constant 0 : index
    %c0_21 = arith.constant 0 : index
    %29 = vector.load %arg8[%28, %c0_20, %c0_21] : memref<8x8x128xf32, #tpu.memory_space<vmem>>, vector<1x8x128xf32>
    %30 = vector.shape_cast %29 : vector<1x8x128xf32> to vector<8x128xf32>
    %31 = arith.truncf %23 : vector<8x128xf32> to vector<8x128xbf16>
    %cst_22 = arith.constant dense<0.000000e+00> : vector<8x128xf32>
    %32 = tpu.matmul %31, %15, %cst_22 {dimension_numbers = #tpu.dot_dimension_numbers<[1], [0], [0], [1], [0, 0, 1, 1], [], []>} : vector<8x128xbf16>, vector<128x128xbf16>, vector<8x128xf32> -> vector<8x128xf32>
    %33 = arith.addf %30, %32 : vector<8x128xf32>
    %34 = math.tanh %33 : vector<8x128xf32>
    %35 = arith.index_cast %c1_i32 : i32 to index
    %c0_23 = arith.constant 0 : index
    %c0_24 = arith.constant 0 : index
    %36 = vector.load %arg8[%35, %c0_23, %c0_24] : memref<8x8x128xf32, #tpu.memory_space<vmem>>, vector<1x8x128xf32>
    %37 = vector.shape_cast %36 : vector<1x8x128xf32> to vector<8x128xf32>
    %38 = vector.shape_cast %34 : vector<8x128xf32> to vector<1x8x128xf32>
    tpu.vector_store %arg8[%35, %c0_23, %c0_24], %38 {strides = array<i32>} : memref<8x8x128xf32, #tpu.memory_space<vmem>>, vector<1x8x128xf32>,
    %c2_i32 = arith.constant 2 : i32
    %39 = arith.index_cast %c2_i32 : i32 to index
    %c0_25 = arith.constant 0 : index
    %c0_26 = arith.constant 0 : index
    %40 = vector.load %arg8[%39, %c0_25, %c0_26] : memref<8x8x128xf32, #tpu.memory_space<vmem>>, vector<1x8x128xf32>
    %41 = vector.shape_cast %40 : vector<1x8x128xf32> to vector<8x128xf32>
    %42 = arith.truncf %34 : vector<8x128xf32> to vector<8x128xbf16>
    %cst_27 = arith.constant dense<0.000000e+00> : vector<8x128xf32>
    %43 = tpu.matmul %42, %15, %cst_27 {dimension_numbers = #tpu.dot_dimension_numbers<[1], [0], [0], [1], [0, 0, 1, 1], [], []>} : vector<8x128xbf16>, vector<128x128xbf16>, vector<8x128xf32> -> vector<8x128xf32>
    %44 = arith.addf %41, %43 : vector<8x128xf32>
    %45 = math.tanh %44 : vector<8x128xf32>
    %46 = arith.index_cast %c2_i32 : i32 to index
    %c0_28 = arith.constant 0 : index
    %c0_29 = arith.constant 0 : index
    %47 = vector.load %arg8[%46, %c0_28, %c0_29] : memref<8x8x128xf32, #tpu.memory_space<vmem>>, vector<1x8x128xf32>
    %48 = vector.shape_cast %47 : vector<1x8x128xf32> to vector<8x128xf32>
    %49 = vector.shape_cast %45 : vector<8x128xf32> to vector<1x8x128xf32>
    tpu.vector_store %arg8[%46, %c0_28, %c0_29], %49 {strides = array<i32>} : memref<8x8x128xf32, #tpu.memory_space<vmem>>, vector<1x8x128xf32>,
    %c3_i32 = arith.constant 3 : i32
    %50 = arith.index_cast %c3_i32 : i32 to index
    %c0_30 = arith.constant 0 : index
    %c0_31 = arith.constant 0 : index
    %51 = vector.load %arg8[%50, %c0_30, %c0_31] : memref<8x8x128xf32, #tpu.memory_space<vmem>>, vector<1x8x128xf32>
    %52 = vector.shape_cast %51 : vector<1x8x128xf32> to vector<8x128xf32>
    %53 = arith.truncf %45 : vector<8x128xf32> to vector<8x128xbf16>
    %cst_32 = arith.constant dense<0.000000e+00> : vector<8x128xf32>
    %54 = tpu.matmul %53, %15, %cst_32 {dimension_numbers = #tpu.dot_dimension_numbers<[1], [0], [0], [1], [0, 0, 1, 1], [], []>} : vector<8x128xbf16>, vector<128x128xbf16>, vector<8x128xf32> -> vector<8x128xf32>
    %55 = arith.addf %52, %54 : vector<8x128xf32>
    %56 = math.tanh %55 : vector<8x128xf32>
    %57 = arith.index_cast %c3_i32 : i32 to index
    %c0_33 = arith.constant 0 : index
    %c0_34 = arith.constant 0 : index
    %58 = vector.load %arg8[%57, %c0_33, %c0_34] : memref<8x8x128xf32, #tpu.memory_space<vmem>>, vector<1x8x128xf32>
    %59 = vector.shape_cast %58 : vector<1x8x128xf32> to vector<8x128xf32>
    %60 = vector.shape_cast %56 : vector<8x128xf32> to vector<1x8x128xf32>
    tpu.vector_store %arg8[%57, %c0_33, %c0_34], %60 {strides = array<i32>} : memref<8x8x128xf32, #tpu.memory_space<vmem>>, vector<1x8x128xf32>,
    %c4_i32 = arith.constant 4 : i32
    %61 = arith.index_cast %c4_i32 : i32 to index
    %c0_35 = arith.constant 0 : index
    %c0_36 = arith.constant 0 : index
    %62 = vector.load %arg8[%61, %c0_35, %c0_36] : memref<8x8x128xf32, #tpu.memory_space<vmem>>, vector<1x8x128xf32>
    %63 = vector.shape_cast %62 : vector<1x8x128xf32> to vector<8x128xf32>
    %64 = arith.truncf %56 : vector<8x128xf32> to vector<8x128xbf16>
    %cst_37 = arith.constant dense<0.000000e+00> : vector<8x128xf32>
    %65 = tpu.matmul %64, %15, %cst_37 {dimension_numbers = #tpu.dot_dimension_numbers<[1], [0], [0], [1], [0, 0, 1, 1], [], []>} : vector<8x128xbf16>, vector<128x128xbf16>, vector<8x128xf32> -> vector<8x128xf32>
    %66 = arith.addf %63, %65 : vector<8x128xf32>
    %67 = math.tanh %66 : vector<8x128xf32>
    %68 = arith.index_cast %c4_i32 : i32 to index
    %c0_38 = arith.constant 0 : index
    %c0_39 = arith.constant 0 : index
    %69 = vector.load %arg8[%68, %c0_38, %c0_39] : memref<8x8x128xf32, #tpu.memory_space<vmem>>, vector<1x8x128xf32>
    %70 = vector.shape_cast %69 : vector<1x8x128xf32> to vector<8x128xf32>
    %71 = vector.shape_cast %67 : vector<8x128xf32> to vector<1x8x128xf32>
    tpu.vector_store %arg8[%68, %c0_38, %c0_39], %71 {strides = array<i32>} : memref<8x8x128xf32, #tpu.memory_space<vmem>>, vector<1x8x128xf32>,
    %c5_i32 = arith.constant 5 : i32
    %72 = arith.index_cast %c5_i32 : i32 to index
    %c0_40 = arith.constant 0 : index
    %c0_41 = arith.constant 0 : index
    %73 = vector.load %arg8[%72, %c0_40, %c0_41] : memref<8x8x128xf32, #tpu.memory_space<vmem>>, vector<1x8x128xf32>
    %74 = vector.shape_cast %73 : vector<1x8x128xf32> to vector<8x128xf32>
    %75 = arith.truncf %67 : vector<8x128xf32> to vector<8x128xbf16>
    %cst_42 = arith.constant dense<0.000000e+00> : vector<8x128xf32>
    %76 = tpu.matmul %75, %15, %cst_42 {dimension_numbers = #tpu.dot_dimension_numbers<[1], [0], [0], [1], [0, 0, 1, 1], [], []>} : vector<8x128xbf16>, vector<128x128xbf16>, vector<8x128xf32> -> vector<8x128xf32>
    %77 = arith.addf %74, %76 : vector<8x128xf32>
    %78 = math.tanh %77 : vector<8x128xf32>
    %79 = arith.index_cast %c5_i32 : i32 to index
    %c0_43 = arith.constant 0 : index
    %c0_44 = arith.constant 0 : index
    %80 = vector.load %arg8[%79, %c0_43, %c0_44] : memref<8x8x128xf32, #tpu.memory_space<vmem>>, vector<1x8x128xf32>
    %81 = vector.shape_cast %80 : vector<1x8x128xf32> to vector<8x128xf32>
    %82 = vector.shape_cast %78 : vector<8x128xf32> to vector<1x8x128xf32>
    tpu.vector_store %arg8[%79, %c0_43, %c0_44], %82 {strides = array<i32>} : memref<8x8x128xf32, #tpu.memory_space<vmem>>, vector<1x8x128xf32>,
    %c6_i32 = arith.constant 6 : i32
    %83 = arith.index_cast %c6_i32 : i32 to index
    %c0_45 = arith.constant 0 : index
    %c0_46 = arith.constant 0 : index
    %84 = vector.load %arg8[%83, %c0_45, %c0_46] : memref<8x8x128xf32, #tpu.memory_space<vmem>>, vector<1x8x128xf32>
    %85 = vector.shape_cast %84 : vector<1x8x128xf32> to vector<8x128xf32>
    %86 = arith.truncf %78 : vector<8x128xf32> to vector<8x128xbf16>
    %cst_47 = arith.constant dense<0.000000e+00> : vector<8x128xf32>
    %87 = tpu.matmul %86, %15, %cst_47 {dimension_numbers = #tpu.dot_dimension_numbers<[1], [0], [0], [1], [0, 0, 1, 1], [], []>} : vector<8x128xbf16>, vector<128x128xbf16>, vector<8x128xf32> -> vector<8x128xf32>
    %88 = arith.addf %85, %87 : vector<8x128xf32>
    %89 = math.tanh %88 : vector<8x128xf32>
    %90 = arith.index_cast %c6_i32 : i32 to index
    %c0_48 = arith.constant 0 : index
    %c0_49 = arith.constant 0 : index
    %91 = vector.load %arg8[%90, %c0_48, %c0_49] : memref<8x8x128xf32, #tpu.memory_space<vmem>>, vector<1x8x128xf32>
    %92 = vector.shape_cast %91 : vector<1x8x128xf32> to vector<8x128xf32>
    %93 = vector.shape_cast %89 : vector<8x128xf32> to vector<1x8x128xf32>
    tpu.vector_store %arg8[%90, %c0_48, %c0_49], %93 {strides = array<i32>} : memref<8x8x128xf32, #tpu.memory_space<vmem>>, vector<1x8x128xf32>,
    %c7_i32 = arith.constant 7 : i32
    %94 = arith.index_cast %c7_i32 : i32 to index
    %c0_50 = arith.constant 0 : index
    %c0_51 = arith.constant 0 : index
    %95 = vector.load %arg8[%94, %c0_50, %c0_51] : memref<8x8x128xf32, #tpu.memory_space<vmem>>, vector<1x8x128xf32>
    %96 = vector.shape_cast %95 : vector<1x8x128xf32> to vector<8x128xf32>
    %97 = arith.truncf %89 : vector<8x128xf32> to vector<8x128xbf16>
    %cst_52 = arith.constant dense<0.000000e+00> : vector<8x128xf32>
    %98 = tpu.matmul %97, %15, %cst_52 {dimension_numbers = #tpu.dot_dimension_numbers<[1], [0], [0], [1], [0, 0, 1, 1], [], []>} : vector<8x128xbf16>, vector<128x128xbf16>, vector<8x128xf32> -> vector<8x128xf32>
    %99 = arith.addf %96, %98 : vector<8x128xf32>
    %100 = math.tanh %99 : vector<8x128xf32>
    %101 = arith.index_cast %c7_i32 : i32 to index
    %c0_53 = arith.constant 0 : index
    %c0_54 = arith.constant 0 : index
    %102 = vector.load %arg8[%101, %c0_53, %c0_54] : memref<8x8x128xf32, #tpu.memory_space<vmem>>, vector<1x8x128xf32>
    %103 = vector.shape_cast %102 : vector<1x8x128xf32> to vector<8x128xf32>
    %104 = vector.shape_cast %100 : vector<8x128xf32> to vector<1x8x128xf32>
    tpu.vector_store %arg8[%101, %c0_53, %c0_54], %104 {strides = array<i32>} : memref<8x8x128xf32, #tpu.memory_space<vmem>>, vector<1x8x128xf32>,
    %c8_i32 = arith.constant 8 : i32
    %c0_55 = arith.constant 0 : index
    %c0_56 = arith.constant 0 : index
    %105 = vector.load %arg7[%c0_55, %c0_56] : memref<8x128xf32, #tpu.memory_space<vmem>>, vector<8x128xf32>
    tpu.vector_store %arg7[%c0_55, %c0_56], %100 {strides = array<i32>} : memref<8x128xf32, #tpu.memory_space<vmem>>, vector<8x128xf32>,
    %c0_57 = arith.constant 0 : index
    %c0_58 = arith.constant 0 : index
    %c0_59 = arith.constant 0 : index
    %106 = vector.load %arg8[%c0_57, %c0_58, %c0_59] : memref<8x8x128xf32, #tpu.memory_space<vmem>>, vector<8x8x128xf32>
    %107 = tpu.transpose %106, [1, 0, 2] : vector<8x8x128xf32> -> vector<8x8x128xf32>
    %c0_60 = arith.constant 0 : index
    %c0_61 = arith.constant 0 : index
    %c0_62 = arith.constant 0 : index
    %108 = vector.load %arg6[%c0_60, %c0_61, %c0_62] : memref<8x8x128xf32, #tpu.memory_space<vmem>>, vector<8x8x128xf32>
    tpu.vector_store %arg6[%c0_60, %c0_61, %c0_62], %107 {strides = array<i32>} : memref<8x8x128xf32, #tpu.memory_space<vmem>>, vector<8x8x128xf32>,
    return
  }
  func.func @transform_0(%arg0: i32, %arg1: i32) -> (i32, i32, i32) {
    %c0_i32 = arith.constant 0 : i32
    %c0_i32_0 = arith.constant 0 : i32
    return %arg0, %arg1, %c0_i32 : i32, i32, i32
  }
  func.func @transform_1(%arg0: i32, %arg1: i32) -> (i32, i32) {
    %c0_i32 = arith.constant 0 : i32
    %c0_i32_0 = arith.constant 0 : i32
    %c0_i32_1 = arith.constant 0 : i32
    return %c0_i32, %c0_i32_0 : i32, i32
  }
  func.func @transform_2(%arg0: i32, %arg1: i32) -> (i32, i32) {
    %c0_i32 = arith.constant 0 : i32
    %c0_i32_0 = arith.constant 0 : i32
    %c0_i32_1 = arith.constant 0 : i32
    return %c0_i32, %c0_i32_0 : i32, i32
  }
  func.func @transform_3(%arg0: i32, %arg1: i32) -> (i32, i32) {
    %c0_i32 = arith.constant 0 : i32
    %c0_i32_0 = arith.constant 0 : i32
    %c0_i32_1 = arith.constant 0 : i32
    return %c0_i32, %c0_i32_0 : i32, i32
  }
  func.func @transform_4(%arg0: i32, %arg1: i32) -> (i32, i32, i32) {
    %c0_i32 = arith.constant 0 : i32
    %c0_i32_0 = arith.constant 0 : i32
    return %arg0, %arg1, %c0_i32 : i32, i32, i32
  }
}

module attributes {stable_mosaic.version = 11 : i64} {
  func.func @_timemajor_chunk_kernel(%arg0: i32, %arg1: i32, %arg2: memref<8x8x128xbf16, #tpu.memory_space<vmem>>, %arg3: memref<128x128xbf16, #tpu.memory_space<vmem>>, %arg4: memref<8x8x128xf32, #tpu.memory_space<vmem>>, %arg5: memref<8x128xf32, #tpu.memory_space<vmem>>) attributes {dimension_semantics = [#tpu.dimension_semantics<parallel>, #tpu.dimension_semantics<arbitrary>], iteration_bounds = array<i64: 1, 1>, scalar_prefetch = 0 : i64, scratch_operands = 1 : i64, tpu.core_type = #tpu.core_type<tc>, window_params = [{transform_indices = @transform_0, window_bounds = array<i64: 8, 8, 128>}, {pipeline_mode = #tpu.pipeline_mode<synchronous>, transform_indices = @transform_1, window_bounds = array<i64: 128, 128>}, {transform_indices = @transform_2, window_bounds = array<i64: 8, 8, 128>}]} {
    %c0_i32 = arith.constant 0 : i32
    %0 = arith.cmpi eq, %arg1, %c0_i32 : i32
    %1 = arith.extui %0 : i1 to i32
    %c0_i32_0 = arith.constant 0 : i32
    %2 = arith.cmpi ne, %1, %c0_i32_0 : i32
    scf.if %2 {
      %cst_46 = arith.constant 0.000000e+00 : f32
      %102 = vector.broadcast %cst_46 : f32 to vector<8x128xf32>
      %c0_47 = arith.constant 0 : index
      %c0_48 = arith.constant 0 : index
      %103 = vector.load %arg5[%c0_47, %c0_48] : memref<8x128xf32, #tpu.memory_space<vmem>>, vector<8x128xf32>
      tpu.vector_store %arg5[%c0_47, %c0_48], %102 {strides = array<i32>} : memref<8x128xf32, #tpu.memory_space<vmem>>, vector<8x128xf32>,
    } else {
    }
    %c0 = arith.constant 0 : index
    %c0_1 = arith.constant 0 : index
    %3 = vector.load %arg3[%c0, %c0_1] : memref<128x128xbf16, #tpu.memory_space<vmem>>, vector<128x128xbf16>
    %c0_2 = arith.constant 0 : index
    %c0_3 = arith.constant 0 : index
    %4 = vector.load %arg5[%c0_2, %c0_3] : memref<8x128xf32, #tpu.memory_space<vmem>>, vector<8x128xf32>
    %c0_i32_4 = arith.constant 0 : i32
    %5 = arith.index_cast %c0_i32_4 : i32 to index
    %c0_5 = arith.constant 0 : index
    %c0_6 = arith.constant 0 : index
    %6 = vector.load %arg2[%5, %c0_5, %c0_6] : memref<8x8x128xbf16, #tpu.memory_space<vmem>>, vector<1x8x128xbf16>
    %7 = vector.shape_cast %6 : vector<1x8x128xbf16> to vector<8x128xbf16>
    %8 = arith.extf %7 : vector<8x128xbf16> to vector<8x128xf32>
    %9 = arith.truncf %4 : vector<8x128xf32> to vector<8x128xbf16>
    %cst = arith.constant dense<0.000000e+00> : vector<8x128xf32>
    %10 = tpu.matmul %9, %3, %cst {dimension_numbers = #tpu.dot_dimension_numbers<[1], [0], [0], [1], [0, 0, 1, 1], [], []>} : vector<8x128xbf16>, vector<128x128xbf16>, vector<8x128xf32> -> vector<8x128xf32>
    %11 = arith.addf %8, %10 : vector<8x128xf32>
    %12 = math.tanh %11 : vector<8x128xf32>
    %13 = arith.index_cast %c0_i32_4 : i32 to index
    %c0_7 = arith.constant 0 : index
    %c0_8 = arith.constant 0 : index
    %14 = vector.load %arg4[%13, %c0_7, %c0_8] : memref<8x8x128xf32, #tpu.memory_space<vmem>>, vector<1x8x128xf32>
    %15 = vector.shape_cast %14 : vector<1x8x128xf32> to vector<8x128xf32>
    %16 = vector.shape_cast %12 : vector<8x128xf32> to vector<1x8x128xf32>
    tpu.vector_store %arg4[%13, %c0_7, %c0_8], %16 {strides = array<i32>} : memref<8x8x128xf32, #tpu.memory_space<vmem>>, vector<1x8x128xf32>,
    %c1_i32 = arith.constant 1 : i32
    %17 = arith.index_cast %c1_i32 : i32 to index
    %c0_9 = arith.constant 0 : index
    %c0_10 = arith.constant 0 : index
    %18 = vector.load %arg2[%17, %c0_9, %c0_10] : memref<8x8x128xbf16, #tpu.memory_space<vmem>>, vector<1x8x128xbf16>
    %19 = vector.shape_cast %18 : vector<1x8x128xbf16> to vector<8x128xbf16>
    %20 = arith.extf %19 : vector<8x128xbf16> to vector<8x128xf32>
    %21 = arith.truncf %12 : vector<8x128xf32> to vector<8x128xbf16>
    %cst_11 = arith.constant dense<0.000000e+00> : vector<8x128xf32>
    %22 = tpu.matmul %21, %3, %cst_11 {dimension_numbers = #tpu.dot_dimension_numbers<[1], [0], [0], [1], [0, 0, 1, 1], [], []>} : vector<8x128xbf16>, vector<128x128xbf16>, vector<8x128xf32> -> vector<8x128xf32>
    %23 = arith.addf %20, %22 : vector<8x128xf32>
    %24 = math.tanh %23 : vector<8x128xf32>
    %25 = arith.index_cast %c1_i32 : i32 to index
    %c0_12 = arith.constant 0 : index
    %c0_13 = arith.constant 0 : index
    %26 = vector.load %arg4[%25, %c0_12, %c0_13] : memref<8x8x128xf32, #tpu.memory_space<vmem>>, vector<1x8x128xf32>
    %27 = vector.shape_cast %26 : vector<1x8x128xf32> to vector<8x128xf32>
    %28 = vector.shape_cast %24 : vector<8x128xf32> to vector<1x8x128xf32>
    tpu.vector_store %arg4[%25, %c0_12, %c0_13], %28 {strides = array<i32>} : memref<8x8x128xf32, #tpu.memory_space<vmem>>, vector<1x8x128xf32>,
    %c2_i32 = arith.constant 2 : i32
    %29 = arith.index_cast %c2_i32 : i32 to index
    %c0_14 = arith.constant 0 : index
    %c0_15 = arith.constant 0 : index
    %30 = vector.load %arg2[%29, %c0_14, %c0_15] : memref<8x8x128xbf16, #tpu.memory_space<vmem>>, vector<1x8x128xbf16>
    %31 = vector.shape_cast %30 : vector<1x8x128xbf16> to vector<8x128xbf16>
    %32 = arith.extf %31 : vector<8x128xbf16> to vector<8x128xf32>
    %33 = arith.truncf %24 : vector<8x128xf32> to vector<8x128xbf16>
    %cst_16 = arith.constant dense<0.000000e+00> : vector<8x128xf32>
    %34 = tpu.matmul %33, %3, %cst_16 {dimension_numbers = #tpu.dot_dimension_numbers<[1], [0], [0], [1], [0, 0, 1, 1], [], []>} : vector<8x128xbf16>, vector<128x128xbf16>, vector<8x128xf32> -> vector<8x128xf32>
    %35 = arith.addf %32, %34 : vector<8x128xf32>
    %36 = math.tanh %35 : vector<8x128xf32>
    %37 = arith.index_cast %c2_i32 : i32 to index
    %c0_17 = arith.constant 0 : index
    %c0_18 = arith.constant 0 : index
    %38 = vector.load %arg4[%37, %c0_17, %c0_18] : memref<8x8x128xf32, #tpu.memory_space<vmem>>, vector<1x8x128xf32>
    %39 = vector.shape_cast %38 : vector<1x8x128xf32> to vector<8x128xf32>
    %40 = vector.shape_cast %36 : vector<8x128xf32> to vector<1x8x128xf32>
    tpu.vector_store %arg4[%37, %c0_17, %c0_18], %40 {strides = array<i32>} : memref<8x8x128xf32, #tpu.memory_space<vmem>>, vector<1x8x128xf32>,
    %c3_i32 = arith.constant 3 : i32
    %41 = arith.index_cast %c3_i32 : i32 to index
    %c0_19 = arith.constant 0 : index
    %c0_20 = arith.constant 0 : index
    %42 = vector.load %arg2[%41, %c0_19, %c0_20] : memref<8x8x128xbf16, #tpu.memory_space<vmem>>, vector<1x8x128xbf16>
    %43 = vector.shape_cast %42 : vector<1x8x128xbf16> to vector<8x128xbf16>
    %44 = arith.extf %43 : vector<8x128xbf16> to vector<8x128xf32>
    %45 = arith.truncf %36 : vector<8x128xf32> to vector<8x128xbf16>
    %cst_21 = arith.constant dense<0.000000e+00> : vector<8x128xf32>
    %46 = tpu.matmul %45, %3, %cst_21 {dimension_numbers = #tpu.dot_dimension_numbers<[1], [0], [0], [1], [0, 0, 1, 1], [], []>} : vector<8x128xbf16>, vector<128x128xbf16>, vector<8x128xf32> -> vector<8x128xf32>
    %47 = arith.addf %44, %46 : vector<8x128xf32>
    %48 = math.tanh %47 : vector<8x128xf32>
    %49 = arith.index_cast %c3_i32 : i32 to index
    %c0_22 = arith.constant 0 : index
    %c0_23 = arith.constant 0 : index
    %50 = vector.load %arg4[%49, %c0_22, %c0_23] : memref<8x8x128xf32, #tpu.memory_space<vmem>>, vector<1x8x128xf32>
    %51 = vector.shape_cast %50 : vector<1x8x128xf32> to vector<8x128xf32>
    %52 = vector.shape_cast %48 : vector<8x128xf32> to vector<1x8x128xf32>
    tpu.vector_store %arg4[%49, %c0_22, %c0_23], %52 {strides = array<i32>} : memref<8x8x128xf32, #tpu.memory_space<vmem>>, vector<1x8x128xf32>,
    %c4_i32 = arith.constant 4 : i32
    %53 = arith.index_cast %c4_i32 : i32 to index
    %c0_24 = arith.constant 0 : index
    %c0_25 = arith.constant 0 : index
    %54 = vector.load %arg2[%53, %c0_24, %c0_25] : memref<8x8x128xbf16, #tpu.memory_space<vmem>>, vector<1x8x128xbf16>
    %55 = vector.shape_cast %54 : vector<1x8x128xbf16> to vector<8x128xbf16>
    %56 = arith.extf %55 : vector<8x128xbf16> to vector<8x128xf32>
    %57 = arith.truncf %48 : vector<8x128xf32> to vector<8x128xbf16>
    %cst_26 = arith.constant dense<0.000000e+00> : vector<8x128xf32>
    %58 = tpu.matmul %57, %3, %cst_26 {dimension_numbers = #tpu.dot_dimension_numbers<[1], [0], [0], [1], [0, 0, 1, 1], [], []>} : vector<8x128xbf16>, vector<128x128xbf16>, vector<8x128xf32> -> vector<8x128xf32>
    %59 = arith.addf %56, %58 : vector<8x128xf32>
    %60 = math.tanh %59 : vector<8x128xf32>
    %61 = arith.index_cast %c4_i32 : i32 to index
    %c0_27 = arith.constant 0 : index
    %c0_28 = arith.constant 0 : index
    %62 = vector.load %arg4[%61, %c0_27, %c0_28] : memref<8x8x128xf32, #tpu.memory_space<vmem>>, vector<1x8x128xf32>
    %63 = vector.shape_cast %62 : vector<1x8x128xf32> to vector<8x128xf32>
    %64 = vector.shape_cast %60 : vector<8x128xf32> to vector<1x8x128xf32>
    tpu.vector_store %arg4[%61, %c0_27, %c0_28], %64 {strides = array<i32>} : memref<8x8x128xf32, #tpu.memory_space<vmem>>, vector<1x8x128xf32>,
    %c5_i32 = arith.constant 5 : i32
    %65 = arith.index_cast %c5_i32 : i32 to index
    %c0_29 = arith.constant 0 : index
    %c0_30 = arith.constant 0 : index
    %66 = vector.load %arg2[%65, %c0_29, %c0_30] : memref<8x8x128xbf16, #tpu.memory_space<vmem>>, vector<1x8x128xbf16>
    %67 = vector.shape_cast %66 : vector<1x8x128xbf16> to vector<8x128xbf16>
    %68 = arith.extf %67 : vector<8x128xbf16> to vector<8x128xf32>
    %69 = arith.truncf %60 : vector<8x128xf32> to vector<8x128xbf16>
    %cst_31 = arith.constant dense<0.000000e+00> : vector<8x128xf32>
    %70 = tpu.matmul %69, %3, %cst_31 {dimension_numbers = #tpu.dot_dimension_numbers<[1], [0], [0], [1], [0, 0, 1, 1], [], []>} : vector<8x128xbf16>, vector<128x128xbf16>, vector<8x128xf32> -> vector<8x128xf32>
    %71 = arith.addf %68, %70 : vector<8x128xf32>
    %72 = math.tanh %71 : vector<8x128xf32>
    %73 = arith.index_cast %c5_i32 : i32 to index
    %c0_32 = arith.constant 0 : index
    %c0_33 = arith.constant 0 : index
    %74 = vector.load %arg4[%73, %c0_32, %c0_33] : memref<8x8x128xf32, #tpu.memory_space<vmem>>, vector<1x8x128xf32>
    %75 = vector.shape_cast %74 : vector<1x8x128xf32> to vector<8x128xf32>
    %76 = vector.shape_cast %72 : vector<8x128xf32> to vector<1x8x128xf32>
    tpu.vector_store %arg4[%73, %c0_32, %c0_33], %76 {strides = array<i32>} : memref<8x8x128xf32, #tpu.memory_space<vmem>>, vector<1x8x128xf32>,
    %c6_i32 = arith.constant 6 : i32
    %77 = arith.index_cast %c6_i32 : i32 to index
    %c0_34 = arith.constant 0 : index
    %c0_35 = arith.constant 0 : index
    %78 = vector.load %arg2[%77, %c0_34, %c0_35] : memref<8x8x128xbf16, #tpu.memory_space<vmem>>, vector<1x8x128xbf16>
    %79 = vector.shape_cast %78 : vector<1x8x128xbf16> to vector<8x128xbf16>
    %80 = arith.extf %79 : vector<8x128xbf16> to vector<8x128xf32>
    %81 = arith.truncf %72 : vector<8x128xf32> to vector<8x128xbf16>
    %cst_36 = arith.constant dense<0.000000e+00> : vector<8x128xf32>
    %82 = tpu.matmul %81, %3, %cst_36 {dimension_numbers = #tpu.dot_dimension_numbers<[1], [0], [0], [1], [0, 0, 1, 1], [], []>} : vector<8x128xbf16>, vector<128x128xbf16>, vector<8x128xf32> -> vector<8x128xf32>
    %83 = arith.addf %80, %82 : vector<8x128xf32>
    %84 = math.tanh %83 : vector<8x128xf32>
    %85 = arith.index_cast %c6_i32 : i32 to index
    %c0_37 = arith.constant 0 : index
    %c0_38 = arith.constant 0 : index
    %86 = vector.load %arg4[%85, %c0_37, %c0_38] : memref<8x8x128xf32, #tpu.memory_space<vmem>>, vector<1x8x128xf32>
    %87 = vector.shape_cast %86 : vector<1x8x128xf32> to vector<8x128xf32>
    %88 = vector.shape_cast %84 : vector<8x128xf32> to vector<1x8x128xf32>
    tpu.vector_store %arg4[%85, %c0_37, %c0_38], %88 {strides = array<i32>} : memref<8x8x128xf32, #tpu.memory_space<vmem>>, vector<1x8x128xf32>,
    %c7_i32 = arith.constant 7 : i32
    %89 = arith.index_cast %c7_i32 : i32 to index
    %c0_39 = arith.constant 0 : index
    %c0_40 = arith.constant 0 : index
    %90 = vector.load %arg2[%89, %c0_39, %c0_40] : memref<8x8x128xbf16, #tpu.memory_space<vmem>>, vector<1x8x128xbf16>
    %91 = vector.shape_cast %90 : vector<1x8x128xbf16> to vector<8x128xbf16>
    %92 = arith.extf %91 : vector<8x128xbf16> to vector<8x128xf32>
    %93 = arith.truncf %84 : vector<8x128xf32> to vector<8x128xbf16>
    %cst_41 = arith.constant dense<0.000000e+00> : vector<8x128xf32>
    %94 = tpu.matmul %93, %3, %cst_41 {dimension_numbers = #tpu.dot_dimension_numbers<[1], [0], [0], [1], [0, 0, 1, 1], [], []>} : vector<8x128xbf16>, vector<128x128xbf16>, vector<8x128xf32> -> vector<8x128xf32>
    %95 = arith.addf %92, %94 : vector<8x128xf32>
    %96 = math.tanh %95 : vector<8x128xf32>
    %97 = arith.index_cast %c7_i32 : i32 to index
    %c0_42 = arith.constant 0 : index
    %c0_43 = arith.constant 0 : index
    %98 = vector.load %arg4[%97, %c0_42, %c0_43] : memref<8x8x128xf32, #tpu.memory_space<vmem>>, vector<1x8x128xf32>
    %99 = vector.shape_cast %98 : vector<1x8x128xf32> to vector<8x128xf32>
    %100 = vector.shape_cast %96 : vector<8x128xf32> to vector<1x8x128xf32>
    tpu.vector_store %arg4[%97, %c0_42, %c0_43], %100 {strides = array<i32>} : memref<8x8x128xf32, #tpu.memory_space<vmem>>, vector<1x8x128xf32>,
    %c8_i32 = arith.constant 8 : i32
    %c0_44 = arith.constant 0 : index
    %c0_45 = arith.constant 0 : index
    %101 = vector.load %arg5[%c0_44, %c0_45] : memref<8x128xf32, #tpu.memory_space<vmem>>, vector<8x128xf32>
    tpu.vector_store %arg5[%c0_44, %c0_45], %96 {strides = array<i32>} : memref<8x128xf32, #tpu.memory_space<vmem>>, vector<8x128xf32>,
    return
  }
  func.func @transform_0(%arg0: i32, %arg1: i32) -> (i32, i32, i32) {
    %c0_i32 = arith.constant 0 : i32
    %c0_i32_0 = arith.constant 0 : i32
    return %arg1, %arg0, %c0_i32 : i32, i32, i32
  }
  func.func @transform_1(%arg0: i32, %arg1: i32) -> (i32, i32) {
    %c0_i32 = arith.constant 0 : i32
    %c0_i32_0 = arith.constant 0 : i32
    %c0_i32_1 = arith.constant 0 : i32
    return %c0_i32, %c0_i32_0 : i32, i32
  }
  func.func @transform_2(%arg0: i32, %arg1: i32) -> (i32, i32, i32) {
    %c0_i32 = arith.constant 0 : i32
    %c0_i32_0 = arith.constant 0 : i32
    return %arg1, %arg0, %c0_i32 : i32, i32, i32
  }
}

</mosaic_0001>

<llo_original>
// kernel: tpu_custom_call.1
$region0: #{tpu_custom_call.1}
  #allocation0 [shape = 'u32[]', space=smem, size = 0x4, offset = 0x4, fixed_abs, tag = 'smem constant byte address 0x4 - core index']
  #allocation1 [shape = 'u32[144,128]{1,0:T(1,128)}', space=vmem, size = 0x12000, scoped, tag = 'internal scratch']
  #allocation2 [shape = 'f32[8,128]{1,0:T(8,128)}', space=vmem, size = 0x1000, scoped, tag = 'scratch operand']
  #allocation3 [shape = 'f32[8,8,128]{2,1,0:T(8,128)}', space=vmem, size = 0x8000, scoped, tag = 'scratch operand']
  %s0 = inlined_call_operand.hbm [shape: f32[8,8,128], index: 0, kind: input, shape index: {}]
  %s1 = inlined_call_operand.hbm [shape: bf16[128,128], index: 1, kind: input, shape index: {}]
  %s2 = inlined_call_operand.hbm [shape: bf16[128,128], index: 2, kind: input, shape index: {}]
  %s3 = inlined_call_operand.vmem [shape: f32[1,128], index: 3, kind: input, shape index: {}]
  %s4 = inlined_call_operand.hbm [shape: f32[8,8,128], index: 4, kind: output, shape index: {}]
  %s5 = sld [smem:[#allocation0]]
  $region42: #{tpu_custom_call.1} parent=0
    _
  %s7 = ssub.s32 1, %s5
  %s8 = scalar_select 0, %s7, %s5
  $region1: #{tpu_custom_call.1} parent=0
    #allocation4 [shape = 'u8[32768]{0}', space=vmem, size = 0x8000, scoped, tag = 'input window, operand 0, single buffered']
    #allocation5 [shape = 's32[1]{0}', space=sflag, size = 0x4, scoped, tag = 'scoped memory for tpu_custom_call.1']
    #allocation6 [shape = 's32[1]{0}', space=sflag, size = 0x4, scoped, tag = 'scoped memory for tpu_custom_call.1']
    #allocation7 [shape = 'u8[32768]{0}', space=vmem, size = 0x8000, scoped, tag = 'input window, operand 1, single buffered']
    #allocation8 [shape = 's32[1]{0}', space=sflag, size = 0x4, scoped, tag = 'scoped memory for tpu_custom_call.1']
    #allocation9 [shape = 'u8[32768]{0}', space=vmem, size = 0x8000, scoped, tag = 'input window, operand 2, single buffered']
    #allocation10 [shape = 'u8[32768]{0}', space=vmem, size = 0x8000, scoped, tag = 'output window, operand 0, single buffered']
    %9 = vsyncpa [#allocation5], 0
    %10 = vsyncpa [#allocation8], 0
    %11 = vsyncpa [#allocation6], 0
    // Predicated region
    $region2: #{tpu_custom_call.1} parent=1 // pred_check
      _
    $region3: #{tpu_custom_call.1} parent=1 // pred_check_branch
      %13 = sbr.rel (0) target = $region5
    $region4: #{tpu_custom_call.1} parent=1 // pred_region
      %s15 = ssub.s32 1024, 1024
      %16 = vsyncadd [#allocation5], %s15
      %s17 = sshll.u32 [#allocation4], 4
      %s18 = int_to_ptr.vmem [resolvable:$true] %s17
      %23 = dma.hbm_to_vmem [thread:$0]  %s0, 1024, %s18, [#allocation5], 128, 128, 8
    $region5: #{tpu_custom_call.1} parent=1 // pred_fallthru
      _
    // Predicated region
    $region6: #{tpu_custom_call.1} parent=1 // pred_check
      _
    $region7: #{tpu_custom_call.1} parent=1 // pred_check_branch
      %25 = sbr.rel (0) target = $region9
    $region8: #{tpu_custom_call.1} parent=1 // pred_region
      %s27 = ssub.s32 1024, 1024
      %28 = vsyncadd [#allocation8], %s27
      %s29 = sshll.u32 [#allocation7], 4
      %s30 = int_to_ptr.vmem [resolvable:$true] %s29
      %35 = dma.hbm_to_vmem [thread:$0]  %s1, 1024, %s30, [#allocation8], 64, 64, 4
    $region9: #{tpu_custom_call.1} parent=1 // pred_fallthru
      _
    // Predicated region
    $region10: #{tpu_custom_call.1} parent=1 // pred_check
      _
    $region11: #{tpu_custom_call.1} parent=1 // pred_check_branch
      %37 = sbr.rel (0) target = $region13
    $region12: #{tpu_custom_call.1} parent=1 // pred_region
      %s39 = ssub.s32 1024, 1024
      %40 = vsyncadd [#allocation8], %s39
      %s41 = sshll.u32 [#allocation9], 4
      %s42 = int_to_ptr.vmem [resolvable:$true] %s41
      %47 = dma.hbm_to_vmem [thread:$0]  %s2, 1024, %s42, [#allocation8], 64, 64, 4
    $region13: #{tpu_custom_call.1} parent=1 // pred_fallthru
      _
    // Predicated region
    $region14: #{tpu_custom_call.1} parent=1 // pred_check
      _
    $region15: #{tpu_custom_call.1} parent=1 // pred_check_branch
      %49 = sbr.rel (0) target = $region17
    $region16: #{tpu_custom_call.1} parent=1 // pred_region
      _
    $region17: #{tpu_custom_call.1} parent=1 // pred_fallthru
      _
    // Predicated region
    $region18: #{tpu_custom_call.1} parent=1 // pred_check
      _
    $region19: #{tpu_custom_call.1} parent=1 // pred_check_branch
      %51 = sbr.rel (0) target = $region21
    $region20: #{tpu_custom_call.1} parent=1 // pred_region
      %52 = dma.done [#allocation5], 1024
    $region21: #{tpu_custom_call.1} parent=1 // pred_fallthru
      _
    // Predicated region
    $region22: #{tpu_custom_call.1} parent=1 // pred_check
      _
    $region23: #{tpu_custom_call.1} parent=1 // pred_check_branch
      %54 = sbr.rel (0) target = $region25
    $region24: #{tpu_custom_call.1} parent=1 // pred_region
      %55 = dma.done [#allocation8], 1024
    $region25: #{tpu_custom_call.1} parent=1 // pred_fallthru
      _
    // Predicated region
    $region26: #{tpu_custom_call.1} parent=1 // pred_check
      _
    $region27: #{tpu_custom_call.1} parent=1 // pred_check_branch
      %57 = sbr.rel (0) target = $region29
    $region28: #{tpu_custom_call.1} parent=1 // pred_region
      %58 = dma.done [#allocation8], 1024
    $region29: #{tpu_custom_call.1} parent=1 // pred_fallthru
      _
    %p60 = scmp.eq.s32.totalorder 0, 0
    // Predicated region
    $region30: #{tpu_custom_call.1} parent=1 // pred_check
      %p61 = pneg %p60
    $region31: #{tpu_custom_call.1} parent=1 // pred_check_branch
      %63 = sbr.rel (%p61) target = $region33
    $region32: #{tpu_custom_call.1} parent=1 // pred_region
      %64 = vst [vmem:[#allocation2] sm:$0xff] 0.0
    $region33: #{tpu_custom_call.1} parent=1 // pred_fallthru
      _
    %v65 = vld [vmem:[#allocation4] sm:$0xff]
    %v66 = vld [vmem:[#allocation4 + $0x8] sm:$0xff]
    %v67 = vld [vmem:[#allocation4 + $0x10] sm:$0xff]
    %v68 = vld [vmem:[#allocation4 + $0x18] sm:$0xff]
    %v69 = vld [vmem:[#allocation4 + $0x20] sm:$0xff]
    %v70 = vld [vmem:[#allocation4 + $0x28] sm:$0xff]
    %v71 = vld [vmem:[#allocation4 + $0x30] sm:$0xff]
    %v72 = vld [vmem:[#allocation4 + $0x38] sm:$0xff]
    %v73 = vpack.c.bf16 %v66, %v65
    %v74 = vpack.c.bf16 %v68, %v67
    %v75 = vpack.c.bf16 %v70, %v69
    %v76 = vpack.c.bf16 %v72, %v71
    %v77 = vld [vmem:[#allocation7] sm:$0xf]
    %v78 = vld [vmem:[#allocation7 + $0x4] sm:$0xf]
    %v79 = vld [vmem:[#allocation7 + $0x8] sm:$0xf]
    %v80 = vld [vmem:[#allocation7 + $0xc] sm:$0xf]
    %v81 = vld [vmem:[#allocation7 + $0x10] sm:$0xf]
    %v82 = vld [vmem:[#allocation7 + $0x14] sm:$0xf]
    %v83 = vld [vmem:[#allocation7 + $0x18] sm:$0xf]
    %v84 = vld [vmem:[#allocation7 + $0x1c] sm:$0xf]
    %v85 = vld [vmem:[#allocation7 + $0x20] sm:$0xf]
    %v86 = vld [vmem:[#allocation7 + $0x24] sm:$0xf]
    %v87 = vld [vmem:[#allocation7 + $0x28] sm:$0xf]
    %v88 = vld [vmem:[#allocation7 + $0x2c] sm:$0xf]
    %v89 = vld [vmem:[#allocation7 + $0x30] sm:$0xf]
    %v90 = vld [vmem:[#allocation7 + $0x34] sm:$0xf]
    %v91 = vld [vmem:[#allocation7 + $0x38] sm:$0xf]
    %v92 = vld [vmem:[#allocation7 + $0x3c] sm:$0xf]
    %v109 = vunpack.c.l.b16 %v77
    %v110 = vunpack.c.l.b16 %v78
    %v111 = vunpack.c.l.b16 %v79
    %v112 = vunpack.c.l.b16 %v80
    %v113 = vunpack.c.l.b16 %v81
    %v114 = vunpack.c.l.b16 %v82
    %v115 = vunpack.c.l.b16 %v83
    %v116 = vunpack.c.l.b16 %v84
    %v117 = vunpack.c.l.b16 %v85
    %v118 = vunpack.c.l.b16 %v86
    %v119 = vunpack.c.l.b16 %v87
    %v120 = vunpack.c.l.b16 %v88
    %v121 = vunpack.c.l.b16 %v89
    %v122 = vunpack.c.l.b16 %v90
    %v123 = vunpack.c.l.b16 %v91
    %v124 = vunpack.c.l.b16 %v92
    %v125 = vpack.c.b16 %v110, %v109
    %v126 = vpack.c.b16 %v112, %v111
    %v127 = vpack.c.b16 %v114, %v113
    %v128 = vpack.c.b16 %v116, %v115
    %v129 = vpack.c.b16 %v118, %v117
    %v130 = vpack.c.b16 %v120, %v119
    %v131 = vpack.c.b16 %v122, %v121
    %v132 = vpack.c.b16 %v124, %v123
    %141 = vmatprep.subr.bf16.mxu0 0
    %142 = vmatpush1.bf16.msra.mxu0 %v132
    %143 = vmatprep.subr.bf16.mxu0 0
    %144 = vmatpush1.bf16.msra.mxu0 %v131
    %145 = vmatprep.subr.bf16.mxu0 0
    %146 = vmatpush1.bf16.msra.mxu0 %v130
    %147 = vmatprep.subr.bf16.mxu0 0
    %148 = vmatpush1.bf16.msra.mxu0 %v129
    %149 = vmatprep.subr.bf16.mxu0 0
    %150 = vmatpush1.bf16.msra.mxu0 %v128
    %151 = vmatprep.subr.bf16.mxu0 0
    %152 = vmatpush1.bf16.msra.mxu0 %v127
    %153 = vmatprep.subr.bf16.mxu0 0
    %154 = vmatpush1.bf16.msra.mxu0 %v126
    %155 = vmatprep.subr.bf16.mxu0 0
    %156 = vmatpush1.bf16.msra.mxu0 %v125
    %157 = vmatprep.subr.bf16.mxu0 0
    %158 = vmatpush2.bf16.msra.mxu0 0
    %159 = vmatprep.subr.bf16.mxu0 0
    %160 = vmatpush2.bf16.msra.mxu0 0
    %161 = vmatprep.subr.bf16.mxu0 0
    %162 = vmatpush2.bf16.msra.mxu0 0
    %163 = vmatprep.subr.bf16.mxu0 0
    %164 = vmatpush2.bf16.msra.mxu0 0
    %165 = vmatprep.subr.bf16.mxu0 0
    %166 = vmatpush2.bf16.msra.mxu0 0
    %167 = vmatprep.subr.bf16.mxu0 0
    %168 = vmatpush2.bf16.msra.mxu0 0
    %169 = vmatprep.subr.bf16.mxu0 0
    %170 = vmatpush2.bf16.msra.mxu0 0
    %171 = vmatprep.subr.bf16.mxu0 0
    %172 = vmatpush2.bf16.msra.mxu0 0
    %173 = vmatprep.mubr.bf16.mxu0 0
    %174 = vmatmul.mubr.bf16.gmra.mxu0 %v73
    %v175 = vpop.f32.mrf.mxu0
    %v176 = vadd.f32 0.0, %v175
    %v177 = vpop.f32.mrf.mxu0
    %v178 = vpop.f32.mrf.mxu0
    %v179 = vadd.f32 0.0, %v178
    %v180 = vpop.f32.mrf.mxu0
    %181 = vmatprep.mubr.bf16.mxu0 0
    %182 = vmatmul.mubr.bf16.gmra.mxu0 %v74
    %v183 = vpop.f32.mrf.mxu0
    %v184 = vadd.f32 0.0, %v183
    %v185 = vpop.f32.mrf.mxu0
    %v186 = vpop.f32.mrf.mxu0
    %v187 = vadd.f32 0.0, %v186
    %v188 = vpop.f32.mrf.mxu0
    %189 = vmatprep.mubr.bf16.mxu0 0
    %190 = vmatmul.mubr.bf16.gmra.mxu0 %v75
    %v191 = vpop.f32.mrf.mxu0
    %v192 = vadd.f32 0.0, %v191
    %v193 = vpop.f32.mrf.mxu0
    %v194 = vpop.f32.mrf.mxu0
    %v195 = vadd.f32 0.0, %v194
    %v196 = vpop.f32.mrf.mxu0
    %197 = vmatprep.mubr.bf16.mxu0 0
    %198 = vmatmul.mubr.bf16.gmra.mxu0 %v76
    %v199 = vpop.f32.mrf.mxu0
    %v200 = vadd.f32 0.0, %v199
    %v201 = vpop.f32.mrf.mxu0
    %v202 = vpop.f32.mrf.mxu0
    %v203 = vadd.f32 0.0, %v202
    %v204 = vpop.f32.mrf.mxu0
    %205 = vdwg.mxu0
    %v206 = vcombine.low %v176, %v184
    %v207 = vcombine.high %v176, %v184
    %v209 = vunpack.c.l.s4 1983009808
    %v210 = vunpack.c.0.s8 %v209
    %v211 = vlaneseq
    %v212 = vshrl.u32 %v211, 7
    %v213 = vsub.s32 %v210, %v212
    %v214 = vrot.slane %v206, %v213
    %v216 = vunpack.c.l.s4 1983009808
    %v217 = vunpack.c.0.s8 %v216
    %v218 = vlaneseq
    %v219 = vshrl.u32 %v218, 7
    %v220 = vsub.s32 %v217, %v219
    %v221 = vrot.slane %v207, %v220
    %v222 = vcombine.low %v179, %v187
    %v223 = vcombine.high %v179, %v187
    %v225 = vunpack.c.l.s4 1983009808
    %v226 = vunpack.c.0.s8 %v225
    %v227 = vlaneseq
    %v228 = vshrl.u32 %v227, 7
    %v229 = vsub.s32 %v226, %v228
    %v230 = vrot.slane %v222, %v229
    %v232 = vunpack.c.l.s4 1983009808
    %v233 = vunpack.c.0.s8 %v232
    %v234 = vlaneseq
    %v235 = vshrl.u32 %v234, 7
    %v236 = vsub.s32 %v233, %v235
    %v237 = vrot.slane %v223, %v236
    %v238 = vcombine.low %v192, %v200
    %v239 = vcombine.high %v192, %v200
    %v241 = vunpack.c.l.s4 1983009808
    %v242 = vunpack.c.0.s8 %v241
    %v243 = vlaneseq
    %v244 = vshrl.u32 %v243, 7
    %v245 = vsub.s32 %v242, %v244
    %v246 = vrot.slane %v238, %v245
    %v248 = vunpack.c.l.s4 1983009808
    %v249 = vunpack.c.0.s8 %v248
    %v250 = vlaneseq
    %v251 = vshrl.u32 %v250, 7
    %v252 = vsub.s32 %v249, %v251
    %v253 = vrot.slane %v239, %v252
    %v254 = vcombine.low %v195, %v203
    %v255 = vcombine.high %v195, %v203
    %v257 = vunpack.c.l.s4 1983009808
    %v258 = vunpack.c.0.s8 %v257
    %v259 = vlaneseq
    %v260 = vshrl.u32 %v259, 7
    %v261 = vsub.s32 %v258, %v260
    %v262 = vrot.slane %v254, %v261
    %v264 = vunpack.c.l.s4 1983009808
    %v265 = vunpack.c.0.s8 %v264
    %v266 = vlaneseq
    %v267 = vshrl.u32 %v266, 7
    %v268 = vsub.s32 %v265, %v267
    %v269 = vrot.slane %v255, %v268
    %v270 = vcombine.low %v214, %v230
    %v271 = vcombine.high %v214, %v230
    %v273 = vunpack.c.l.s4 1934713408
    %v274 = vunpack.c.0.s8 %v273
    %v275 = vlaneseq
    %v276 = vshrl.u32 %v275, 7
    %v277 = vsub.s32 %v274, %v276
    %v278 = vrot.slane %v270, %v277
    %v280 = vunpack.c.l.s4 1934713408
    %v281 = vunpack.c.0.s8 %v280
    %v282 = vlaneseq
    %v283 = vshrl.u32 %v282, 7
    %v284 = vsub.s32 %v281, %v283
    %v285 = vrot.slane %v271, %v284
    %v286 = vcombine.low %v221, %v237
    %v287 = vcombine.high %v221, %v237
    %v289 = vunpack.c.l.s4 1934713408
    %v290 = vunpack.c.0.s8 %v289
    %v291 = vlaneseq
    %v292 = vshrl.u32 %v291, 7
    %v293 = vsub.s32 %v290, %v292
    %v294 = vrot.slane %v286, %v293
    %v296 = vunpack.c.l.s4 1934713408
    %v297 = vunpack.c.0.s8 %v296
    %v298 = vlaneseq
    %v299 = vshrl.u32 %v298, 7
    %v300 = vsub.s32 %v297, %v299
    %v301 = vrot.slane %v287, %v300
    %v302 = vcombine.low %v246, %v262
    %v303 = vcombine.high %v246, %v262
    %v305 = vunpack.c.l.s4 1934713408
    %v306 = vunpack.c.0.s8 %v305
    %v307 = vlaneseq
    %v308 = vshrl.u32 %v307, 7
    %v309 = vsub.s32 %v306, %v308
    %v310 = vrot.slane %v302, %v309
    %v312 = vunpack.c.l.s4 1934713408
    %v313 = vunpack.c.0.s8 %v312
    %v314 = vlaneseq
    %v315 = vshrl.u32 %v314, 7
    %v316 = vsub.s32 %v313, %v315
    %v317 = vrot.slane %v303, %v316
    %v318 = vcombine.low %v253, %v269
    %v319 = vcombine.high %v253, %v269
    %v321 = vunpack.c.l.s4 1934713408
    %v322 = vunpack.c.0.s8 %v321
    %v323 = vlaneseq
    %v324 = vshrl.u32 %v323, 7
    %v325 = vsub.s32 %v322, %v324
    %v326 = vrot.slane %v318, %v325
    %v328 = vunpack.c.l.s4 1934713408
    %v329 = vunpack.c.0.s8 %v328
    %v330 = vlaneseq
    %v331 = vshrl.u32 %v330, 7
    %v332 = vsub.s32 %v329, %v331
    %v333 = vrot.slane %v319, %v332
    %v334 = vcombine.low %v278, %v310
    %v335 = vcombine.high %v278, %v310
    %v336 = vcombine.low %v285, %v317
    %v337 = vcombine.high %v285, %v317
    %v338 = vcombine.low %v294, %v326
    %v339 = vcombine.high %v294, %v326
    %v340 = vcombine.low %v301, %v333
    %v341 = vcombine.high %v301, %v333
    %v342 = vld [vmem:[%s3] sm:$0x1]
    %v344 = vlaneseq
    %v345 = vshrl.u32 %v344, 7
    %v346 = vsub.s32 0, %v345
    %v347 = vrot.slane %v342, %v346
    %v349 = vadd.f32 %v334, %v347
    %v350 = vadd.f32 %v335, %v347
    %v351 = vadd.f32 %v336, %v347
    %v352 = vadd.f32 %v337, %v347
    %v353 = vadd.f32 %v338, %v347
    %v354 = vadd.f32 %v339, %v347
    %v355 = vadd.f32 %v340, %v347
    %v356 = vadd.f32 %v341, %v347
    %357 = vst [vmem:[#allocation3] sm:$0xff] %v349
    %358 = vst [vmem:[#allocation3 + $0x8] sm:$0xff] %v350
    %359 = vst [vmem:[#allocation3 + $0x10] sm:$0xff] %v351
    %360 = vst [vmem:[#allocation3 + $0x18] sm:$0xff] %v352
    %361 = vst [vmem:[#allocation3 + $0x20] sm:$0xff] %v353
    %362 = vst [vmem:[#allocation3 + $0x28] sm:$0xff] %v354
    %363 = vst [vmem:[#allocation3 + $0x30] sm:$0xff] %v355
    %364 = vst [vmem:[#allocation3 + $0x38] sm:$0xff] %v356
    %v365 = vld [vmem:[#allocation9] sm:$0xf]
    %v366 = vld [vmem:[#allocation9 + $0x4] sm:$0xf]
    %v367 = vld [vmem:[#allocation9 + $0x8] sm:$0xf]
    %v368 = vld [vmem:[#allocation9 + $0xc] sm:$0xf]
    %v369 = vld [vmem:[#allocation9 + $0x10] sm:$0xf]
    %v370 = vld [vmem:[#allocation9 + $0x14] sm:$0xf]
    %v371 = vld [vmem:[#allocation9 + $0x18] sm:$0xf]
    %v372 = vld [vmem:[#allocation9 + $0x1c] sm:$0xf]
    %v373 = vld [vmem:[#allocation9 + $0x20] sm:$0xf]
    %v374 = vld [vmem:[#allocation9 + $0x24] sm:$0xf]
    %v375 = vld [vmem:[#allocation9 + $0x28] sm:$0xf]
    %v376 = vld [vmem:[#allocation9 + $0x2c] sm:$0xf]
    %v377 = vld [vmem:[#allocation9 + $0x30] sm:$0xf]
    %v378 = vld [vmem:[#allocation9 + $0x34] sm:$0xf]
    %v379 = vld [vmem:[#allocation9 + $0x38] sm:$0xf]
    %v380 = vld [vmem:[#allocation9 + $0x3c] sm:$0xf]
    %v381 = vld [vmem:[#allocation2] sm:$0xff]
    %v382 = vld [vmem:[#allocation3] sm:$0xff]
    %v383 = vpack.c.bf16 %v381, %v381
    %v400 = vunpack.c.l.b16 %v365
    %v401 = vunpack.c.l.b16 %v366
    %v402 = vunpack.c.l.b16 %v367
    %v403 = vunpack.c.l.b16 %v368
    %v404 = vunpack.c.l.b16 %v369
    %v405 = vunpack.c.l.b16 %v370
    %v406 = vunpack.c.l.b16 %v371
    %v407 = vunpack.c.l.b16 %v372
    %v408 = vunpack.c.l.b16 %v373
    %v409 = vunpack.c.l.b16 %v374
    %v410 = vunpack.c.l.b16 %v375
    %v411 = vunpack.c.l.b16 %v376
    %v412 = vunpack.c.l.b16 %v377
    %v413 = vunpack.c.l.b16 %v378
    %v414 = vunpack.c.l.b16 %v379
    %v415 = vunpack.c.l.b16 %v380
    %v416 = vpack.c.b16 %v401, %v400
    %v417 = vpack.c.b16 %v403, %v402
    %v418 = vpack.c.b16 %v405, %v404
    %v419 = vpack.c.b16 %v407, %v406
    %v420 = vpack.c.b16 %v409, %v408
    %v421 = vpack.c.b16 %v411, %v410
    %v422 = vpack.c.b16 %v413, %v412
    %v423 = vpack.c.b16 %v415, %v414
    %432 = vmatprep.subr.bf16.mxu0 0
    %433 = vmatpush1.bf16.msra.mxu0 %v423
    %434 = vmatprep.subr.bf16.mxu0 0
    %435 = vmatpush1.bf16.msra.mxu0 %v422
    %436 = vmatprep.subr.bf16.mxu0 0
    %437 = vmatpush1.bf16.msra.mxu0 %v421
    %438 = vmatprep.subr.bf16.mxu0 0
    %439 = vmatpush1.bf16.msra.mxu0 %v420
    %440 = vmatprep.subr.bf16.mxu0 0
    %441 = vmatpush1.bf16.msra.mxu0 %v419
    %442 = vmatprep.subr.bf16.mxu0 0
    %443 = vmatpush1.bf16.msra.mxu0 %v418
    %444 = vmatprep.subr.bf16.mxu0 0
    %445 = vmatpush1.bf16.msra.mxu0 %v417
    %446 = vmatprep.subr.bf16.mxu0 0
    %447 = vmatpush1.bf16.msra.mxu0 %v416
    %448 = vmatprep.subr.bf16.mxu0 0
    %449 = vmatpush2.bf16.msra.mxu0 0
    %450 = vmatprep.subr.bf16.mxu0 0
    %451 = vmatpush2.bf16.msra.mxu0 0
    %452 = vmatprep.subr.bf16.mxu0 0
    %453 = vmatpush2.bf16.msra.mxu0 0
    %454 = vmatprep.subr.bf16.mxu0 0
    %455 = vmatpush2.bf16.msra.mxu0 0
    %456 = vmatprep.subr.bf16.mxu0 0
    %457 = vmatpush2.bf16.msra.mxu0 0
    %458 = vmatprep.subr.bf16.mxu0 0
    %459 = vmatpush2.bf16.msra.mxu0 0
    %460 = vmatprep.subr.bf16.mxu0 0
    %461 = vmatpush2.bf16.msra.mxu0 0
    %462 = vmatprep.subr.bf16.mxu0 0
    %463 = vmatpush2.bf16.msra.mxu0 0
    %464 = vmatprep.mubr.bf16.mxu0 0
    %465 = vmatmul.mubr.bf16.gmra.mxu0 %v383
    %v466 = vpop.f32.mrf.mxu0
    %v467 = vadd.f32 0.0, %v466
    %v468 = vpop.f32.mrf.mxu0
    %v469 = vpop.f32.mrf.mxu0
    %v470 = vpop.f32.mrf.mxu0
    %471 = vdwg.mxu0
    %v472 = vadd.f32 %v382, %v467
    %v473 = vtanh.pop %v472
    %474 = vst [vmem:[#allocation3] sm:$0xff] %v473
    %s475 = scalar_lea.vmem [#allocation3], 8
    %v476 = vld [vmem:[%s475] sm:$0xff]
    %v477 = vpack.c.bf16 %v473, %v473
    %478 = vmatprep.subr.bf16.mxu0 0
    %479 = vmatpush1.bf16.msra.mxu0 %v423
    %480 = vmatprep.subr.bf16.mxu0 0
    %481 = vmatpush1.bf16.msra.mxu0 %v422
    %482 = vmatprep.subr.bf16.mxu0 0
    %483 = vmatpush1.bf16.msra.mxu0 %v421
    %484 = vmatprep.subr.bf16.mxu0 0
    %485 = vmatpush1.bf16.msra.mxu0 %v420
    %486 = vmatprep.subr.bf16.mxu0 0
    %487 = vmatpush1.bf16.msra.mxu0 %v419
    %488 = vmatprep.subr.bf16.mxu0 0
    %489 = vmatpush1.bf16.msra.mxu0 %v418
    %490 = vmatprep.subr.bf16.mxu0 0
    %491 = vmatpush1.bf16.msra.mxu0 %v417
    %492 = vmatprep.subr.bf16.mxu0 0
    %493 = vmatpush1.bf16.msra.mxu0 %v416
    %494 = vmatprep.subr.bf16.mxu0 0
    %495 = vmatpush2.bf16.msra.mxu0 0
    %496 = vmatprep.subr.bf16.mxu0 0
    %497 = vmatpush2.bf16.msra.mxu0 0
    %498 = vmatprep.subr.bf16.mxu0 0
    %499 = vmatpush2.bf16.msra.mxu0 0
    %500 = vmatprep.subr.bf16.mxu0 0
    %501 = vmatpush2.bf16.msra.mxu0 0
    %502 = vmatprep.subr.bf16.mxu0 0
    %503 = vmatpush2.bf16.msra.mxu0 0
    %504 = vmatprep.subr.bf16.mxu0 0
    %505 = vmatpush2.bf16.msra.mxu0 0
    %506 = vmatprep.subr.bf16.mxu0 0
    %507 = vmatpush2.bf16.msra.mxu0 0
    %508 = vmatprep.subr.bf16.mxu0 0
    %509 = vmatpush2.bf16.msra.mxu0 0
    %510 = vmatprep.mubr.bf16.mxu0 0
    %511 = vmatmul.mubr.bf16.gmra.mxu0 %v477
    %v512 = vpop.f32.mrf.mxu0
    %v513 = vadd.f32 0.0, %v512
    %v514 = vpop.f32.mrf.mxu0
    %v515 = vpop.f32.mrf.mxu0
    %v516 = vpop.f32.mrf.mxu0
    %517 = vdwg.mxu0
    %v518 = vadd.f32 %v476, %v513
    %v519 = vtanh.pop %v518
    %520 = vst [vmem:[%s475] sm:$0xff] %v519
    %s521 = scalar_lea.vmem [#allocation3], 16
    %v522 = vld [vmem:[%s521] sm:$0xff]
    %v523 = vpack.c.bf16 %v519, %v519
    %524 = vmatprep.subr.bf16.mxu0 0
    %525 = vmatpush1.bf16.msra.mxu0 %v423
    %526 = vmatprep.subr.bf16.mxu0 0
    %527 = vmatpush1.bf16.msra.mxu0 %v422
    %528 = vmatprep.subr.bf16.mxu0 0
    %529 = vmatpush1.bf16.msra.mxu0 %v421
    %530 = vmatprep.subr.bf16.mxu0 0
    %531 = vmatpush1.bf16.msra.mxu0 %v420
    %532 = vmatprep.subr.bf16.mxu0 0
    %533 = vmatpush1.bf16.msra.mxu0 %v419
    %534 = vmatprep.subr.bf16.mxu0 0
    %535 = vmatpush1.bf16.msra.mxu0 %v418
    %536 = vmatprep.subr.bf16.mxu0 0
    %537 = vmatpush1.bf16.msra.mxu0 %v417
    %538 = vmatprep.subr.bf16.mxu0 0
    %539 = vmatpush1.bf16.msra.mxu0 %v416
    %540 = vmatprep.subr.bf16.mxu0 0
    %541 = vmatpush2.bf16.msra.mxu0 0
    %542 = vmatprep.subr.bf16.mxu0 0
    %543 = vmatpush2.bf16.msra.mxu0 0
    %544 = vmatprep.subr.bf16.mxu0 0
    %545 = vmatpush2.bf16.msra.mxu0 0
    %546 = vmatprep.subr.bf16.mxu0 0
    %547 = vmatpush2.bf16.msra.mxu0 0
    %548 = vmatprep.subr.bf16.mxu0 0
    %549 = vmatpush2.bf16.msra.mxu0 0
    %550 = vmatprep.subr.bf16.mxu0 0
    %551 = vmatpush2.bf16.msra.mxu0 0
    %552 = vmatprep.subr.bf16.mxu0 0
    %553 = vmatpush2.bf16.msra.mxu0 0
    %554 = vmatprep.subr.bf16.mxu0 0
    %555 = vmatpush2.bf16.msra.mxu0 0
    %556 = vmatprep.mubr.bf16.mxu0 0
    %557 = vmatmul.mubr.bf16.gmra.mxu0 %v523
    %v558 = vpop.f32.mrf.mxu0
    %v559 = vadd.f32 0.0, %v558
    %v560 = vpop.f32.mrf.mxu0
    %v561 = vpop.f32.mrf.mxu0
    %v562 = vpop.f32.mrf.mxu0
    %563 = vdwg.mxu0
    %v564 = vadd.f32 %v522, %v559
    %v565 = vtanh.pop %v564
    %566 = vst [vmem:[%s521] sm:$0xff] %v565
    %s567 = scalar_lea.vmem [#allocation3], 24
    %v568 = vld [vmem:[%s567] sm:$0xff]
    %v569 = vpack.c.bf16 %v565, %v565
    %570 = vmatprep.subr.bf16.mxu0 0
    %571 = vmatpush1.bf16.msra.mxu0 %v423
    %572 = vmatprep.subr.bf16.mxu0 0
    %573 = vmatpush1.bf16.msra.mxu0 %v422
    %574 = vmatprep.subr.bf16.mxu0 0
    %575 = vmatpush1.bf16.msra.mxu0 %v421
    %576 = vmatprep.subr.bf16.mxu0 0
    %577 = vmatpush1.bf16.msra.mxu0 %v420
    %578 = vmatprep.subr.bf16.mxu0 0
    %579 = vmatpush1.bf16.msra.mxu0 %v419
    %580 = vmatprep.subr.bf16.mxu0 0
    %581 = vmatpush1.bf16.msra.mxu0 %v418
    %582 = vmatprep.subr.bf16.mxu0 0
    %583 = vmatpush1.bf16.msra.mxu0 %v417
    %584 = vmatprep.subr.bf16.mxu0 0
    %585 = vmatpush1.bf16.msra.mxu0 %v416
    %586 = vmatprep.subr.bf16.mxu0 0
    %587 = vmatpush2.bf16.msra.mxu0 0
    %588 = vmatprep.subr.bf16.mxu0 0
    %589 = vmatpush2.bf16.msra.mxu0 0
    %590 = vmatprep.subr.bf16.mxu0 0
    %591 = vmatpush2.bf16.msra.mxu0 0
    %592 = vmatprep.subr.bf16.mxu0 0
    %593 = vmatpush2.bf16.msra.mxu0 0
    %594 = vmatprep.subr.bf16.mxu0 0
    %595 = vmatpush2.bf16.msra.mxu0 0
    %596 = vmatprep.subr.bf16.mxu0 0
    %597 = vmatpush2.bf16.msra.mxu0 0
    %598 = vmatprep.subr.bf16.mxu0 0
    %599 = vmatpush2.bf16.msra.mxu0 0
    %600 = vmatprep.subr.bf16.mxu0 0
    %601 = vmatpush2.bf16.msra.mxu0 0
    %602 = vmatprep.mubr.bf16.mxu0 0
    %603 = vmatmul.mubr.bf16.gmra.mxu0 %v569
    %v604 = vpop.f32.mrf.mxu0
    %v605 = vadd.f32 0.0, %v604
    %v606 = vpop.f32.mrf.mxu0
    %v607 = vpop.f32.mrf.mxu0
    %v608 = vpop.f32.mrf.mxu0
    %609 = vdwg.mxu0
    %v610 = vadd.f32 %v568, %v605
    %v611 = vtanh.pop %v610
    %612 = vst [vmem:[%s567] sm:$0xff] %v611
    %s613 = scalar_lea.vmem [#allocation3], 32
    %v614 = vld [vmem:[%s613] sm:$0xff]
    %v615 = vpack.c.bf16 %v611, %v611
    %616 = vmatprep.subr.bf16.mxu0 0
    %617 = vmatpush1.bf16.msra.mxu0 %v423
    %618 = vmatprep.subr.bf16.mxu0 0
    %619 = vmatpush1.bf16.msra.mxu0 %v422
    %620 = vmatprep.subr.bf16.mxu0 0
    %621 = vmatpush1.bf16.msra.mxu0 %v421
    %622 = vmatprep.subr.bf16.mxu0 0
    %623 = vmatpush1.bf16.msra.mxu0 %v420
    %624 = vmatprep.subr.bf16.mxu0 0
    %625 = vmatpush1.bf16.msra.mxu0 %v419
    %626 = vmatprep.subr.bf16.mxu0 0
    %627 = vmatpush1.bf16.msra.mxu0 %v418
    %628 = vmatprep.subr.bf16.mxu0 0
    %629 = vmatpush1.bf16.msra.mxu0 %v417
    %630 = vmatprep.subr.bf16.mxu0 0
    %631 = vmatpush1.bf16.msra.mxu0 %v416
    %632 = vmatprep.subr.bf16.mxu0 0
    %633 = vmatpush2.bf16.msra.mxu0 0
    %634 = vmatprep.subr.bf16.mxu0 0
    %635 = vmatpush2.bf16.msra.mxu0 0
    %636 = vmatprep.subr.bf16.mxu0 0
    %637 = vmatpush2.bf16.msra.mxu0 0
    %638 = vmatprep.subr.bf16.mxu0 0
    %639 = vmatpush2.bf16.msra.mxu0 0
    %640 = vmatprep.subr.bf16.mxu0 0
    %641 = vmatpush2.bf16.msra.mxu0 0
    %642 = vmatprep.subr.bf16.mxu0 0
    %643 = vmatpush2.bf16.msra.mxu0 0
    %644 = vmatprep.subr.bf16.mxu0 0
    %645 = vmatpush2.bf16.msra.mxu0 0
    %646 = vmatprep.subr.bf16.mxu0 0
    %647 = vmatpush2.bf16.msra.mxu0 0
    %648 = vmatprep.mubr.bf16.mxu0 0
    %649 = vmatmul.mubr.bf16.gmra.mxu0 %v615
    %v650 = vpop.f32.mrf.mxu0
    %v651 = vadd.f32 0.0, %v650
    %v652 = vpop.f32.mrf.mxu0
    %v653 = vpop.f32.mrf.mxu0
    %v654 = vpop.f32.mrf.mxu0
    %655 = vdwg.mxu0
    %v656 = vadd.f32 %v614, %v651
    %v657 = vtanh.pop %v656
    %658 = vst [vmem:[%s613] sm:$0xff] %v657
    %s659 = scalar_lea.vmem [#allocation3], 40
    %v660 = vld [vmem:[%s659] sm:$0xff]
    %v661 = vpack.c.bf16 %v657, %v657
    %662 = vmatprep.subr.bf16.mxu0 0
    %663 = vmatpush1.bf16.msra.mxu0 %v423
    %664 = vmatprep.subr.bf16.mxu0 0
    %665 = vmatpush1.bf16.msra.mxu0 %v422
    %666 = vmatprep.subr.bf16.mxu0 0
    %667 = vmatpush1.bf16.msra.mxu0 %v421
    %668 = vmatprep.subr.bf16.mxu0 0
    %669 = vmatpush1.bf16.msra.mxu0 %v420
    %670 = vmatprep.subr.bf16.mxu0 0
    %671 = vmatpush1.bf16.msra.mxu0 %v419
    %672 = vmatprep.subr.bf16.mxu0 0
    %673 = vmatpush1.bf16.msra.mxu0 %v418
    %674 = vmatprep.subr.bf16.mxu0 0
    %675 = vmatpush1.bf16.msra.mxu0 %v417
    %676 = vmatprep.subr.bf16.mxu0 0
    %677 = vmatpush1.bf16.msra.mxu0 %v416
    %678 = vmatprep.subr.bf16.mxu0 0
    %679 = vmatpush2.bf16.msra.mxu0 0
    %680 = vmatprep.subr.bf16.mxu0 0
    %681 = vmatpush2.bf16.msra.mxu0 0
    %682 = vmatprep.subr.bf16.mxu0 0
    %683 = vmatpush2.bf16.msra.mxu0 0
    %684 = vmatprep.subr.bf16.mxu0 0
    %685 = vmatpush2.bf16.msra.mxu0 0
    %686 = vmatprep.subr.bf16.mxu0 0
    %687 = vmatpush2.bf16.msra.mxu0 0
    %688 = vmatprep.subr.bf16.mxu0 0
    %689 = vmatpush2.bf16.msra.mxu0 0
    %690 = vmatprep.subr.bf16.mxu0 0
    %691 = vmatpush2.bf16.msra.mxu0 0
    %692 = vmatprep.subr.bf16.mxu0 0
    %693 = vmatpush2.bf16.msra.mxu0 0
    %694 = vmatprep.mubr.bf16.mxu0 0
    %695 = vmatmul.mubr.bf16.gmra.mxu0 %v661
    %v696 = vpop.f32.mrf.mxu0
    %v697 = vadd.f32 0.0, %v696
    %v698 = vpop.f32.mrf.mxu0
    %v699 = vpop.f32.mrf.mxu0
    %v700 = vpop.f32.mrf.mxu0
    %701 = vdwg.mxu0
    %v702 = vadd.f32 %v660, %v697
    %v703 = vtanh.pop %v702
    %704 = vst [vmem:[%s659] sm:$0xff] %v703
    %s705 = scalar_lea.vmem [#allocation3], 48
    %v706 = vld [vmem:[%s705] sm:$0xff]
    %v707 = vpack.c.bf16 %v703, %v703
    %708 = vmatprep.subr.bf16.mxu0 0
    %709 = vmatpush1.bf16.msra.mxu0 %v423
    %710 = vmatprep.subr.bf16.mxu0 0
    %711 = vmatpush1.bf16.msra.mxu0 %v422
    %712 = vmatprep.subr.bf16.mxu0 0
    %713 = vmatpush1.bf16.msra.mxu0 %v421
    %714 = vmatprep.subr.bf16.mxu0 0
    %715 = vmatpush1.bf16.msra.mxu0 %v420
    %716 = vmatprep.subr.bf16.mxu0 0
    %717 = vmatpush1.bf16.msra.mxu0 %v419
    %718 = vmatprep.subr.bf16.mxu0 0
    %719 = vmatpush1.bf16.msra.mxu0 %v418
    %720 = vmatprep.subr.bf16.mxu0 0
    %721 = vmatpush1.bf16.msra.mxu0 %v417
    %722 = vmatprep.subr.bf16.mxu0 0
    %723 = vmatpush1.bf16.msra.mxu0 %v416
    %724 = vmatprep.subr.bf16.mxu0 0
    %725 = vmatpush2.bf16.msra.mxu0 0
    %726 = vmatprep.subr.bf16.mxu0 0
    %727 = vmatpush2.bf16.msra.mxu0 0
    %728 = vmatprep.subr.bf16.mxu0 0
    %729 = vmatpush2.bf16.msra.mxu0 0
    %730 = vmatprep.subr.bf16.mxu0 0
    %731 = vmatpush2.bf16.msra.mxu0 0
    %732 = vmatprep.subr.bf16.mxu0 0
    %733 = vmatpush2.bf16.msra.mxu0 0
    %734 = vmatprep.subr.bf16.mxu0 0
    %735 = vmatpush2.bf16.msra.mxu0 0
    %736 = vmatprep.subr.bf16.mxu0 0
    %737 = vmatpush2.bf16.msra.mxu0 0
    %738 = vmatprep.subr.bf16.mxu0 0
    %739 = vmatpush2.bf16.msra.mxu0 0
    %740 = vmatprep.mubr.bf16.mxu0 0
    %741 = vmatmul.mubr.bf16.gmra.mxu0 %v707
    %v742 = vpop.f32.mrf.mxu0
    %v743 = vadd.f32 0.0, %v742
    %v744 = vpop.f32.mrf.mxu0
    %v745 = vpop.f32.mrf.mxu0
    %v746 = vpop.f32.mrf.mxu0
    %747 = vdwg.mxu0
    %v748 = vadd.f32 %v706, %v743
    %v749 = vtanh.pop %v748
    %750 = vst [vmem:[%s705] sm:$0xff] %v749
    %s751 = scalar_lea.vmem [#allocation3], 56
    %v752 = vld [vmem:[%s751] sm:$0xff]
    %v753 = vpack.c.bf16 %v749, %v749
    %754 = vmatprep.subr.bf16.mxu0 0
    %755 = vmatpush1.bf16.msra.mxu0 %v423
    %756 = vmatprep.subr.bf16.mxu0 0
    %757 = vmatpush1.bf16.msra.mxu0 %v422
    %758 = vmatprep.subr.bf16.mxu0 0
    %759 = vmatpush1.bf16.msra.mxu0 %v421
    %760 = vmatprep.subr.bf16.mxu0 0
    %761 = vmatpush1.bf16.msra.mxu0 %v420
    %762 = vmatprep.subr.bf16.mxu0 0
    %763 = vmatpush1.bf16.msra.mxu0 %v419
    %764 = vmatprep.subr.bf16.mxu0 0
    %765 = vmatpush1.bf16.msra.mxu0 %v418
    %766 = vmatprep.subr.bf16.mxu0 0
    %767 = vmatpush1.bf16.msra.mxu0 %v417
    %768 = vmatprep.subr.bf16.mxu0 0
    %769 = vmatpush1.bf16.msra.mxu0 %v416
    %770 = vmatprep.subr.bf16.mxu0 0
    %771 = vmatpush2.bf16.msra.mxu0 0
    %772 = vmatprep.subr.bf16.mxu0 0
    %773 = vmatpush2.bf16.msra.mxu0 0
    %774 = vmatprep.subr.bf16.mxu0 0
    %775 = vmatpush2.bf16.msra.mxu0 0
    %776 = vmatprep.subr.bf16.mxu0 0
    %777 = vmatpush2.bf16.msra.mxu0 0
    %778 = vmatprep.subr.bf16.mxu0 0
    %779 = vmatpush2.bf16.msra.mxu0 0
    %780 = vmatprep.subr.bf16.mxu0 0
    %781 = vmatpush2.bf16.msra.mxu0 0
    %782 = vmatprep.subr.bf16.mxu0 0
    %783 = vmatpush2.bf16.msra.mxu0 0
    %784 = vmatprep.subr.bf16.mxu0 0
    %785 = vmatpush2.bf16.msra.mxu0 0
    %786 = vmatprep.mubr.bf16.mxu0 0
    %787 = vmatmul.mubr.bf16.gmra.mxu0 %v753
    %v788 = vpop.f32.mrf.mxu0
    %v789 = vadd.f32 0.0, %v788
    %v790 = vpop.f32.mrf.mxu0
    %v791 = vpop.f32.mrf.mxu0
    %v792 = vpop.f32.mrf.mxu0
    %793 = vdwg.mxu0
    %v794 = vadd.f32 %v752, %v789
    %v795 = vtanh.pop %v794
    %796 = vst [vmem:[%s751] sm:$0xff] %v795
    %797 = vst [vmem:[#allocation2] sm:$0xff] %v795
    %v798 = vld [vmem:[#allocation3] sm:$0xff]
    %v799 = vld [vmem:[#allocation3 + $0x8] sm:$0xff]
    %v800 = vld [vmem:[#allocation3 + $0x10] sm:$0xff]
    %v801 = vld [vmem:[#allocation3 + $0x18] sm:$0xff]
    %v802 = vld [vmem:[#allocation3 + $0x20] sm:$0xff]
    %v803 = vld [vmem:[#allocation3 + $0x28] sm:$0xff]
    %v804 = vld [vmem:[#allocation3 + $0x30] sm:$0xff]
    %v805 = vld [vmem:[#allocation3 + $0x38] sm:$0xff]
    %v806 = vcombine.low %v798, %v800
    %v807 = vcombine.high %v798, %v800
    %v809 = vunpack.c.l.s4 1983009808
    %v810 = vunpack.c.0.s8 %v809
    %v811 = vlaneseq
    %v812 = vshrl.u32 %v811, 7
    %v813 = vsub.s32 %v810, %v812
    %v814 = vrot.slane %v806, %v813
    %v816 = vunpack.c.l.s4 1983009808
    %v817 = vunpack.c.0.s8 %v816
    %v818 = vlaneseq
    %v819 = vshrl.u32 %v818, 7
    %v820 = vsub.s32 %v817, %v819
    %v821 = vrot.slane %v807, %v820
    %v822 = vcombine.low %v799, %v801
    %v823 = vcombine.high %v799, %v801
    %v825 = vunpack.c.l.s4 1983009808
    %v826 = vunpack.c.0.s8 %v825
    %v827 = vlaneseq
    %v828 = vshrl.u32 %v827, 7
    %v829 = vsub.s32 %v826, %v828
    %v830 = vrot.slane %v822, %v829
    %v832 = vunpack.c.l.s4 1983009808
    %v833 = vunpack.c.0.s8 %v832
    %v834 = vlaneseq
    %v835 = vshrl.u32 %v834, 7
    %v836 = vsub.s32 %v833, %v835
    %v837 = vrot.slane %v823, %v836
    %v838 = vcombine.low %v802, %v804
    %v839 = vcombine.high %v802, %v804
    %v841 = vunpack.c.l.s4 1983009808
    %v842 = vunpack.c.0.s8 %v841
    %v843 = vlaneseq
    %v844 = vshrl.u32 %v843, 7
    %v845 = vsub.s32 %v842, %v844
    %v846 = vrot.slane %v838, %v845
    %v848 = vunpack.c.l.s4 1983009808
    %v849 = vunpack.c.0.s8 %v848
    %v850 = vlaneseq
    %v851 = vshrl.u32 %v850, 7
    %v852 = vsub.s32 %v849, %v851
    %v853 = vrot.slane %v839, %v852
    %v854 = vcombine.low %v803, %v805
    %v855 = vcombine.high %v803, %v805
    %v857 = vunpack.c.l.s4 1983009808
    %v858 = vunpack.c.0.s8 %v857
    %v859 = vlaneseq
    %v860 = vshrl.u32 %v859, 7
    %v861 = vsub.s32 %v858, %v860
    %v862 = vrot.slane %v854, %v861
    %v864 = vunpack.c.l.s4 1983009808
    %v865 = vunpack.c.0.s8 %v864
    %v866 = vlaneseq
    %v867 = vshrl.u32 %v866, 7
    %v868 = vsub.s32 %v865, %v867
    %v869 = vrot.slane %v855, %v868
    %v870 = vcombine.low %v814, %v830
    %v871 = vcombine.high %v814, %v830
    %v873 = vunpack.c.l.s4 1934713408
    %v874 = vunpack.c.0.s8 %v873
    %v875 = vlaneseq
    %v876 = vshrl.u32 %v875, 7
    %v877 = vsub.s32 %v874, %v876
    %v878 = vrot.slane %v870, %v877
    %v880 = vunpack.c.l.s4 1934713408
    %v881 = vunpack.c.0.s8 %v880
    %v882 = vlaneseq
    %v883 = vshrl.u32 %v882, 7
    %v884 = vsub.s32 %v881, %v883
    %v885 = vrot.slane %v871, %v884
    %v886 = vcombine.low %v821, %v837
    %v887 = vcombine.high %v821, %v837
    %v889 = vunpack.c.l.s4 1934713408
    %v890 = vunpack.c.0.s8 %v889
    %v891 = vlaneseq
    %v892 = vshrl.u32 %v891, 7
    %v893 = vsub.s32 %v890, %v892
    %v894 = vrot.slane %v886, %v893
    %v896 = vunpack.c.l.s4 1934713408
    %v897 = vunpack.c.0.s8 %v896
    %v898 = vlaneseq
    %v899 = vshrl.u32 %v898, 7
    %v900 = vsub.s32 %v897, %v899
    %v901 = vrot.slane %v887, %v900
    %v902 = vcombine.low %v846, %v862
    %v903 = vcombine.high %v846, %v862
    %v905 = vunpack.c.l.s4 1934713408
    %v906 = vunpack.c.0.s8 %v905
    %v907 = vlaneseq
    %v908 = vshrl.u32 %v907, 7
    %v909 = vsub.s32 %v906, %v908
    %v910 = vrot.slane %v902, %v909
    %v912 = vunpack.c.l.s4 1934713408
    %v913 = vunpack.c.0.s8 %v912
    %v914 = vlaneseq
    %v915 = vshrl.u32 %v914, 7
    %v916 = vsub.s32 %v913, %v915
    %v917 = vrot.slane %v903, %v916
    %v918 = vcombine.low %v853, %v869
    %v919 = vcombine.high %v853, %v869
    %v921 = vunpack.c.l.s4 1934713408
    %v922 = vunpack.c.0.s8 %v921
    %v923 = vlaneseq
    %v924 = vshrl.u32 %v923, 7
    %v925 = vsub.s32 %v922, %v924
    %v926 = vrot.slane %v918, %v925
    %v928 = vunpack.c.l.s4 1934713408
    %v929 = vunpack.c.0.s8 %v928
    %v930 = vlaneseq
    %v931 = vshrl.u32 %v930, 7
    %v932 = vsub.s32 %v929, %v931
    %v933 = vrot.slane %v919, %v932
    %v934 = vcombine.low %v878, %v910
    %v935 = vcombine.high %v878, %v910
    %v936 = vcombine.low %v885, %v917
    %v937 = vcombine.high %v885, %v917
    %v938 = vcombine.low %v894, %v926
    %v939 = vcombine.high %v894, %v926
    %v940 = vcombine.low %v901, %v933
    %v941 = vcombine.high %v901, %v933
    %942 = vst [vmem:[#allocation10] sm:$0xff] %v934
    %943 = vst [vmem:[#allocation10 + $0x8] sm:$0xff] %v935
    %944 = vst [vmem:[#allocation10 + $0x10] sm:$0xff] %v936
    %945 = vst [vmem:[#allocation10 + $0x18] sm:$0xff] %v937
    %946 = vst [vmem:[#allocation10 + $0x20] sm:$0xff] %v938
    %947 = vst [vmem:[#allocation10 + $0x28] sm:$0xff] %v939
    %948 = vst [vmem:[#allocation10 + $0x30] sm:$0xff] %v940
    %949 = vst [vmem:[#allocation10 + $0x38] sm:$0xff] %v941
    // Predicated region
    $region34: #{tpu_custom_call.1} parent=1 // pred_check
      _
    $region35: #{tpu_custom_call.1} parent=1 // pred_check_branch
      %951 = sbr.rel (0) target = $region37
    $region36: #{tpu_custom_call.1} parent=1 // pred_region
      %s953 = ssub.s32 1024, 1024
      %954 = vsyncadd [#allocation6], %s953
      %s955 = sshll.u32 [#allocation10], 4
      %s956 = int_to_ptr.vmem [resolvable:$true] %s955
      %961 = dma.vmem_to_hbm [thread:$0]  %s956, 1024, %s4, [#allocation6], 128, 128, 8
    $region37: #{tpu_custom_call.1} parent=1 // pred_fallthru
      _
    // Predicated region
    $region38: #{tpu_custom_call.1} parent=1 // pred_check
      _
    $region39: #{tpu_custom_call.1} parent=1 // pred_check_branch
      %963 = sbr.rel (0) target = $region41
    $region40: #{tpu_custom_call.1} parent=1 // pred_region
      %964 = dma.done [#allocation6], 1024
    $region41: #{tpu_custom_call.1} parent=1 // pred_fallthru
      _
    %965 = vsyncpa [#allocation5], 1
    %966 = vsyncpa [#allocation8], 1
    %967 = vsyncpa [#allocation6], 1

// kernel: tpu_custom_call.1
$region0: #{tpu_custom_call.1}
  #allocation0 [shape = 'u32[]', space=smem, size = 0x4, offset = 0x4, fixed_abs, tag = 'smem constant byte address 0x4 - core index']
  #allocation1 [shape = 'u32[144,128]{1,0:T(1,128)}', space=vmem, size = 0x12000, scoped, tag = 'internal scratch']
  #allocation2 [shape = 'f32[8,128]{1,0:T(8,128)}', space=vmem, size = 0x1000, scoped, tag = 'scratch operand']
  #allocation3 [shape = 'f32[8,8,128]{2,1,0:T(8,128)}', space=vmem, size = 0x8000, scoped, tag = 'scratch operand']
  %s0 = inlined_call_operand.hbm [shape: f32[8,8,128], index: 0, kind: input, shape index: {}]
  %s1 = inlined_call_operand.hbm [shape: bf16[128,128], index: 1, kind: input, shape index: {}]
  %s2 = inlined_call_operand.hbm [shape: bf16[128,128], index: 2, kind: input, shape index: {}]
  %s3 = inlined_call_operand.vmem [shape: f32[1,128], index: 3, kind: input, shape index: {}]
  %s4 = inlined_call_operand.hbm [shape: f32[8,8,128], index: 4, kind: output, shape index: {}]
  %s5 = sld [smem:[#allocation0]]
  $region42: #{tpu_custom_call.1} parent=0
    _
  %s7 = ssub.s32 1, %s5
  %s8 = scalar_select 0, %s7, %s5
  $region1: #{tpu_custom_call.1} parent=0
    #allocation4 [shape = 'u8[32768]{0}', space=vmem, size = 0x8000, scoped, tag = 'input window, operand 0, single buffered']
    #allocation5 [shape = 's32[1]{0}', space=sflag, size = 0x4, scoped, tag = 'scoped memory for tpu_custom_call.1']
    #allocation6 [shape = 's32[1]{0}', space=sflag, size = 0x4, scoped, tag = 'scoped memory for tpu_custom_call.1']
    #allocation7 [shape = 'u8[32768]{0}', space=vmem, size = 0x8000, scoped, tag = 'input window, operand 1, single buffered']
    #allocation8 [shape = 's32[1]{0}', space=sflag, size = 0x4, scoped, tag = 'scoped memory for tpu_custom_call.1']
    #allocation9 [shape = 'u8[32768]{0}', space=vmem, size = 0x8000, scoped, tag = 'input window, operand 2, single buffered']
    #allocation10 [shape = 'u8[32768]{0}', space=vmem, size = 0x8000, scoped, tag = 'output window, operand 0, single buffered']
    %9 = vsyncpa [#allocation5], 0
    %10 = vsyncpa [#allocation8], 0
    %11 = vsyncpa [#allocation6], 0
    // Predicated region
    $region2: #{tpu_custom_call.1} parent=1 // pred_check
      _
    $region3: #{tpu_custom_call.1} parent=1 // pred_check_branch
      %13 = sbr.rel (0) target = $region5
    $region4: #{tpu_custom_call.1} parent=1 // pred_region
      %s15 = ssub.s32 1024, 1024
      %16 = vsyncadd [#allocation5], %s15
      %s17 = sshll.u32 [#allocation4], 4
      %s18 = int_to_ptr.vmem [resolvable:$true] %s17
      %23 = dma.hbm_to_vmem [thread:$0]  %s0, 1024, %s18, [#allocation5], 128, 128, 8
    $region5: #{tpu_custom_call.1} parent=1 // pred_fallthru
      _
    // Predicated region
    $region6: #{tpu_custom_call.1} parent=1 // pred_check
      _
    $region7: #{tpu_custom_call.1} parent=1 // pred_check_branch
      %25 = sbr.rel (0) target = $region9
    $region8: #{tpu_custom_call.1} parent=1 // pred_region
      %s27 = ssub.s32 1024, 1024
      %28 = vsyncadd [#allocation8], %s27
      %s29 = sshll.u32 [#allocation7], 4
      %s30 = int_to_ptr.vmem [resolvable:$true] %s29
      %35 = dma.hbm_to_vmem [thread:$0]  %s1, 1024, %s30, [#allocation8], 64, 64, 4
    $region9: #{tpu_custom_call.1} parent=1 // pred_fallthru
      _
    // Predicated region
    $region10: #{tpu_custom_call.1} parent=1 // pred_check
      _
    $region11: #{tpu_custom_call.1} parent=1 // pred_check_branch
      %37 = sbr.rel (0) target = $region13
    $region12: #{tpu_custom_call.1} parent=1 // pred_region
      %s39 = ssub.s32 1024, 1024
      %40 = vsyncadd [#allocation8], %s39
      %s41 = sshll.u32 [#allocation9], 4
      %s42 = int_to_ptr.vmem [resolvable:$true] %s41
      %47 = dma.hbm_to_vmem [thread:$0]  %s2, 1024, %s42, [#allocation8], 64, 64, 4
    $region13: #{tpu_custom_call.1} parent=1 // pred_fallthru
      _
    // Predicated region
    $region14: #{tpu_custom_call.1} parent=1 // pred_check
      _
    $region15: #{tpu_custom_call.1} parent=1 // pred_check_branch
      %49 = sbr.rel (0) target = $region17
    $region16: #{tpu_custom_call.1} parent=1 // pred_region
      _
    $region17: #{tpu_custom_call.1} parent=1 // pred_fallthru
      _
    // Predicated region
    $region18: #{tpu_custom_call.1} parent=1 // pred_check
      _
    $region19: #{tpu_custom_call.1} parent=1 // pred_check_branch
      %51 = sbr.rel (0) target = $region21
    $region20: #{tpu_custom_call.1} parent=1 // pred_region
      %52 = dma.done [#allocation5], 1024
    $region21: #{tpu_custom_call.1} parent=1 // pred_fallthru
      _
    // Predicated region
    $region22: #{tpu_custom_call.1} parent=1 // pred_check
      _
    $region23: #{tpu_custom_call.1} parent=1 // pred_check_branch
      %54 = sbr.rel (0) target = $region25
    $region24: #{tpu_custom_call.1} parent=1 // pred_region
      %55 = dma.done [#allocation8], 1024
    $region25: #{tpu_custom_call.1} parent=1 // pred_fallthru
      _
    // Predicated region
    $region26: #{tpu_custom_call.1} parent=1 // pred_check
      _
    $region27: #{tpu_custom_call.1} parent=1 // pred_check_branch
      %57 = sbr.rel (0) target = $region29
    $region28: #{tpu_custom_call.1} parent=1 // pred_region
      %58 = dma.done [#allocation8], 1024
    $region29: #{tpu_custom_call.1} parent=1 // pred_fallthru
      _
    %p60 = scmp.eq.s32.totalorder 0, 0
    // Predicated region
    $region30: #{tpu_custom_call.1} parent=1 // pred_check
      %p61 = pneg %p60
    $region31: #{tpu_custom_call.1} parent=1 // pred_check_branch
      %63 = sbr.rel (%p61) target = $region33
    $region32: #{tpu_custom_call.1} parent=1 // pred_region
      %64 = vst [vmem:[#allocation2] sm:$0xff] 0.0
    $region33: #{tpu_custom_call.1} parent=1 // pred_fallthru
      _
    %v65 = vld [vmem:[#allocation4] sm:$0xff]
    %v66 = vld [vmem:[#allocation4 + $0x8] sm:$0xff]
    %v67 = vld [vmem:[#allocation4 + $0x10] sm:$0xff]
    %v68 = vld [vmem:[#allocation4 + $0x18] sm:$0xff]
    %v69 = vld [vmem:[#allocation4 + $0x20] sm:$0xff]
    %v70 = vld [vmem:[#allocation4 + $0x28] sm:$0xff]
    %v71 = vld [vmem:[#allocation4 + $0x30] sm:$0xff]
    %v72 = vld [vmem:[#allocation4 + $0x38] sm:$0xff]
    %v73 = vpack.c.bf16 %v66, %v65
    %v74 = vpack.c.bf16 %v68, %v67
    %v75 = vpack.c.bf16 %v70, %v69
    %v76 = vpack.c.bf16 %v72, %v71
    %v77 = vld [vmem:[#allocation7] sm:$0xf]
    %v78 = vld [vmem:[#allocation7 + $0x4] sm:$0xf]
    %v79 = vld [vmem:[#allocation7 + $0x8] sm:$0xf]
    %v80 = vld [vmem:[#allocation7 + $0xc] sm:$0xf]
    %v81 = vld [vmem:[#allocation7 + $0x10] sm:$0xf]
    %v82 = vld [vmem:[#allocation7 + $0x14] sm:$0xf]
    %v83 = vld [vmem:[#allocation7 + $0x18] sm:$0xf]
    %v84 = vld [vmem:[#allocation7 + $0x1c] sm:$0xf]
    %v85 = vld [vmem:[#allocation7 + $0x20] sm:$0xf]
    %v86 = vld [vmem:[#allocation7 + $0x24] sm:$0xf]
    %v87 = vld [vmem:[#allocation7 + $0x28] sm:$0xf]
    %v88 = vld [vmem:[#allocation7 + $0x2c] sm:$0xf]
    %v89 = vld [vmem:[#allocation7 + $0x30] sm:$0xf]
    %v90 = vld [vmem:[#allocation7 + $0x34] sm:$0xf]
    %v91 = vld [vmem:[#allocation7 + $0x38] sm:$0xf]
    %v92 = vld [vmem:[#allocation7 + $0x3c] sm:$0xf]
    %v109 = vunpack.c.l.b16 %v77
    %v110 = vunpack.c.l.b16 %v78
    %v111 = vunpack.c.l.b16 %v79
    %v112 = vunpack.c.l.b16 %v80
    %v113 = vunpack.c.l.b16 %v81
    %v114 = vunpack.c.l.b16 %v82
    %v115 = vunpack.c.l.b16 %v83
    %v116 = vunpack.c.l.b16 %v84
    %v117 = vunpack.c.l.b16 %v85
    %v118 = vunpack.c.l.b16 %v86
    %v119 = vunpack.c.l.b16 %v87
    %v120 = vunpack.c.l.b16 %v88
    %v121 = vunpack.c.l.b16 %v89
    %v122 = vunpack.c.l.b16 %v90
    %v123 = vunpack.c.l.b16 %v91
    %v124 = vunpack.c.l.b16 %v92
    %v125 = vpack.c.b16 %v110, %v109
    %v126 = vpack.c.b16 %v112, %v111
    %v127 = vpack.c.b16 %v114, %v113
    %v128 = vpack.c.b16 %v116, %v115
    %v129 = vpack.c.b16 %v118, %v117
    %v130 = vpack.c.b16 %v120, %v119
    %v131 = vpack.c.b16 %v122, %v121
    %v132 = vpack.c.b16 %v124, %v123
    %141 = vmatprep.subr.bf16.mxu0 0
    %142 = vmatpush1.bf16.msra.mxu0 %v132
    %143 = vmatprep.subr.bf16.mxu0 0
    %144 = vmatpush1.bf16.msra.mxu0 %v131
    %145 = vmatprep.subr.bf16.mxu0 0
    %146 = vmatpush1.bf16.msra.mxu0 %v130
    %147 = vmatprep.subr.bf16.mxu0 0
    %148 = vmatpush1.bf16.msra.mxu0 %v129
    %149 = vmatprep.subr.bf16.mxu0 0
    %150 = vmatpush1.bf16.msra.mxu0 %v128
    %151 = vmatprep.subr.bf16.mxu0 0
    %152 = vmatpush1.bf16.msra.mxu0 %v127
    %153 = vmatprep.subr.bf16.mxu0 0
    %154 = vmatpush1.bf16.msra.mxu0 %v126
    %155 = vmatprep.subr.bf16.mxu0 0
    %156 = vmatpush1.bf16.msra.mxu0 %v125
    %157 = vmatprep.subr.bf16.mxu0 0
    %158 = vmatpush2.bf16.msra.mxu0 0
    %159 = vmatprep.subr.bf16.mxu0 0
    %160 = vmatpush2.bf16.msra.mxu0 0
    %161 = vmatprep.subr.bf16.mxu0 0
    %162 = vmatpush2.bf16.msra.mxu0 0
    %163 = vmatprep.subr.bf16.mxu0 0
    %164 = vmatpush2.bf16.msra.mxu0 0
    %165 = vmatprep.subr.bf16.mxu0 0
    %166 = vmatpush2.bf16.msra.mxu0 0
    %167 = vmatprep.subr.bf16.mxu0 0
    %168 = vmatpush2.bf16.msra.mxu0 0
    %169 = vmatprep.subr.bf16.mxu0 0
    %170 = vmatpush2.bf16.msra.mxu0 0
    %171 = vmatprep.subr.bf16.mxu0 0
    %172 = vmatpush2.bf16.msra.mxu0 0
    %173 = vmatprep.mubr.bf16.mxu0 0
    %174 = vmatmul.mubr.bf16.gmra.mxu0 %v73
    %v175 = vpop.f32.mrf.mxu0
    %v176 = vadd.f32 0.0, %v175
    %v177 = vpop.f32.mrf.mxu0
    %v178 = vpop.f32.mrf.mxu0
    %v179 = vadd.f32 0.0, %v178
    %v180 = vpop.f32.mrf.mxu0
    %181 = vmatprep.mubr.bf16.mxu0 0
    %182 = vmatmul.mubr.bf16.gmra.mxu0 %v74
    %v183 = vpop.f32.mrf.mxu0
    %v184 = vadd.f32 0.0, %v183
    %v185 = vpop.f32.mrf.mxu0
    %v186 = vpop.f32.mrf.mxu0
    %v187 = vadd.f32 0.0, %v186
    %v188 = vpop.f32.mrf.mxu0
    %189 = vmatprep.mubr.bf16.mxu0 0
    %190 = vmatmul.mubr.bf16.gmra.mxu0 %v75
    %v191 = vpop.f32.mrf.mxu0
    %v192 = vadd.f32 0.0, %v191
    %v193 = vpop.f32.mrf.mxu0
    %v194 = vpop.f32.mrf.mxu0
    %v195 = vadd.f32 0.0, %v194
    %v196 = vpop.f32.mrf.mxu0
    %197 = vmatprep.mubr.bf16.mxu0 0
    %198 = vmatmul.mubr.bf16.gmra.mxu0 %v76
    %v199 = vpop.f32.mrf.mxu0
    %v200 = vadd.f32 0.0, %v199
    %v201 = vpop.f32.mrf.mxu0
    %v202 = vpop.f32.mrf.mxu0
    %v203 = vadd.f32 0.0, %v202
    %v204 = vpop.f32.mrf.mxu0
    %205 = vdwg.mxu0
    %v206 = vcombine.low %v176, %v184
    %v207 = vcombine.high %v176, %v184
    %v209 = vunpack.c.l.s4 1983009808
    %v210 = vunpack.c.0.s8 %v209
    %v211 = vlaneseq
    %v212 = vshrl.u32 %v211, 7
    %v213 = vsub.s32 %v210, %v212
    %v214 = vrot.slane %v206, %v213
    %v216 = vunpack.c.l.s4 1983009808
    %v217 = vunpack.c.0.s8 %v216
    %v218 = vlaneseq
    %v219 = vshrl.u32 %v218, 7
    %v220 = vsub.s32 %v217, %v219
    %v221 = vrot.slane %v207, %v220
    %v222 = vcombine.low %v179, %v187
    %v223 = vcombine.high %v179, %v187
    %v225 = vunpack.c.l.s4 1983009808
    %v226 = vunpack.c.0.s8 %v225
    %v227 = vlaneseq
    %v228 = vshrl.u32 %v227, 7
    %v229 = vsub.s32 %v226, %v228
    %v230 = vrot.slane %v222, %v229
    %v232 = vunpack.c.l.s4 1983009808
    %v233 = vunpack.c.0.s8 %v232
    %v234 = vlaneseq
    %v235 = vshrl.u32 %v234, 7
    %v236 = vsub.s32 %v233, %v235
    %v237 = vrot.slane %v223, %v236
    %v238 = vcombine.low %v192, %v200
    %v239 = vcombine.high %v192, %v200
    %v241 = vunpack.c.l.s4 1983009808
    %v242 = vunpack.c.0.s8 %v241
    %v243 = vlaneseq
    %v244 = vshrl.u32 %v243, 7
    %v245 = vsub.s32 %v242, %v244
    %v246 = vrot.slane %v238, %v245
    %v248 = vunpack.c.l.s4 1983009808
    %v249 = vunpack.c.0.s8 %v248
    %v250 = vlaneseq
    %v251 = vshrl.u32 %v250, 7
    %v252 = vsub.s32 %v249, %v251
    %v253 = vrot.slane %v239, %v252
    %v254 = vcombine.low %v195, %v203
    %v255 = vcombine.high %v195, %v203
    %v257 = vunpack.c.l.s4 1983009808
    %v258 = vunpack.c.0.s8 %v257
    %v259 = vlaneseq
    %v260 = vshrl.u32 %v259, 7
    %v261 = vsub.s32 %v258, %v260
    %v262 = vrot.slane %v254, %v261
    %v264 = vunpack.c.l.s4 1983009808
    %v265 = vunpack.c.0.s8 %v264
    %v266 = vlaneseq
    %v267 = vshrl.u32 %v266, 7
    %v268 = vsub.s32 %v265, %v267
    %v269 = vrot.slane %v255, %v268
    %v270 = vcombine.low %v214, %v230
    %v271 = vcombine.high %v214, %v230
    %v273 = vunpack.c.l.s4 1934713408
    %v274 = vunpack.c.0.s8 %v273
    %v275 = vlaneseq
    %v276 = vshrl.u32 %v275, 7
    %v277 = vsub.s32 %v274, %v276
    %v278 = vrot.slane %v270, %v277
    %v280 = vunpack.c.l.s4 1934713408
    %v281 = vunpack.c.0.s8 %v280
    %v282 = vlaneseq
    %v283 = vshrl.u32 %v282, 7
    %v284 = vsub.s32 %v281, %v283
    %v285 = vrot.slane %v271, %v284
    %v286 = vcombine.low %v221, %v237
    %v287 = vcombine.high %v221, %v237
    %v289 = vunpack.c.l.s4 1934713408
    %v290 = vunpack.c.0.s8 %v289
    %v291 = vlaneseq
    %v292 = vshrl.u32 %v291, 7
    %v293 = vsub.s32 %v290, %v292
    %v294 = vrot.slane %v286, %v293
    %v296 = vunpack.c.l.s4 1934713408
    %v297 = vunpack.c.0.s8 %v296
    %v298 = vlaneseq
    %v299 = vshrl.u32 %v298, 7
    %v300 = vsub.s32 %v297, %v299
    %v301 = vrot.slane %v287, %v300
    %v302 = vcombine.low %v246, %v262
    %v303 = vcombine.high %v246, %v262
    %v305 = vunpack.c.l.s4 1934713408
    %v306 = vunpack.c.0.s8 %v305
    %v307 = vlaneseq
    %v308 = vshrl.u32 %v307, 7
    %v309 = vsub.s32 %v306, %v308
    %v310 = vrot.slane %v302, %v309
    %v312 = vunpack.c.l.s4 1934713408
    %v313 = vunpack.c.0.s8 %v312
    %v314 = vlaneseq
    %v315 = vshrl.u32 %v314, 7
    %v316 = vsub.s32 %v313, %v315
    %v317 = vrot.slane %v303, %v316
    %v318 = vcombine.low %v253, %v269
    %v319 = vcombine.high %v253, %v269
    %v321 = vunpack.c.l.s4 1934713408
    %v322 = vunpack.c.0.s8 %v321
    %v323 = vlaneseq
    %v324 = vshrl.u32 %v323, 7
    %v325 = vsub.s32 %v322, %v324
    %v326 = vrot.slane %v318, %v325
    %v328 = vunpack.c.l.s4 1934713408
    %v329 = vunpack.c.0.s8 %v328
    %v330 = vlaneseq
    %v331 = vshrl.u32 %v330, 7
    %v332 = vsub.s32 %v329, %v331
    %v333 = vrot.slane %v319, %v332
    %v334 = vcombine.low %v278, %v310
    %v335 = vcombine.high %v278, %v310
    %v336 = vcombine.low %v285, %v317
    %v337 = vcombine.high %v285, %v317
    %v338 = vcombine.low %v294, %v326
    %v339 = vcombine.high %v294, %v326
    %v340 = vcombine.low %v301, %v333
    %v341 = vcombine.high %v301, %v333
    %v342 = vld [vmem:[%s3] sm:$0x1]
    %v344 = vlaneseq
    %v345 = vshrl.u32 %v344, 7
    %v346 = vsub.s32 0, %v345
    %v347 = vrot.slane %v342, %v346
    %v349 = vadd.f32 %v334, %v347
    %v350 = vadd.f32 %v335, %v347
    %v351 = vadd.f32 %v336, %v347
    %v352 = vadd.f32 %v337, %v347
    %v353 = vadd.f32 %v338, %v347
    %v354 = vadd.f32 %v339, %v347
    %v355 = vadd.f32 %v340, %v347
    %v356 = vadd.f32 %v341, %v347
    %357 = vst [vmem:[#allocation3] sm:$0xff] %v349
    %358 = vst [vmem:[#allocation3 + $0x8] sm:$0xff] %v350
    %359 = vst [vmem:[#allocation3 + $0x10] sm:$0xff] %v351
    %360 = vst [vmem:[#allocation3 + $0x18] sm:$0xff] %v352
    %361 = vst [vmem:[#allocation3 + $0x20] sm:$0xff] %v353
    %362 = vst [vmem:[#allocation3 + $0x28] sm:$0xff] %v354
    %363 = vst [vmem:[#allocation3 + $0x30] sm:$0xff] %v355
    %364 = vst [vmem:[#allocation3 + $0x38] sm:$0xff] %v356
    %v365 = vld [vmem:[#allocation9] sm:$0xf]
    %v366 = vld [vmem:[#allocation9 + $0x4] sm:$0xf]
    %v367 = vld [vmem:[#allocation9 + $0x8] sm:$0xf]
    %v368 = vld [vmem:[#allocation9 + $0xc] sm:$0xf]
    %v369 = vld [vmem:[#allocation9 + $0x10] sm:$0xf]
    %v370 = vld [vmem:[#allocation9 + $0x14] sm:$0xf]
    %v371 = vld [vmem:[#allocation9 + $0x18] sm:$0xf]
    %v372 = vld [vmem:[#allocation9 + $0x1c] sm:$0xf]
    %v373 = vld [vmem:[#allocation9 + $0x20] sm:$0xf]
    %v374 = vld [vmem:[#allocation9 + $0x24] sm:$0xf]
    %v375 = vld [vmem:[#allocation9 + $0x28] sm:$0xf]
    %v376 = vld [vmem:[#allocation9 + $0x2c] sm:$0xf]
    %v377 = vld [vmem:[#allocation9 + $0x30] sm:$0xf]
    %v378 = vld [vmem:[#allocation9 + $0x34] sm:$0xf]
    %v379 = vld [vmem:[#allocation9 + $0x38] sm:$0xf]
    %v380 = vld [vmem:[#allocation9 + $0x3c] sm:$0xf]
    %v381 = vld [vmem:[#allocation2] sm:$0xff]
    %v382 = vld [vmem:[#allocation3] sm:$0xff]
    %v383 = vpack.c.bf16 %v381, %v381
    %v400 = vunpack.c.l.b16 %v365
    %v401 = vunpack.c.l.b16 %v366
    %v402 = vunpack.c.l.b16 %v367
    %v403 = vunpack.c.l.b16 %v368
    %v404 = vunpack.c.l.b16 %v369
    %v405 = vunpack.c.l.b16 %v370
    %v406 = vunpack.c.l.b16 %v371
    %v407 = vunpack.c.l.b16 %v372
    %v408 = vunpack.c.l.b16 %v373
    %v409 = vunpack.c.l.b16 %v374
    %v410 = vunpack.c.l.b16 %v375
    %v411 = vunpack.c.l.b16 %v376
    %v412 = vunpack.c.l.b16 %v377
    %v413 = vunpack.c.l.b16 %v378
    %v414 = vunpack.c.l.b16 %v379
    %v415 = vunpack.c.l.b16 %v380
    %v416 = vpack.c.b16 %v401, %v400
    %v417 = vpack.c.b16 %v403, %v402
    %v418 = vpack.c.b16 %v405, %v404
    %v419 = vpack.c.b16 %v407, %v406
    %v420 = vpack.c.b16 %v409, %v408
    %v421 = vpack.c.b16 %v411, %v410
    %v422 = vpack.c.b16 %v413, %v412
    %v423 = vpack.c.b16 %v415, %v414
    %432 = vmatprep.subr.bf16.mxu0 0
    %433 = vmatpush1.bf16.msra.mxu0 %v423
    %434 = vmatprep.subr.bf16.mxu0 0
    %435 = vmatpush1.bf16.msra.mxu0 %v422
    %436 = vmatprep.subr.bf16.mxu0 0
    %437 = vmatpush1.bf16.msra.mxu0 %v421
    %438 = vmatprep.subr.bf16.mxu0 0
    %439 = vmatpush1.bf16.msra.mxu0 %v420
    %440 = vmatprep.subr.bf16.mxu0 0
    %441 = vmatpush1.bf16.msra.mxu0 %v419
    %442 = vmatprep.subr.bf16.mxu0 0
    %443 = vmatpush1.bf16.msra.mxu0 %v418
    %444 = vmatprep.subr.bf16.mxu0 0
    %445 = vmatpush1.bf16.msra.mxu0 %v417
    %446 = vmatprep.subr.bf16.mxu0 0
    %447 = vmatpush1.bf16.msra.mxu0 %v416
    %448 = vmatprep.subr.bf16.mxu0 0
    %449 = vmatpush2.bf16.msra.mxu0 0
    %450 = vmatprep.subr.bf16.mxu0 0
    %451 = vmatpush2.bf16.msra.mxu0 0
    %452 = vmatprep.subr.bf16.mxu0 0
    %453 = vmatpush2.bf16.msra.mxu0 0
    %454 = vmatprep.subr.bf16.mxu0 0
    %455 = vmatpush2.bf16.msra.mxu0 0
    %456 = vmatprep.subr.bf16.mxu0 0
    %457 = vmatpush2.bf16.msra.mxu0 0
    %458 = vmatprep.subr.bf16.mxu0 0
    %459 = vmatpush2.bf16.msra.mxu0 0
    %460 = vmatprep.subr.bf16.mxu0 0
    %461 = vmatpush2.bf16.msra.mxu0 0
    %462 = vmatprep.subr.bf16.mxu0 0
    %463 = vmatpush2.bf16.msra.mxu0 0
    %464 = vmatprep.mubr.bf16.mxu0 0
    %465 = vmatmul.mubr.bf16.gmra.mxu0 %v383
    %v466 = vpop.f32.mrf.mxu0
    %v467 = vadd.f32 0.0, %v466
    %v468 = vpop.f32.mrf.mxu0
    %v469 = vpop.f32.mrf.mxu0
    %v470 = vpop.f32.mrf.mxu0
    %471 = vdwg.mxu0
    %v472 = vadd.f32 %v382, %v467
    %v473 = vtanh.pop %v472
    %474 = vst [vmem:[#allocation3] sm:$0xff] %v473
    %s475 = scalar_lea.vmem [#allocation3], 8
    %v476 = vld [vmem:[%s475] sm:$0xff]
    %v477 = vpack.c.bf16 %v473, %v473
    %478 = vmatprep.subr.bf16.mxu0 0
    %479 = vmatpush1.bf16.msra.mxu0 %v423
    %480 = vmatprep.subr.bf16.mxu0 0
    %481 = vmatpush1.bf16.msra.mxu0 %v422
    %482 = vmatprep.subr.bf16.mxu0 0
    %483 = vmatpush1.bf16.msra.mxu0 %v421
    %484 = vmatprep.subr.bf16.mxu0 0
    %485 = vmatpush1.bf16.msra.mxu0 %v420
    %486 = vmatprep.subr.bf16.mxu0 0
    %487 = vmatpush1.bf16.msra.mxu0 %v419
    %488 = vmatprep.subr.bf16.mxu0 0
    %489 = vmatpush1.bf16.msra.mxu0 %v418
    %490 = vmatprep.subr.bf16.mxu0 0
    %491 = vmatpush1.bf16.msra.mxu0 %v417
    %492 = vmatprep.subr.bf16.mxu0 0
    %493 = vmatpush1.bf16.msra.mxu0 %v416
    %494 = vmatprep.subr.bf16.mxu0 0
    %495 = vmatpush2.bf16.msra.mxu0 0
    %496 = vmatprep.subr.bf16.mxu0 0
    %497 = vmatpush2.bf16.msra.mxu0 0
    %498 = vmatprep.subr.bf16.mxu0 0
    %499 = vmatpush2.bf16.msra.mxu0 0
    %500 = vmatprep.subr.bf16.mxu0 0
    %501 = vmatpush2.bf16.msra.mxu0 0
    %502 = vmatprep.subr.bf16.mxu0 0
    %503 = vmatpush2.bf16.msra.mxu0 0
    %504 = vmatprep.subr.bf16.mxu0 0
    %505 = vmatpush2.bf16.msra.mxu0 0
    %506 = vmatprep.subr.bf16.mxu0 0
    %507 = vmatpush2.bf16.msra.mxu0 0
    %508 = vmatprep.subr.bf16.mxu0 0
    %509 = vmatpush2.bf16.msra.mxu0 0
    %510 = vmatprep.mubr.bf16.mxu0 0
    %511 = vmatmul.mubr.bf16.gmra.mxu0 %v477
    %v512 = vpop.f32.mrf.mxu0
    %v513 = vadd.f32 0.0, %v512
    %v514 = vpop.f32.mrf.mxu0
    %v515 = vpop.f32.mrf.mxu0
    %v516 = vpop.f32.mrf.mxu0
    %517 = vdwg.mxu0
    %v518 = vadd.f32 %v476, %v513
    %v519 = vtanh.pop %v518
    %520 = vst [vmem:[%s475] sm:$0xff] %v519
    %s521 = scalar_lea.vmem [#allocation3], 16
    %v522 = vld [vmem:[%s521] sm:$0xff]
    %v523 = vpack.c.bf16 %v519, %v519
    %524 = vmatprep.subr.bf16.mxu0 0
    %525 = vmatpush1.bf16.msra.mxu0 %v423
    %526 = vmatprep.subr.bf16.mxu0 0
    %527 = vmatpush1.bf16.msra.mxu0 %v422
    %528 = vmatprep.subr.bf16.mxu0 0
    %529 = vmatpush1.bf16.msra.mxu0 %v421
    %530 = vmatprep.subr.bf16.mxu0 0
    %531 = vmatpush1.bf16.msra.mxu0 %v420
    %532 = vmatprep.subr.bf16.mxu0 0
    %533 = vmatpush1.bf16.msra.mxu0 %v419
    %534 = vmatprep.subr.bf16.mxu0 0
    %535 = vmatpush1.bf16.msra.mxu0 %v418
    %536 = vmatprep.subr.bf16.mxu0 0
    %537 = vmatpush1.bf16.msra.mxu0 %v417
    %538 = vmatprep.subr.bf16.mxu0 0
    %539 = vmatpush1.bf16.msra.mxu0 %v416
    %540 = vmatprep.subr.bf16.mxu0 0
    %541 = vmatpush2.bf16.msra.mxu0 0
    %542 = vmatprep.subr.bf16.mxu0 0
    %543 = vmatpush2.bf16.msra.mxu0 0
    %544 = vmatprep.subr.bf16.mxu0 0
    %545 = vmatpush2.bf16.msra.mxu0 0
    %546 = vmatprep.subr.bf16.mxu0 0
    %547 = vmatpush2.bf16.msra.mxu0 0
    %548 = vmatprep.subr.bf16.mxu0 0
    %549 = vmatpush2.bf16.msra.mxu0 0
    %550 = vmatprep.subr.bf16.mxu0 0
    %551 = vmatpush2.bf16.msra.mxu0 0
    %552 = vmatprep.subr.bf16.mxu0 0
    %553 = vmatpush2.bf16.msra.mxu0 0
    %554 = vmatprep.subr.bf16.mxu0 0
    %555 = vmatpush2.bf16.msra.mxu0 0
    %556 = vmatprep.mubr.bf16.mxu0 0
    %557 = vmatmul.mubr.bf16.gmra.mxu0 %v523
    %v558 = vpop.f32.mrf.mxu0
    %v559 = vadd.f32 0.0, %v558
    %v560 = vpop.f32.mrf.mxu0
    %v561 = vpop.f32.mrf.mxu0
    %v562 = vpop.f32.mrf.mxu0
    %563 = vdwg.mxu0
    %v564 = vadd.f32 %v522, %v559
    %v565 = vtanh.pop %v564
    %566 = vst [vmem:[%s521] sm:$0xff] %v565
    %s567 = scalar_lea.vmem [#allocation3], 24
    %v568 = vld [vmem:[%s567] sm:$0xff]
    %v569 = vpack.c.bf16 %v565, %v565
    %570 = vmatprep.subr.bf16.mxu0 0
    %571 = vmatpush1.bf16.msra.mxu0 %v423
    %572 = vmatprep.subr.bf16.mxu0 0
    %573 = vmatpush1.bf16.msra.mxu0 %v422
    %574 = vmatprep.subr.bf16.mxu0 0
    %575 = vmatpush1.bf16.msra.mxu0 %v421
    %576 = vmatprep.subr.bf16.mxu0 0
    %577 = vmatpush1.bf16.msra.mxu0 %v420
    %578 = vmatprep.subr.bf16.mxu0 0
    %579 = vmatpush1.bf16.msra.mxu0 %v419
    %580 = vmatprep.subr.bf16.mxu0 0
    %581 = vmatpush1.bf16.msra.mxu0 %v418
    %582 = vmatprep.subr.bf16.mxu0 0
    %583 = vmatpush1.bf16.msra.mxu0 %v417
    %584 = vmatprep.subr.bf16.mxu0 0
    %585 = vmatpush1.bf16.msra.mxu0 %v416
    %586 = vmatprep.subr.bf16.mxu0 0
    %587 = vmatpush2.bf16.msra.mxu0 0
    %588 = vmatprep.subr.bf16.mxu0 0
    %589 = vmatpush2.bf16.msra.mxu0 0
    %590 = vmatprep.subr.bf16.mxu0 0
    %591 = vmatpush2.bf16.msra.mxu0 0
    %592 = vmatprep.subr.bf16.mxu0 0
    %593 = vmatpush2.bf16.msra.mxu0 0
    %594 = vmatprep.subr.bf16.mxu0 0
    %595 = vmatpush2.bf16.msra.mxu0 0
    %596 = vmatprep.subr.bf16.mxu0 0
    %597 = vmatpush2.bf16.msra.mxu0 0
    %598 = vmatprep.subr.bf16.mxu0 0
    %599 = vmatpush2.bf16.msra.mxu0 0
    %600 = vmatprep.subr.bf16.mxu0 0
    %601 = vmatpush2.bf16.msra.mxu0 0
    %602 = vmatprep.mubr.bf16.mxu0 0
    %603 = vmatmul.mubr.bf16.gmra.mxu0 %v569
    %v604 = vpop.f32.mrf.mxu0
    %v605 = vadd.f32 0.0, %v604
    %v606 = vpop.f32.mrf.mxu0
    %v607 = vpop.f32.mrf.mxu0
    %v608 = vpop.f32.mrf.mxu0
    %609 = vdwg.mxu0
    %v610 = vadd.f32 %v568, %v605
    %v611 = vtanh.pop %v610
    %612 = vst [vmem:[%s567] sm:$0xff] %v611
    %s613 = scalar_lea.vmem [#allocation3], 32
    %v614 = vld [vmem:[%s613] sm:$0xff]
    %v615 = vpack.c.bf16 %v611, %v611
    %616 = vmatprep.subr.bf16.mxu0 0
    %617 = vmatpush1.bf16.msra.mxu0 %v423
    %618 = vmatprep.subr.bf16.mxu0 0
    %619 = vmatpush1.bf16.msra.mxu0 %v422
    %620 = vmatprep.subr.bf16.mxu0 0
    %621 = vmatpush1.bf16.msra.mxu0 %v421
    %622 = vmatprep.subr.bf16.mxu0 0
    %623 = vmatpush1.bf16.msra.mxu0 %v420
    %624 = vmatprep.subr.bf16.mxu0 0
    %625 = vmatpush1.bf16.msra.mxu0 %v419
    %626 = vmatprep.subr.bf16.mxu0 0
    %627 = vmatpush1.bf16.msra.mxu0 %v418
    %628 = vmatprep.subr.bf16.mxu0 0
    %629 = vmatpush1.bf16.msra.mxu0 %v417
    %630 = vmatprep.subr.bf16.mxu0 0
    %631 = vmatpush1.bf16.msra.mxu0 %v416
    %632 = vmatprep.subr.bf16.mxu0 0
    %633 = vmatpush2.bf16.msra.mxu0 0
    %634 = vmatprep.subr.bf16.mxu0 0
    %635 = vmatpush2.bf16.msra.mxu0 0
    %636 = vmatprep.subr.bf16.mxu0 0
    %637 = vmatpush2.bf16.msra.mxu0 0
    %638 = vmatprep.subr.bf16.mxu0 0
    %639 = vmatpush2.bf16.msra.mxu0 0
    %640 = vmatprep.subr.bf16.mxu0 0
    %641 = vmatpush2.bf16.msra.mxu0 0
    %642 = vmatprep.subr.bf16.mxu0 0
    %643 = vmatpush2.bf16.msra.mxu0 0
    %644 = vmatprep.subr.bf16.mxu0 0
    %645 = vmatpush2.bf16.msra.mxu0 0
    %646 = vmatprep.subr.bf16.mxu0 0
    %647 = vmatpush2.bf16.msra.mxu0 0
    %648 = vmatprep.mubr.bf16.mxu0 0
    %649 = vmatmul.mubr.bf16.gmra.mxu0 %v615
    %v650 = vpop.f32.mrf.mxu0
    %v651 = vadd.f32 0.0, %v650
    %v652 = vpop.f32.mrf.mxu0
    %v653 = vpop.f32.mrf.mxu0
    %v654 = vpop.f32.mrf.mxu0
    %655 = vdwg.mxu0
    %v656 = vadd.f32 %v614, %v651
    %v657 = vtanh.pop %v656
    %658 = vst [vmem:[%s613] sm:$0xff] %v657
    %s659 = scalar_lea.vmem [#allocation3], 40
    %v660 = vld [vmem:[%s659] sm:$0xff]
    %v661 = vpack.c.bf16 %v657, %v657
    %662 = vmatprep.subr.bf16.mxu0 0
    %663 = vmatpush1.bf16.msra.mxu0 %v423
    %664 = vmatprep.subr.bf16.mxu0 0
    %665 = vmatpush1.bf16.msra.mxu0 %v422
    %666 = vmatprep.subr.bf16.mxu0 0
    %667 = vmatpush1.bf16.msra.mxu0 %v421
    %668 = vmatprep.subr.bf16.mxu0 0
    %669 = vmatpush1.bf16.msra.mxu0 %v420
    %670 = vmatprep.subr.bf16.mxu0 0
    %671 = vmatpush1.bf16.msra.mxu0 %v419
    %672 = vmatprep.subr.bf16.mxu0 0
    %673 = vmatpush1.bf16.msra.mxu0 %v418
    %674 = vmatprep.subr.bf16.mxu0 0
    %675 = vmatpush1.bf16.msra.mxu0 %v417
    %676 = vmatprep.subr.bf16.mxu0 0
    %677 = vmatpush1.bf16.msra.mxu0 %v416
    %678 = vmatprep.subr.bf16.mxu0 0
    %679 = vmatpush2.bf16.msra.mxu0 0
    %680 = vmatprep.subr.bf16.mxu0 0
    %681 = vmatpush2.bf16.msra.mxu0 0
    %682 = vmatprep.subr.bf16.mxu0 0
    %683 = vmatpush2.bf16.msra.mxu0 0
    %684 = vmatprep.subr.bf16.mxu0 0
    %685 = vmatpush2.bf16.msra.mxu0 0
    %686 = vmatprep.subr.bf16.mxu0 0
    %687 = vmatpush2.bf16.msra.mxu0 0
    %688 = vmatprep.subr.bf16.mxu0 0
    %689 = vmatpush2.bf16.msra.mxu0 0
    %690 = vmatprep.subr.bf16.mxu0 0
    %691 = vmatpush2.bf16.msra.mxu0 0
    %692 = vmatprep.subr.bf16.mxu0 0
    %693 = vmatpush2.bf16.msra.mxu0 0
    %694 = vmatprep.mubr.bf16.mxu0 0
    %695 = vmatmul.mubr.bf16.gmra.mxu0 %v661
    %v696 = vpop.f32.mrf.mxu0
    %v697 = vadd.f32 0.0, %v696
    %v698 = vpop.f32.mrf.mxu0
    %v699 = vpop.f32.mrf.mxu0
    %v700 = vpop.f32.mrf.mxu0
    %701 = vdwg.mxu0
    %v702 = vadd.f32 %v660, %v697
    %v703 = vtanh.pop %v702
    %704 = vst [vmem:[%s659] sm:$0xff] %v703
    %s705 = scalar_lea.vmem [#allocation3], 48
    %v706 = vld [vmem:[%s705] sm:$0xff]
    %v707 = vpack.c.bf16 %v703, %v703
    %708 = vmatprep.subr.bf16.mxu0 0
    %709 = vmatpush1.bf16.msra.mxu0 %v423
    %710 = vmatprep.subr.bf16.mxu0 0
    %711 = vmatpush1.bf16.msra.mxu0 %v422
    %712 = vmatprep.subr.bf16.mxu0 0
    %713 = vmatpush1.bf16.msra.mxu0 %v421
    %714 = vmatprep.subr.bf16.mxu0 0
    %715 = vmatpush1.bf16.msra.mxu0 %v420
    %716 = vmatprep.subr.bf16.mxu0 0
    %717 = vmatpush1.bf16.msra.mxu0 %v419
    %718 = vmatprep.subr.bf16.mxu0 0
    %719 = vmatpush1.bf16.msra.mxu0 %v418
    %720 = vmatprep.subr.bf16.mxu0 0
    %721 = vmatpush1.bf16.msra.mxu0 %v417
    %722 = vmatprep.subr.bf16.mxu0 0
    %723 = vmatpush1.bf16.msra.mxu0 %v416
    %724 = vmatprep.subr.bf16.mxu0 0
    %725 = vmatpush2.bf16.msra.mxu0 0
    %726 = vmatprep.subr.bf16.mxu0 0
    %727 = vmatpush2.bf16.msra.mxu0 0
    %728 = vmatprep.subr.bf16.mxu0 0
    %729 = vmatpush2.bf16.msra.mxu0 0
    %730 = vmatprep.subr.bf16.mxu0 0
    %731 = vmatpush2.bf16.msra.mxu0 0
    %732 = vmatprep.subr.bf16.mxu0 0
    %733 = vmatpush2.bf16.msra.mxu0 0
    %734 = vmatprep.subr.bf16.mxu0 0
    %735 = vmatpush2.bf16.msra.mxu0 0
    %736 = vmatprep.subr.bf16.mxu0 0
    %737 = vmatpush2.bf16.msra.mxu0 0
    %738 = vmatprep.subr.bf16.mxu0 0
    %739 = vmatpush2.bf16.msra.mxu0 0
    %740 = vmatprep.mubr.bf16.mxu0 0
    %741 = vmatmul.mubr.bf16.gmra.mxu0 %v707
    %v742 = vpop.f32.mrf.mxu0
    %v743 = vadd.f32 0.0, %v742
    %v744 = vpop.f32.mrf.mxu0
    %v745 = vpop.f32.mrf.mxu0
    %v746 = vpop.f32.mrf.mxu0
    %747 = vdwg.mxu0
    %v748 = vadd.f32 %v706, %v743
    %v749 = vtanh.pop %v748
    %750 = vst [vmem:[%s705] sm:$0xff] %v749
    %s751 = scalar_lea.vmem [#allocation3], 56
    %v752 = vld [vmem:[%s751] sm:$0xff]
    %v753 = vpack.c.bf16 %v749, %v749
    %754 = vmatprep.subr.bf16.mxu0 0
    %755 = vmatpush1.bf16.msra.mxu0 %v423
    %756 = vmatprep.subr.bf16.mxu0 0
    %757 = vmatpush1.bf16.msra.mxu0 %v422
    %758 = vmatprep.subr.bf16.mxu0 0
    %759 = vmatpush1.bf16.msra.mxu0 %v421
    %760 = vmatprep.subr.bf16.mxu0 0
    %761 = vmatpush1.bf16.msra.mxu0 %v420
    %762 = vmatprep.subr.bf16.mxu0 0
    %763 = vmatpush1.bf16.msra.mxu0 %v419
    %764 = vmatprep.subr.bf16.mxu0 0
    %765 = vmatpush1.bf16.msra.mxu0 %v418
    %766 = vmatprep.subr.bf16.mxu0 0
    %767 = vmatpush1.bf16.msra.mxu0 %v417
    %768 = vmatprep.subr.bf16.mxu0 0
    %769 = vmatpush1.bf16.msra.mxu0 %v416
    %770 = vmatprep.subr.bf16.mxu0 0
    %771 = vmatpush2.bf16.msra.mxu0 0
    %772 = vmatprep.subr.bf16.mxu0 0
    %773 = vmatpush2.bf16.msra.mxu0 0
    %774 = vmatprep.subr.bf16.mxu0 0
    %775 = vmatpush2.bf16.msra.mxu0 0
    %776 = vmatprep.subr.bf16.mxu0 0
    %777 = vmatpush2.bf16.msra.mxu0 0
    %778 = vmatprep.subr.bf16.mxu0 0
    %779 = vmatpush2.bf16.msra.mxu0 0
    %780 = vmatprep.subr.bf16.mxu0 0
    %781 = vmatpush2.bf16.msra.mxu0 0
    %782 = vmatprep.subr.bf16.mxu0 0
    %783 = vmatpush2.bf16.msra.mxu0 0
    %784 = vmatprep.subr.bf16.mxu0 0
    %785 = vmatpush2.bf16.msra.mxu0 0
    %786 = vmatprep.mubr.bf16.mxu0 0
    %787 = vmatmul.mubr.bf16.gmra.mxu0 %v753
    %v788 = vpop.f32.mrf.mxu0
    %v789 = vadd.f32 0.0, %v788
    %v790 = vpop.f32.mrf.mxu0
    %v791 = vpop.f32.mrf.mxu0
    %v792 = vpop.f32.mrf.mxu0
    %793 = vdwg.mxu0
    %v794 = vadd.f32 %v752, %v789
    %v795 = vtanh.pop %v794
    %796 = vst [vmem:[%s751] sm:$0xff] %v795
    %797 = vst [vmem:[#allocation2] sm:$0xff] %v795
    %v798 = vld [vmem:[#allocation3] sm:$0xff]
    %v799 = vld [vmem:[#allocation3 + $0x8] sm:$0xff]
    %v800 = vld [vmem:[#allocation3 + $0x10] sm:$0xff]
    %v801 = vld [vmem:[#allocation3 + $0x18] sm:$0xff]
    %v802 = vld [vmem:[#allocation3 + $0x20] sm:$0xff]
    %v803 = vld [vmem:[#allocation3 + $0x28] sm:$0xff]
    %v804 = vld [vmem:[#allocation3 + $0x30] sm:$0xff]
    %v805 = vld [vmem:[#allocation3 + $0x38] sm:$0xff]
    %v806 = vcombine.low %v798, %v800
    %v807 = vcombine.high %v798, %v800
    %v809 = vunpack.c.l.s4 1983009808
    %v810 = vunpack.c.0.s8 %v809
    %v811 = vlaneseq
    %v812 = vshrl.u32 %v811, 7
    %v813 = vsub.s32 %v810, %v812
    %v814 = vrot.slane %v806, %v813
    %v816 = vunpack.c.l.s4 1983009808
    %v817 = vunpack.c.0.s8 %v816
    %v818 = vlaneseq
    %v819 = vshrl.u32 %v818, 7
    %v820 = vsub.s32 %v817, %v819
    %v821 = vrot.slane %v807, %v820
    %v822 = vcombine.low %v799, %v801
    %v823 = vcombine.high %v799, %v801
    %v825 = vunpack.c.l.s4 1983009808
    %v826 = vunpack.c.0.s8 %v825
    %v827 = vlaneseq
    %v828 = vshrl.u32 %v827, 7
    %v829 = vsub.s32 %v826, %v828
    %v830 = vrot.slane %v822, %v829
    %v832 = vunpack.c.l.s4 1983009808
    %v833 = vunpack.c.0.s8 %v832
    %v834 = vlaneseq
    %v835 = vshrl.u32 %v834, 7
    %v836 = vsub.s32 %v833, %v835
    %v837 = vrot.slane %v823, %v836
    %v838 = vcombine.low %v802, %v804
    %v839 = vcombine.high %v802, %v804
    %v841 = vunpack.c.l.s4 1983009808
    %v842 = vunpack.c.0.s8 %v841
    %v843 = vlaneseq
    %v844 = vshrl.u32 %v843, 7
    %v845 = vsub.s32 %v842, %v844
    %v846 = vrot.slane %v838, %v845
    %v848 = vunpack.c.l.s4 1983009808
    %v849 = vunpack.c.0.s8 %v848
    %v850 = vlaneseq
    %v851 = vshrl.u32 %v850, 7
    %v852 = vsub.s32 %v849, %v851
    %v853 = vrot.slane %v839, %v852
    %v854 = vcombine.low %v803, %v805
    %v855 = vcombine.high %v803, %v805
    %v857 = vunpack.c.l.s4 1983009808
    %v858 = vunpack.c.0.s8 %v857
    %v859 = vlaneseq
    %v860 = vshrl.u32 %v859, 7
    %v861 = vsub.s32 %v858, %v860
    %v862 = vrot.slane %v854, %v861
    %v864 = vunpack.c.l.s4 1983009808
    %v865 = vunpack.c.0.s8 %v864
    %v866 = vlaneseq
    %v867 = vshrl.u32 %v866, 7
    %v868 = vsub.s32 %v865, %v867
    %v869 = vrot.slane %v855, %v868
    %v870 = vcombine.low %v814, %v830
    %v871 = vcombine.high %v814, %v830
    %v873 = vunpack.c.l.s4 1934713408
    %v874 = vunpack.c.0.s8 %v873
    %v875 = vlaneseq
    %v876 = vshrl.u32 %v875, 7
    %v877 = vsub.s32 %v874, %v876
    %v878 = vrot.slane %v870, %v877
    %v880 = vunpack.c.l.s4 1934713408
    %v881 = vunpack.c.0.s8 %v880
    %v882 = vlaneseq
    %v883 = vshrl.u32 %v882, 7
    %v884 = vsub.s32 %v881, %v883
    %v885 = vrot.slane %v871, %v884
    %v886 = vcombine.low %v821, %v837
    %v887 = vcombine.high %v821, %v837
    %v889 = vunpack.c.l.s4 1934713408
    %v890 = vunpack.c.0.s8 %v889
    %v891 = vlaneseq
    %v892 = vshrl.u32 %v891, 7
    %v893 = vsub.s32 %v890, %v892
    %v894 = vrot.slane %v886, %v893
    %v896 = vunpack.c.l.s4 1934713408
    %v897 = vunpack.c.0.s8 %v896
    %v898 = vlaneseq
    %v899 = vshrl.u32 %v898, 7
    %v900 = vsub.s32 %v897, %v899
    %v901 = vrot.slane %v887, %v900
    %v902 = vcombine.low %v846, %v862
    %v903 = vcombine.high %v846, %v862
    %v905 = vunpack.c.l.s4 1934713408
    %v906 = vunpack.c.0.s8 %v905
    %v907 = vlaneseq
    %v908 = vshrl.u32 %v907, 7
    %v909 = vsub.s32 %v906, %v908
    %v910 = vrot.slane %v902, %v909
    %v912 = vunpack.c.l.s4 1934713408
    %v913 = vunpack.c.0.s8 %v912
    %v914 = vlaneseq
    %v915 = vshrl.u32 %v914, 7
    %v916 = vsub.s32 %v913, %v915
    %v917 = vrot.slane %v903, %v916
    %v918 = vcombine.low %v853, %v869
    %v919 = vcombine.high %v853, %v869
    %v921 = vunpack.c.l.s4 1934713408
    %v922 = vunpack.c.0.s8 %v921
    %v923 = vlaneseq
    %v924 = vshrl.u32 %v923, 7
    %v925 = vsub.s32 %v922, %v924
    %v926 = vrot.slane %v918, %v925
    %v928 = vunpack.c.l.s4 1934713408
    %v929 = vunpack.c.0.s8 %v928
    %v930 = vlaneseq
    %v931 = vshrl.u32 %v930, 7
    %v932 = vsub.s32 %v929, %v931
    %v933 = vrot.slane %v919, %v932
    %v934 = vcombine.low %v878, %v910
    %v935 = vcombine.high %v878, %v910
    %v936 = vcombine.low %v885, %v917
    %v937 = vcombine.high %v885, %v917
    %v938 = vcombine.low %v894, %v926
    %v939 = vcombine.high %v894, %v926
    %v940 = vcombine.low %v901, %v933
    %v941 = vcombine.high %v901, %v933
    %942 = vst [vmem:[#allocation10] sm:$0xff] %v934
    %943 = vst [vmem:[#allocation10 + $0x8] sm:$0xff] %v935
    %944 = vst [vmem:[#allocation10 + $0x10] sm:$0xff] %v936
    %945 = vst [vmem:[#allocation10 + $0x18] sm:$0xff] %v937
    %946 = vst [vmem:[#allocation10 + $0x20] sm:$0xff] %v938
    %947 = vst [vmem:[#allocation10 + $0x28] sm:$0xff] %v939
    %948 = vst [vmem:[#allocation10 + $0x30] sm:$0xff] %v940
    %949 = vst [vmem:[#allocation10 + $0x38] sm:$0xff] %v941
    // Predicated region
    $region34: #{tpu_custom_call.1} parent=1 // pred_check
      _
    $region35: #{tpu_custom_call.1} parent=1 // pred_check_branch
      %951 = sbr.rel (0) target = $region37
    $region36: #{tpu_custom_call.1} parent=1 // pred_region
      %s953 = ssub.s32 1024, 1024
      %954 = vsyncadd [#allocation6], %s953
      %s955 = sshll.u32 [#allocation10], 4
      %s956 = int_to_ptr.vmem [resolvable:$true] %s955
      %961 = dma.vmem_to_hbm [thread:$0]  %s956, 1024, %s4, [#allocation6], 128, 128, 8
    $region37: #{tpu_custom_call.1} parent=1 // pred_fallthru
      _
    // Predicated region
    $region38: #{tpu_custom_call.1} parent=1 // pred_check
      _
    $region39: #{tpu_custom_call.1} parent=1 // pred_check_branch
      %963 = sbr.rel (0) target = $region41
    $region40: #{tpu_custom_call.1} parent=1 // pred_region
      %964 = dma.done [#allocation6], 1024
    $region41: #{tpu_custom_call.1} parent=1 // pred_fallthru
      _
    %965 = vsyncpa [#allocation5], 1
    %966 = vsyncpa [#allocation8], 1
    %967 = vsyncpa [#allocation6], 1

// kernel: tpu_custom_call.1
$region0: #{tpu_custom_call.1}
  #allocation0 [shape = 'u32[]', space=smem, size = 0x4, offset = 0x4, fixed_abs, tag = 'smem constant byte address 0x4 - core index']
  #allocation1 [shape = 'u32[144,128]{1,0:T(1,128)}', space=vmem, size = 0x12000, scoped, tag = 'internal scratch']
  #allocation2 [shape = 'f32[8,128]{1,0:T(8,128)}', space=vmem, size = 0x1000, scoped, tag = 'scratch operand']
  %s0 = inlined_call_operand.hbm [shape: bf16[8,8,128], index: 0, kind: input, shape index: {}]
  %s1 = inlined_call_operand.hbm [shape: bf16[128,128], index: 1, kind: input, shape index: {}]
  %s2 = inlined_call_operand.hbm [shape: f32[8,8,128], index: 2, kind: output, shape index: {}]
  %s3 = sld [smem:[#allocation0]]
  $region30: #{tpu_custom_call.1} parent=0
    _
  %s5 = ssub.s32 1, %s3
  %s6 = scalar_select 0, %s5, %s3
  $region1: #{tpu_custom_call.1} parent=0
    #allocation3 [shape = 'u8[16384]{0}', space=vmem, size = 0x4000, scoped, tag = 'input window, operand 0, single buffered']
    #allocation4 [shape = 's32[1]{0}', space=sflag, size = 0x4, scoped, tag = 'scoped memory for tpu_custom_call.1']
    #allocation5 [shape = 's32[1]{0}', space=sflag, size = 0x4, scoped, tag = 'scoped memory for tpu_custom_call.1']
    #allocation6 [shape = 'u8[32768]{0}', space=vmem, size = 0x8000, scoped, tag = 'input window, operand 1, single buffered']
    #allocation7 [shape = 's32[1]{0}', space=sflag, size = 0x4, scoped, tag = 'scoped memory for tpu_custom_call.1']
    #allocation8 [shape = 'u8[32768]{0}', space=vmem, size = 0x8000, scoped, tag = 'output window, operand 0, single buffered']
    %7 = vsyncpa [#allocation4], 0
    %8 = vsyncpa [#allocation7], 0
    %9 = vsyncpa [#allocation5], 0
    // Predicated region
    $region2: #{tpu_custom_call.1} parent=1 // pred_check
      _
    $region3: #{tpu_custom_call.1} parent=1 // pred_check_branch
      %11 = sbr.rel (0) target = $region5
    $region4: #{tpu_custom_call.1} parent=1 // pred_region
      %s13 = ssub.s32 512, 512
      %14 = vsyncadd [#allocation4], %s13
      %s15 = sshll.u32 [#allocation3], 4
      %s16 = int_to_ptr.vmem [resolvable:$true] %s15
      %21 = dma.hbm_to_vmem [thread:$0]  %s0, 512, %s16, [#allocation4], 64, 64, 4
    $region5: #{tpu_custom_call.1} parent=1 // pred_fallthru
      _
    // Predicated region
    $region6: #{tpu_custom_call.1} parent=1 // pred_check
      _
    $region7: #{tpu_custom_call.1} parent=1 // pred_check_branch
      %23 = sbr.rel (0) target = $region9
    $region8: #{tpu_custom_call.1} parent=1 // pred_region
      %s25 = ssub.s32 1024, 1024
      %26 = vsyncadd [#allocation7], %s25
      %s27 = sshll.u32 [#allocation6], 4
      %s28 = int_to_ptr.vmem [resolvable:$true] %s27
      %33 = dma.hbm_to_vmem [thread:$0]  %s1, 1024, %s28, [#allocation7], 64, 64, 4
    $region9: #{tpu_custom_call.1} parent=1 // pred_fallthru
      _
    // Predicated region
    $region10: #{tpu_custom_call.1} parent=1 // pred_check
      _
    $region11: #{tpu_custom_call.1} parent=1 // pred_check_branch
      %35 = sbr.rel (0) target = $region13
    $region12: #{tpu_custom_call.1} parent=1 // pred_region
      %36 = dma.done [#allocation4], 512
    $region13: #{tpu_custom_call.1} parent=1 // pred_fallthru
      _
    // Predicated region
    $region14: #{tpu_custom_call.1} parent=1 // pred_check
      _
    $region15: #{tpu_custom_call.1} parent=1 // pred_check_branch
      %38 = sbr.rel (0) target = $region17
    $region16: #{tpu_custom_call.1} parent=1 // pred_region
      %39 = dma.done [#allocation7], 1024
    $region17: #{tpu_custom_call.1} parent=1 // pred_fallthru
      _
    %p41 = scmp.eq.s32.totalorder 0, 0
    // Predicated region
    $region18: #{tpu_custom_call.1} parent=1 // pred_check
      %p42 = pneg %p41
    $region19: #{tpu_custom_call.1} parent=1 // pred_check_branch
      %44 = sbr.rel (%p42) target = $region21
    $region20: #{tpu_custom_call.1} parent=1 // pred_region
      %45 = vst [vmem:[#allocation2] sm:$0xff] 0.0
    $region21: #{tpu_custom_call.1} parent=1 // pred_fallthru
      _
    %v46 = vld [vmem:[#allocation6] sm:$0xf]
    %v47 = vld [vmem:[#allocation6 + $0x4] sm:$0xf]
    %v48 = vld [vmem:[#allocation6 + $0x8] sm:$0xf]
    %v49 = vld [vmem:[#allocation6 + $0xc] sm:$0xf]
    %v50 = vld [vmem:[#allocation6 + $0x10] sm:$0xf]
    %v51 = vld [vmem:[#allocation6 + $0x14] sm:$0xf]
    %v52 = vld [vmem:[#allocation6 + $0x18] sm:$0xf]
    %v53 = vld [vmem:[#allocation6 + $0x1c] sm:$0xf]
    %v54 = vld [vmem:[#allocation6 + $0x20] sm:$0xf]
    %v55 = vld [vmem:[#allocation6 + $0x24] sm:$0xf]
    %v56 = vld [vmem:[#allocation6 + $0x28] sm:$0xf]
    %v57 = vld [vmem:[#allocation6 + $0x2c] sm:$0xf]
    %v58 = vld [vmem:[#allocation6 + $0x30] sm:$0xf]
    %v59 = vld [vmem:[#allocation6 + $0x34] sm:$0xf]
    %v60 = vld [vmem:[#allocation6 + $0x38] sm:$0xf]
    %v61 = vld [vmem:[#allocation6 + $0x3c] sm:$0xf]
    %v62 = vld [vmem:[#allocation2] sm:$0xff]
    %v63 = vld [vmem:[#allocation3] sm:$0xf]
    %v64 = vunpack.c.l.bf16 %v63
    %v65 = vpack.c.bf16 %v62, %v62
    %v82 = vunpack.c.l.b16 %v46
    %v83 = vunpack.c.l.b16 %v47
    %v84 = vunpack.c.l.b16 %v48
    %v85 = vunpack.c.l.b16 %v49
    %v86 = vunpack.c.l.b16 %v50
    %v87 = vunpack.c.l.b16 %v51
    %v88 = vunpack.c.l.b16 %v52
    %v89 = vunpack.c.l.b16 %v53
    %v90 = vunpack.c.l.b16 %v54
    %v91 = vunpack.c.l.b16 %v55
    %v92 = vunpack.c.l.b16 %v56
    %v93 = vunpack.c.l.b16 %v57
    %v94 = vunpack.c.l.b16 %v58
    %v95 = vunpack.c.l.b16 %v59
    %v96 = vunpack.c.l.b16 %v60
    %v97 = vunpack.c.l.b16 %v61
    %v98 = vpack.c.b16 %v83, %v82
    %v99 = vpack.c.b16 %v85, %v84
    %v100 = vpack.c.b16 %v87, %v86
    %v101 = vpack.c.b16 %v89, %v88
    %v102 = vpack.c.b16 %v91, %v90
    %v103 = vpack.c.b16 %v93, %v92
    %v104 = vpack.c.b16 %v95, %v94
    %v105 = vpack.c.b16 %v97, %v96
    %114 = vmatprep.subr.bf16.mxu0 0
    %115 = vmatpush1.bf16.msra.mxu0 %v105
    %116 = vmatprep.subr.bf16.mxu0 0
    %117 = vmatpush1.bf16.msra.mxu0 %v104
    %118 = vmatprep.subr.bf16.mxu0 0
    %119 = vmatpush1.bf16.msra.mxu0 %v103
    %120 = vmatprep.subr.bf16.mxu0 0
    %121 = vmatpush1.bf16.msra.mxu0 %v102
    %122 = vmatprep.subr.bf16.mxu0 0
    %123 = vmatpush1.bf16.msra.mxu0 %v101
    %124 = vmatprep.subr.bf16.mxu0 0
    %125 = vmatpush1.bf16.msra.mxu0 %v100
    %126 = vmatprep.subr.bf16.mxu0 0
    %127 = vmatpush1.bf16.msra.mxu0 %v99
    %128 = vmatprep.subr.bf16.mxu0 0
    %129 = vmatpush1.bf16.msra.mxu0 %v98
    %130 = vmatprep.subr.bf16.mxu0 0
    %131 = vmatpush2.bf16.msra.mxu0 0
    %132 = vmatprep.subr.bf16.mxu0 0
    %133 = vmatpush2.bf16.msra.mxu0 0
    %134 = vmatprep.subr.bf16.mxu0 0
    %135 = vmatpush2.bf16.msra.mxu0 0
    %136 = vmatprep.subr.bf16.mxu0 0
    %137 = vmatpush2.bf16.msra.mxu0 0
    %138 = vmatprep.subr.bf16.mxu0 0
    %139 = vmatpush2.bf16.msra.mxu0 0
    %140 = vmatprep.subr.bf16.mxu0 0
    %141 = vmatpush2.bf16.msra.mxu0 0
    %142 = vmatprep.subr.bf16.mxu0 0
    %143 = vmatpush2.bf16.msra.mxu0 0
    %144 = vmatprep.subr.bf16.mxu0 0
    %145 = vmatpush2.bf16.msra.mxu0 0
    %146 = vmatprep.mubr.bf16.mxu0 0
    %147 = vmatmul.mubr.bf16.gmra.mxu0 %v65
    %v148 = vpop.f32.mrf.mxu0
    %v149 = vadd.f32 0.0, %v148
    %v150 = vpop.f32.mrf.mxu0
    %v151 = vpop.f32.mrf.mxu0
    %v152 = vpop.f32.mrf.mxu0
    %153 = vdwg.mxu0
    %v154 = vadd.f32 %v64, %v149
    %v155 = vtanh.pop %v154
    %156 = vst [vmem:[#allocation8] sm:$0xff] %v155
    %s157 = scalar_lea.vmem [#allocation3], 4
    %v158 = vld [vmem:[%s157] sm:$0xf]
    %v159 = vunpack.c.l.bf16 %v158
    %v160 = vpack.c.bf16 %v155, %v155
    %161 = vmatprep.subr.bf16.mxu0 0
    %162 = vmatpush1.bf16.msra.mxu0 %v105
    %163 = vmatprep.subr.bf16.mxu0 0
    %164 = vmatpush1.bf16.msra.mxu0 %v104
    %165 = vmatprep.subr.bf16.mxu0 0
    %166 = vmatpush1.bf16.msra.mxu0 %v103
    %167 = vmatprep.subr.bf16.mxu0 0
    %168 = vmatpush1.bf16.msra.mxu0 %v102
    %169 = vmatprep.subr.bf16.mxu0 0
    %170 = vmatpush1.bf16.msra.mxu0 %v101
    %171 = vmatprep.subr.bf16.mxu0 0
    %172 = vmatpush1.bf16.msra.mxu0 %v100
    %173 = vmatprep.subr.bf16.mxu0 0
    %174 = vmatpush1.bf16.msra.mxu0 %v99
    %175 = vmatprep.subr.bf16.mxu0 0
    %176 = vmatpush1.bf16.msra.mxu0 %v98
    %177 = vmatprep.subr.bf16.mxu0 0
    %178 = vmatpush2.bf16.msra.mxu0 0
    %179 = vmatprep.subr.bf16.mxu0 0
    %180 = vmatpush2.bf16.msra.mxu0 0
    %181 = vmatprep.subr.bf16.mxu0 0
    %182 = vmatpush2.bf16.msra.mxu0 0
    %183 = vmatprep.subr.bf16.mxu0 0
    %184 = vmatpush2.bf16.msra.mxu0 0
    %185 = vmatprep.subr.bf16.mxu0 0
    %186 = vmatpush2.bf16.msra.mxu0 0
    %187 = vmatprep.subr.bf16.mxu0 0
    %188 = vmatpush2.bf16.msra.mxu0 0
    %189 = vmatprep.subr.bf16.mxu0 0
    %190 = vmatpush2.bf16.msra.mxu0 0
    %191 = vmatprep.subr.bf16.mxu0 0
    %192 = vmatpush2.bf16.msra.mxu0 0
    %193 = vmatprep.mubr.bf16.mxu0 0
    %194 = vmatmul.mubr.bf16.gmra.mxu0 %v160
    %v195 = vpop.f32.mrf.mxu0
    %v196 = vadd.f32 0.0, %v195
    %v197 = vpop.f32.mrf.mxu0
    %v198 = vpop.f32.mrf.mxu0
    %v199 = vpop.f32.mrf.mxu0
    %200 = vdwg.mxu0
    %v201 = vadd.f32 %v159, %v196
    %v202 = vtanh.pop %v201
    %s203 = scalar_lea.vmem [#allocation8], 8
    %204 = vst [vmem:[%s203] sm:$0xff] %v202
    %s205 = scalar_lea.vmem [#allocation3], 8
    %v206 = vld [vmem:[%s205] sm:$0xf]
    %v207 = vunpack.c.l.bf16 %v206
    %v208 = vpack.c.bf16 %v202, %v202
    %209 = vmatprep.subr.bf16.mxu0 0
    %210 = vmatpush1.bf16.msra.mxu0 %v105
    %211 = vmatprep.subr.bf16.mxu0 0
    %212 = vmatpush1.bf16.msra.mxu0 %v104
    %213 = vmatprep.subr.bf16.mxu0 0
    %214 = vmatpush1.bf16.msra.mxu0 %v103
    %215 = vmatprep.subr.bf16.mxu0 0
    %216 = vmatpush1.bf16.msra.mxu0 %v102
    %217 = vmatprep.subr.bf16.mxu0 0
    %218 = vmatpush1.bf16.msra.mxu0 %v101
    %219 = vmatprep.subr.bf16.mxu0 0
    %220 = vmatpush1.bf16.msra.mxu0 %v100
    %221 = vmatprep.subr.bf16.mxu0 0
    %222 = vmatpush1.bf16.msra.mxu0 %v99
    %223 = vmatprep.subr.bf16.mxu0 0
    %224 = vmatpush1.bf16.msra.mxu0 %v98
    %225 = vmatprep.subr.bf16.mxu0 0
    %226 = vmatpush2.bf16.msra.mxu0 0
    %227 = vmatprep.subr.bf16.mxu0 0
    %228 = vmatpush2.bf16.msra.mxu0 0
    %229 = vmatprep.subr.bf16.mxu0 0
    %230 = vmatpush2.bf16.msra.mxu0 0
    %231 = vmatprep.subr.bf16.mxu0 0
    %232 = vmatpush2.bf16.msra.mxu0 0
    %233 = vmatprep.subr.bf16.mxu0 0
    %234 = vmatpush2.bf16.msra.mxu0 0
    %235 = vmatprep.subr.bf16.mxu0 0
    %236 = vmatpush2.bf16.msra.mxu0 0
    %237 = vmatprep.subr.bf16.mxu0 0
    %238 = vmatpush2.bf16.msra.mxu0 0
    %239 = vmatprep.subr.bf16.mxu0 0
    %240 = vmatpush2.bf16.msra.mxu0 0
    %241 = vmatprep.mubr.bf16.mxu0 0
    %242 = vmatmul.mubr.bf16.gmra.mxu0 %v208
    %v243 = vpop.f32.mrf.mxu0
    %v244 = vadd.f32 0.0, %v243
    %v245 = vpop.f32.mrf.mxu0
    %v246 = vpop.f32.mrf.mxu0
    %v247 = vpop.f32.mrf.mxu0
    %248 = vdwg.mxu0
    %v249 = vadd.f32 %v207, %v244
    %v250 = vtanh.pop %v249
    %s251 = scalar_lea.vmem [#allocation8], 16
    %252 = vst [vmem:[%s251] sm:$0xff] %v250
    %s253 = scalar_lea.vmem [#allocation3], 12
    %v254 = vld [vmem:[%s253] sm:$0xf]
    %v255 = vunpack.c.l.bf16 %v254
    %v256 = vpack.c.bf16 %v250, %v250
    %257 = vmatprep.subr.bf16.mxu0 0
    %258 = vmatpush1.bf16.msra.mxu0 %v105
    %259 = vmatprep.subr.bf16.mxu0 0
    %260 = vmatpush1.bf16.msra.mxu0 %v104
    %261 = vmatprep.subr.bf16.mxu0 0
    %262 = vmatpush1.bf16.msra.mxu0 %v103
    %263 = vmatprep.subr.bf16.mxu0 0
    %264 = vmatpush1.bf16.msra.mxu0 %v102
    %265 = vmatprep.subr.bf16.mxu0 0
    %266 = vmatpush1.bf16.msra.mxu0 %v101
    %267 = vmatprep.subr.bf16.mxu0 0
    %268 = vmatpush1.bf16.msra.mxu0 %v100
    %269 = vmatprep.subr.bf16.mxu0 0
    %270 = vmatpush1.bf16.msra.mxu0 %v99
    %271 = vmatprep.subr.bf16.mxu0 0
    %272 = vmatpush1.bf16.msra.mxu0 %v98
    %273 = vmatprep.subr.bf16.mxu0 0
    %274 = vmatpush2.bf16.msra.mxu0 0
    %275 = vmatprep.subr.bf16.mxu0 0
    %276 = vmatpush2.bf16.msra.mxu0 0
    %277 = vmatprep.subr.bf16.mxu0 0
    %278 = vmatpush2.bf16.msra.mxu0 0
    %279 = vmatprep.subr.bf16.mxu0 0
    %280 = vmatpush2.bf16.msra.mxu0 0
    %281 = vmatprep.subr.bf16.mxu0 0
    %282 = vmatpush2.bf16.msra.mxu0 0
    %283 = vmatprep.subr.bf16.mxu0 0
    %284 = vmatpush2.bf16.msra.mxu0 0
    %285 = vmatprep.subr.bf16.mxu0 0
    %286 = vmatpush2.bf16.msra.mxu0 0
    %287 = vmatprep.subr.bf16.mxu0 0
    %288 = vmatpush2.bf16.msra.mxu0 0
    %289 = vmatprep.mubr.bf16.mxu0 0
    %290 = vmatmul.mubr.bf16.gmra.mxu0 %v256
    %v291 = vpop.f32.mrf.mxu0
    %v292 = vadd.f32 0.0, %v291
    %v293 = vpop.f32.mrf.mxu0
    %v294 = vpop.f32.mrf.mxu0
    %v295 = vpop.f32.mrf.mxu0
    %296 = vdwg.mxu0
    %v297 = vadd.f32 %v255, %v292
    %v298 = vtanh.pop %v297
    %s299 = scalar_lea.vmem [#allocation8], 24
    %300 = vst [vmem:[%s299] sm:$0xff] %v298
    %s301 = scalar_lea.vmem [#allocation3], 16
    %v302 = vld [vmem:[%s301] sm:$0xf]
    %v303 = vunpack.c.l.bf16 %v302
    %v304 = vpack.c.bf16 %v298, %v298
    %305 = vmatprep.subr.bf16.mxu0 0
    %306 = vmatpush1.bf16.msra.mxu0 %v105
    %307 = vmatprep.subr.bf16.mxu0 0
    %308 = vmatpush1.bf16.msra.mxu0 %v104
    %309 = vmatprep.subr.bf16.mxu0 0
    %310 = vmatpush1.bf16.msra.mxu0 %v103
    %311 = vmatprep.subr.bf16.mxu0 0
    %312 = vmatpush1.bf16.msra.mxu0 %v102
    %313 = vmatprep.subr.bf16.mxu0 0
    %314 = vmatpush1.bf16.msra.mxu0 %v101
    %315 = vmatprep.subr.bf16.mxu0 0
    %316 = vmatpush1.bf16.msra.mxu0 %v100
    %317 = vmatprep.subr.bf16.mxu0 0
    %318 = vmatpush1.bf16.msra.mxu0 %v99
    %319 = vmatprep.subr.bf16.mxu0 0
    %320 = vmatpush1.bf16.msra.mxu0 %v98
    %321 = vmatprep.subr.bf16.mxu0 0
    %322 = vmatpush2.bf16.msra.mxu0 0
    %323 = vmatprep.subr.bf16.mxu0 0
    %324 = vmatpush2.bf16.msra.mxu0 0
    %325 = vmatprep.subr.bf16.mxu0 0
    %326 = vmatpush2.bf16.msra.mxu0 0
    %327 = vmatprep.subr.bf16.mxu0 0
    %328 = vmatpush2.bf16.msra.mxu0 0
    %329 = vmatprep.subr.bf16.mxu0 0
    %330 = vmatpush2.bf16.msra.mxu0 0
    %331 = vmatprep.subr.bf16.mxu0 0
    %332 = vmatpush2.bf16.msra.mxu0 0
    %333 = vmatprep.subr.bf16.mxu0 0
    %334 = vmatpush2.bf16.msra.mxu0 0
    %335 = vmatprep.subr.bf16.mxu0 0
    %336 = vmatpush2.bf16.msra.mxu0 0
    %337 = vmatprep.mubr.bf16.mxu0 0
    %338 = vmatmul.mubr.bf16.gmra.mxu0 %v304
    %v339 = vpop.f32.mrf.mxu0
    %v340 = vadd.f32 0.0, %v339
    %v341 = vpop.f32.mrf.mxu0
    %v342 = vpop.f32.mrf.mxu0
    %v343 = vpop.f32.mrf.mxu0
    %344 = vdwg.mxu0
    %v345 = vadd.f32 %v303, %v340
    %v346 = vtanh.pop %v345
    %s347 = scalar_lea.vmem [#allocation8], 32
    %348 = vst [vmem:[%s347] sm:$0xff] %v346
    %s349 = scalar_lea.vmem [#allocation3], 20
    %v350 = vld [vmem:[%s349] sm:$0xf]
    %v351 = vunpack.c.l.bf16 %v350
    %v352 = vpack.c.bf16 %v346, %v346
    %353 = vmatprep.subr.bf16.mxu0 0
    %354 = vmatpush1.bf16.msra.mxu0 %v105
    %355 = vmatprep.subr.bf16.mxu0 0
    %356 = vmatpush1.bf16.msra.mxu0 %v104
    %357 = vmatprep.subr.bf16.mxu0 0
    %358 = vmatpush1.bf16.msra.mxu0 %v103
    %359 = vmatprep.subr.bf16.mxu0 0
    %360 = vmatpush1.bf16.msra.mxu0 %v102
    %361 = vmatprep.subr.bf16.mxu0 0
    %362 = vmatpush1.bf16.msra.mxu0 %v101
    %363 = vmatprep.subr.bf16.mxu0 0
    %364 = vmatpush1.bf16.msra.mxu0 %v100
    %365 = vmatprep.subr.bf16.mxu0 0
    %366 = vmatpush1.bf16.msra.mxu0 %v99
    %367 = vmatprep.subr.bf16.mxu0 0
    %368 = vmatpush1.bf16.msra.mxu0 %v98
    %369 = vmatprep.subr.bf16.mxu0 0
    %370 = vmatpush2.bf16.msra.mxu0 0
    %371 = vmatprep.subr.bf16.mxu0 0
    %372 = vmatpush2.bf16.msra.mxu0 0
    %373 = vmatprep.subr.bf16.mxu0 0
    %374 = vmatpush2.bf16.msra.mxu0 0
    %375 = vmatprep.subr.bf16.mxu0 0
    %376 = vmatpush2.bf16.msra.mxu0 0
    %377 = vmatprep.subr.bf16.mxu0 0
    %378 = vmatpush2.bf16.msra.mxu0 0
    %379 = vmatprep.subr.bf16.mxu0 0
    %380 = vmatpush2.bf16.msra.mxu0 0
    %381 = vmatprep.subr.bf16.mxu0 0
    %382 = vmatpush2.bf16.msra.mxu0 0
    %383 = vmatprep.subr.bf16.mxu0 0
    %384 = vmatpush2.bf16.msra.mxu0 0
    %385 = vmatprep.mubr.bf16.mxu0 0
    %386 = vmatmul.mubr.bf16.gmra.mxu0 %v352
    %v387 = vpop.f32.mrf.mxu0
    %v388 = vadd.f32 0.0, %v387
    %v389 = vpop.f32.mrf.mxu0
    %v390 = vpop.f32.mrf.mxu0
    %v391 = vpop.f32.mrf.mxu0
    %392 = vdwg.mxu0
    %v393 = vadd.f32 %v351, %v388
    %v394 = vtanh.pop %v393
    %s395 = scalar_lea.vmem [#allocation8], 40
    %396 = vst [vmem:[%s395] sm:$0xff] %v394
    %s397 = scalar_lea.vmem [#allocation3], 24
    %v398 = vld [vmem:[%s397] sm:$0xf]
    %v399 = vunpack.c.l.bf16 %v398
    %v400 = vpack.c.bf16 %v394, %v394
    %401 = vmatprep.subr.bf16.mxu0 0
    %402 = vmatpush1.bf16.msra.mxu0 %v105
    %403 = vmatprep.subr.bf16.mxu0 0
    %404 = vmatpush1.bf16.msra.mxu0 %v104
    %405 = vmatprep.subr.bf16.mxu0 0
    %406 = vmatpush1.bf16.msra.mxu0 %v103
    %407 = vmatprep.subr.bf16.mxu0 0
    %408 = vmatpush1.bf16.msra.mxu0 %v102
    %409 = vmatprep.subr.bf16.mxu0 0
    %410 = vmatpush1.bf16.msra.mxu0 %v101
    %411 = vmatprep.subr.bf16.mxu0 0
    %412 = vmatpush1.bf16.msra.mxu0 %v100
    %413 = vmatprep.subr.bf16.mxu0 0
    %414 = vmatpush1.bf16.msra.mxu0 %v99
    %415 = vmatprep.subr.bf16.mxu0 0
    %416 = vmatpush1.bf16.msra.mxu0 %v98
    %417 = vmatprep.subr.bf16.mxu0 0
    %418 = vmatpush2.bf16.msra.mxu0 0
    %419 = vmatprep.subr.bf16.mxu0 0
    %420 = vmatpush2.bf16.msra.mxu0 0
    %421 = vmatprep.subr.bf16.mxu0 0
    %422 = vmatpush2.bf16.msra.mxu0 0
    %423 = vmatprep.subr.bf16.mxu0 0
    %424 = vmatpush2.bf16.msra.mxu0 0
    %425 = vmatprep.subr.bf16.mxu0 0
    %426 = vmatpush2.bf16.msra.mxu0 0
    %427 = vmatprep.subr.bf16.mxu0 0
    %428 = vmatpush2.bf16.msra.mxu0 0
    %429 = vmatprep.subr.bf16.mxu0 0
    %430 = vmatpush2.bf16.msra.mxu0 0
    %431 = vmatprep.subr.bf16.mxu0 0
    %432 = vmatpush2.bf16.msra.mxu0 0
    %433 = vmatprep.mubr.bf16.mxu0 0
    %434 = vmatmul.mubr.bf16.gmra.mxu0 %v400
    %v435 = vpop.f32.mrf.mxu0
    %v436 = vadd.f32 0.0, %v435
    %v437 = vpop.f32.mrf.mxu0
    %v438 = vpop.f32.mrf.mxu0
    %v439 = vpop.f32.mrf.mxu0
    %440 = vdwg.mxu0
    %v441 = vadd.f32 %v399, %v436
    %v442 = vtanh.pop %v441
    %s443 = scalar_lea.vmem [#allocation8], 48
    %444 = vst [vmem:[%s443] sm:$0xff] %v442
    %s445 = scalar_lea.vmem [#allocation3], 28
    %v446 = vld [vmem:[%s445] sm:$0xf]
    %v447 = vunpack.c.l.bf16 %v446
    %v448 = vpack.c.bf16 %v442, %v442
    %449 = vmatprep.subr.bf16.mxu0 0
    %450 = vmatpush1.bf16.msra.mxu0 %v105
    %451 = vmatprep.subr.bf16.mxu0 0
    %452 = vmatpush1.bf16.msra.mxu0 %v104
    %453 = vmatprep.subr.bf16.mxu0 0
    %454 = vmatpush1.bf16.msra.mxu0 %v103
    %455 = vmatprep.subr.bf16.mxu0 0
    %456 = vmatpush1.bf16.msra.mxu0 %v102
    %457 = vmatprep.subr.bf16.mxu0 0
    %458 = vmatpush1.bf16.msra.mxu0 %v101
    %459 = vmatprep.subr.bf16.mxu0 0
    %460 = vmatpush1.bf16.msra.mxu0 %v100
    %461 = vmatprep.subr.bf16.mxu0 0
    %462 = vmatpush1.bf16.msra.mxu0 %v99
    %463 = vmatprep.subr.bf16.mxu0 0
    %464 = vmatpush1.bf16.msra.mxu0 %v98
    %465 = vmatprep.subr.bf16.mxu0 0
    %466 = vmatpush2.bf16.msra.mxu0 0
    %467 = vmatprep.subr.bf16.mxu0 0
    %468 = vmatpush2.bf16.msra.mxu0 0
    %469 = vmatprep.subr.bf16.mxu0 0
    %470 = vmatpush2.bf16.msra.mxu0 0
    %471 = vmatprep.subr.bf16.mxu0 0
    %472 = vmatpush2.bf16.msra.mxu0 0
    %473 = vmatprep.subr.bf16.mxu0 0
    %474 = vmatpush2.bf16.msra.mxu0 0
    %475 = vmatprep.subr.bf16.mxu0 0
    %476 = vmatpush2.bf16.msra.mxu0 0
    %477 = vmatprep.subr.bf16.mxu0 0
    %478 = vmatpush2.bf16.msra.mxu0 0
    %479 = vmatprep.subr.bf16.mxu0 0
    %480 = vmatpush2.bf16.msra.mxu0 0
    %481 = vmatprep.mubr.bf16.mxu0 0
    %482 = vmatmul.mubr.bf16.gmra.mxu0 %v448
    %v483 = vpop.f32.mrf.mxu0
    %v484 = vadd.f32 0.0, %v483
    %v485 = vpop.f32.mrf.mxu0
    %v486 = vpop.f32.mrf.mxu0
    %v487 = vpop.f32.mrf.mxu0
    %488 = vdwg.mxu0
    %v489 = vadd.f32 %v447, %v484
    %v490 = vtanh.pop %v489
    %s491 = scalar_lea.vmem [#allocation8], 56
    %492 = vst [vmem:[%s491] sm:$0xff] %v490
    %493 = vst [vmem:[#allocation2] sm:$0xff] %v490
    // Predicated region
    $region22: #{tpu_custom_call.1} parent=1 // pred_check
      _
    $region23: #{tpu_custom_call.1} parent=1 // pred_check_branch
      %495 = sbr.rel (0) target = $region25
    $region24: #{tpu_custom_call.1} parent=1 // pred_region
      %s497 = ssub.s32 1024, 1024
      %498 = vsyncadd [#allocation5], %s497
      %s499 = sshll.u32 [#allocation8], 4
      %s500 = int_to_ptr.vmem [resolvable:$true] %s499
      %505 = dma.vmem_to_hbm [thread:$0]  %s500, 1024, %s2, [#allocation5], 128, 128, 8
    $region25: #{tpu_custom_call.1} parent=1 // pred_fallthru
      _
    // Predicated region
    $region26: #{tpu_custom_call.1} parent=1 // pred_check
      _
    $region27: #{tpu_custom_call.1} parent=1 // pred_check_branch
      %507 = sbr.rel (0) target = $region29
    $region28: #{tpu_custom_call.1} parent=1 // pred_region
      %508 = dma.done [#allocation5], 1024
    $region29: #{tpu_custom_call.1} parent=1 // pred_fallthru
      _
    %509 = vsyncpa [#allocation4], 1
    %510 = vsyncpa [#allocation7], 1
    %511 = vsyncpa [#allocation5], 1

</llo_original>
